<compile_context>
chip_gen: v5e
topology: v5e:2x2
jax: 0.10.0
libtpu: 0.0.40
codegen_flags: <defaults>
</compile_context>

<pallas_src>
import functools

import numpy as np
import jax
import jax.numpy as jnp
from jax.experimental import pallas as pl
from jax.experimental.pallas import tpu as pltpu


def _round_up(x, m):
    return ((x + m - 1) // m) * m


def _bigru_kernel(gi_f_ref, gi_b_ref, lens_ref, whh_ref, bhn_ref,
                  out_f_ref, out_b_ref, h_ref, *,
                  time_block, total_time, hidden_pad, unroll):
    """One grid step = `time_block` timesteps of BOTH directions.

    gi_f_ref : (Tc, Bp, 3*Hp)  fwd input gates [r|z|n] (b_ih + b_hr/b_hz folded in).
    gi_b_ref : (Tc, Bp, 3*Hp)  bwd input gates; block n_blocks-1-i, read row Tc-1-tt.
    lens_ref : (Bp, Hp) int32  sequence lengths, pre-broadcast over lanes.
    whh_ref  : (2*Hp, 6*Hp)    block-diagonal recurrent weights, cols [f r|z|n | b r|z|n].
    bhn_ref  : (Bp, 2*Hp)      recurrent n-gate biases [b_hn_f | b_hn_b], pre-broadcast.
    out_f_ref: (Tc, Bp, Hp)    streamed fwd outputs (write-once, block i).
    out_b_ref: (Tc, Bp, Hp)    streamed bwd outputs (write-once, block n_blocks-1-i).
    h_ref    : (Bp, 2*Hp)      resident hidden state [h_fwd | h_bwd].
    """
    Tc = time_block
    Tp = total_time
    Hp = hidden_pad
    i = pl.program_id(0)

    @pl.when(i == 0)
    def _():
        # hidden=None in the PyTorch module -> zero initial states for both directions.
        h_ref[...] = jnp.zeros_like(h_ref)

    # Hoisted loads / slices (never re-emitted per unrolled timestep).
    lens = lens_ref[...]                         # (Bp, Hp) int32
    whh = whh_ref[...]                           # (2*Hp, 6*Hp) f32
    bhn = bhn_ref[...]                           # (Bp, 2*Hp) f32
    bhn_f = bhn[:, 0:Hp]
    bhn_b = bhn[:, Hp:2 * Hp]

    def step(tt, h):
        g = i * Tc + tt                          # forward global time
        gb = (Tp - 1) - g                        # backward global time
        rtt = Tc - 1 - tt                        # row inside the (time-reversed) bwd block

        xf = gi_f_ref[tt].astype(jnp.float32)    # (Bp, 3*Hp)
        xb = gi_b_ref[rtt].astype(jnp.float32)   # (Bp, 3*Hp)

        # Single MXU push covering both directions (h = [h_f | h_b]).
        gh = jnp.dot(h, whh, preferred_element_type=jnp.float32)   # (Bp, 6*Hp)

        # Forward GRU cell (r/z recurrent biases already folded into xf; b_hn stays
        # inside the r * (...) term, matching torch.nn.GRU).
        r_f = jax.nn.sigmoid(xf[:, 0:Hp] + gh[:, 0:Hp])
        z_f = jax.nn.sigmoid(xf[:, Hp:2 * Hp] + gh[:, Hp:2 * Hp])
        n_f = jnp.tanh(xf[:, 2 * Hp:3 * Hp] + r_f * (gh[:, 2 * Hp:3 * Hp] + bhn_f))
        hf_new = (1.0 - z_f) * n_f + z_f * h[:, 0:Hp]

        # Backward GRU cell.
        r_b = jax.nn.sigmoid(xb[:, 0:Hp] + gh[:, 3 * Hp:4 * Hp])
        z_b = jax.nn.sigmoid(xb[:, Hp:2 * Hp] + gh[:, 4 * Hp:5 * Hp])
        n_b = jnp.tanh(xb[:, 2 * Hp:3 * Hp] + r_b * (gh[:, 5 * Hp:6 * Hp] + bhn_b))
        hb_new = (1.0 - z_b) * n_b + z_b * h[:, Hp:2 * Hp]

        # pack_padded masking: fwd valid iff g < len, bwd valid iff gb < len.
        valid_f = g < lens                       # (Bp, Hp) bool
        valid_b = gb < lens

        # Write-once streamed outputs (no read-modify-write, no aliasing hazard).
        out_f_ref[tt] = jnp.where(valid_f, hf_new, 0.0)
        out_b_ref[rtt] = jnp.where(valid_b, hb_new, 0.0)

        # Hidden state only advances on valid steps.
        hf = jnp.where(valid_f, hf_new, h[:, 0:Hp])
        hb = jnp.where(valid_b, hb_new, h[:, Hp:2 * Hp])
        return jnp.concatenate([hf, hb], axis=1)

    h_ref[...] = jax.lax.fori_loop(0, Tc, step, h_ref[...], unroll=unroll)


def encoder_rnn_forward(input_seq, input_lengths, params, *, time_block=None,
                        gate_dtype=jnp.bfloat16):
    """input_seq: (T, B) int32 token ids; input_lengths: (B,) int32 (max == T)."""
    emb = params["embedding"][input_seq].astype(jnp.float32)   # XLA glue gather -> (T, B, H)
    T, B, H = emb.shape
    Hp = _round_up(H, 128)          # lane-dense hidden dim
    Bp = _round_up(B, 8)            # sublane-aligned batch
    if time_block is None:
        time_block = min(64, _round_up(T, 8))
    Tc = int(time_block)
    assert Tc % 8 == 0, "time_block must be a multiple of 8"
    Tp = _round_up(T, Tc)
    n_blocks = Tp // Tc
    unroll = min(8, Tc)             # partial unroll bounds code size / vreg pressure
    f32 = jnp.float32

    # ---- per-direction weight packing (lane padding + bias folding) ----
    def pack_dir(wih, bih, whh, bhh):
        # wih/whh: (H, 3H) pre-transposed, bih/bhh: (1, 3H); gate order [r | z | n].
        wih_p = jnp.zeros((H, 3, Hp), f32).at[:, :, :H].set(
            wih.reshape(H, 3, H)).reshape(H, 3 * Hp)
        bih3 = bih.reshape(3, H)
        bhh3 = bhh.reshape(3, H)
        # b_hr / b_hz are purely additive with the input gates -> fold into the hoisted
        # projection; b_hn must stay inside r * (W_hn h + b_hn) so it is kept separate.
        b_fold = bih3.at[0].add(bhh3[0]).at[1].add(bhh3[1])
        bih_p = jnp.zeros((3, Hp), f32).at[:, :H].set(b_fold).reshape(1, 3 * Hp)
        whh_p = jnp.zeros((Hp, 3, Hp), f32).at[:H, :, :H].set(
            whh.reshape(H, 3, H)).reshape(Hp, 3 * Hp)
        bhn_p = jnp.zeros((Hp,), f32).at[:H].set(bhh3[2])
        return wih_p, bih_p, whh_p, bhn_p

    wih_fp, bih_fp, whh_fp, bhn_fp = pack_dir(params["wih_f"], params["bih_f"],
                                              params["whh_f"], params["bhh_f"])
    wih_bp, bih_bp, whh_bp, bhn_bp = pack_dir(params["wih_b"], params["bih_b"],
                                              params["whh_b"], params["bhh_b"])

    # Block-diagonal recurrent weights: rows [h_f | h_b], cols [fwd r|z|n | bwd r|z|n].
    whh_c = jnp.zeros((2 * Hp, 6 * Hp), f32)
    whh_c = whh_c.at[0:Hp, 0:3 * Hp].set(whh_fp)
    whh_c = whh_c.at[Hp:2 * Hp, 3 * Hp:6 * Hp].set(whh_bp)

    # Pre-broadcast b_hn so the kernel never re-emits a broadcast per unrolled step.
    bhn2 = jnp.broadcast_to(jnp.concatenate([bhn_fp, bhn_bp])[None, :], (Bp, 2 * Hp))

    # ---- hoisted, time-parallel input projection: one GEMM per direction, produced
    # directly in padded (Tp, Bp, 3*Hp) layout (only the SMALL embedding is padded). ----
    emb_p = jnp.zeros((Tp, Bp, H), f32).at[:T, :B, :].set(emb)
    gi_f = (jnp.einsum("tbh,hg->tbg", emb_p, wih_fp) + bih_fp).astype(gate_dtype)
    gi_b = (jnp.einsum("tbh,hg->tbg", emb_p, wih_bp) + bih_bp).astype(gate_dtype)

    lens_p = jnp.zeros((Bp,), jnp.int32).at[:B].set(input_lengths.astype(jnp.int32))
    lens_hp = jnp.broadcast_to(lens_p[:, None], (Bp, Hp))   # padded rows: len 0 -> masked

    kernel = functools.partial(_bigru_kernel, time_block=Tc, total_time=Tp,
                               hidden_pad=Hp, unroll=unroll)

    # ---- explicit VMEM budget: 2x double-buffered gate blocks + 2x output blocks +
    # resident weights/bias/lens/hidden, with headroom. ----
    gate_bytes = jnp.dtype(gate_dtype).itemsize
    gi_block = Tc * Bp * 3 * Hp * gate_bytes
    out_block = Tc * Bp * Hp * 4
    resident = (2 * Hp) * (6 * Hp) * 4 + Bp * Hp * 4 + 2 * (Bp * 2 * Hp * 4)
    vmem_limit = int(1.5 * (2 * 2 * gi_block + 2 * 2 * out_block + resident)) + (4 << 20)
    vmem_limit = int(min(max(vmem_limit, 8 << 20), 100 << 20))

    grid_spec = pltpu.PrefetchScalarGridSpec(
        num_scalar_prefetch=0,
        grid=(n_blocks,),
        in_specs=[
            pl.BlockSpec((Tc, Bp, 3 * Hp), lambda i: (i, 0, 0)),                   # fwd gates
            pl.BlockSpec((Tc, Bp, 3 * Hp), lambda i: (n_blocks - 1 - i, 0, 0)),    # bwd gates (reversed)
            pl.BlockSpec((Bp, Hp), lambda i: (0, 0)),                              # lengths (resident)
            pl.BlockSpec((2 * Hp, 6 * Hp), lambda i: (0, 0)),                      # W_hh both dirs
            pl.BlockSpec((Bp, 2 * Hp), lambda i: (0, 0)),                          # b_hn both dirs
        ],
        out_specs=[
            pl.BlockSpec((Tc, Bp, Hp), lambda i: (i, 0, 0)),                       # fwd outputs (streamed)
            pl.BlockSpec((Tc, Bp, Hp), lambda i: (n_blocks - 1 - i, 0, 0)),        # bwd outputs (streamed)
            pl.BlockSpec((Bp, 2 * Hp), lambda i: (0, 0)),                          # final hidden [h_f|h_b]
        ],
    )

    out_f, out_b, h_p = pl.pallas_call(
        kernel,
        grid_spec=grid_spec,
        out_shape=(
            jax.ShapeDtypeStruct((Tp, Bp, Hp), jnp.float32),
            jax.ShapeDtypeStruct((Tp, Bp, Hp), jnp.float32),
            jax.ShapeDtypeStruct((Bp, 2 * Hp), jnp.float32),
        ),
        compiler_params=pltpu.CompilerParams(
            dimension_semantics=("arbitrary",),
            vmem_limit_bytes=vmem_limit,
        ),
    )(gi_f, gi_b, lens_hp, whh_c, bhn2)

    outputs = out_f[:T, :B, :H] + out_b[:T, :B, :H]                 # direction sum
    hidden = jnp.stack([h_p[:B, 0:H], h_p[:B, Hp:Hp + H]], axis=0)  # (2*n_layers, B, H)
    return outputs, hidden


# --------------------- pure-JAX reference (for verification) ---------------------
def _ref_cell(x, h, wih, whh, bih, bhh, H):
    gi = x @ wih + bih
    gh = h @ whh + bhh
    r = jax.nn.sigmoid(gi[:, :H] + gh[:, :H])
    z = jax.nn.sigmoid(gi[:, H:2 * H] + gh[:, H:2 * H])
    n = jnp.tanh(gi[:, 2 * H:] + r * gh[:, 2 * H:])
    return (1.0 - z) * n + z * h


def reference_forward(input_seq, input_lengths, params):
    emb = params["embedding"][input_seq].astype(jnp.float32)
    T, B, H = emb.shape
    lens = input_lengths.astype(jnp.int32).reshape(B, 1)

    h_f = jnp.zeros((B, H), jnp.float32)
    outs_f = []
    for t in range(T):
        h_new = _ref_cell(emb[t], h_f, params["wih_f"], params["whh_f"],
                          params["bih_f"], params["bhh_f"], H)
        m = t < lens
        outs_f.append(jnp.where(m, h_new, 0.0))
        h_f = jnp.where(m, h_new, h_f)

    h_b = jnp.zeros((B, H), jnp.float32)
    outs_b = [None] * T
    for p in range(T - 1, -1, -1):
        h_new = _ref_cell(emb[p], h_b, params["wih_b"], params["whh_b"],
                          params["bih_b"], params["bhh_b"], H)
        m = p < lens
        outs_b[p] = jnp.where(m, h_new, 0.0)
        h_b = jnp.where(m, h_new, h_b)

    outputs = jnp.stack(outs_f) + jnp.stack(outs_b)
    hidden = jnp.stack([h_f, h_b], axis=0)
    return outputs, hidden


# ------------------------------------ main ------------------------------------
if __name__ == "__main__":
    T, B, H, V = 12, 4, 32, 20   # seq_len, batch, hidden_size, vocab_size

    key = jax.random.PRNGKey(0)
    keys = jax.random.split(key, 12)
    k = 1.0 / np.sqrt(H)

    def u(kk, shape):
        return jax.random.uniform(kk, shape, jnp.float32, minval=-k, maxval=k)

    params = {
        "embedding": jax.random.normal(keys[0], (V, H), jnp.float32) * 0.1,
        # weights stored pre-transposed as (H, 3H), gate order [r | z | n]
        # (== torch weight_ih_l0.T etc. for a real checkpoint)
        "wih_f": u(keys[1], (H, 3 * H)), "whh_f": u(keys[2], (H, 3 * H)),
        "bih_f": u(keys[3], (1, 3 * H)), "bhh_f": u(keys[4], (1, 3 * H)),
        "wih_b": u(keys[5], (H, 3 * H)), "whh_b": u(keys[6], (H, 3 * H)),
        "bih_b": u(keys[7], (1, 3 * H)), "bhh_b": u(keys[8], (1, 3 * H)),
    }

    input_seq = jax.random.randint(keys[9], (T, B), 0, V, dtype=jnp.int32)
    # max length == T so the padded output length equals T (as pad_packed_sequence gives).
    input_lengths = jnp.array([12, 7, 3, 9], dtype=jnp.int32)

    ref_out, ref_hid = reference_forward(input_seq, input_lengths, params)

    # Exact-path check (f32 gate stream) with a multi-block grid (Tc=8 -> 2 blocks)
    # to exercise the reversed index_map / cross-block hidden-state carry.
    fwd_f32 = jax.jit(functools.partial(encoder_rnn_forward,
                                        time_block=8, gate_dtype=jnp.float32))
    out32, hid32 = fwd_f32(input_seq, input_lengths, params)
    out32 = jax.block_until_ready(out32)
    hid32 = jax.block_until_ready(hid32)
    assert out32.shape == (T, B, H) and hid32.shape == (2, B, H)
    assert np.allclose(np.asarray(out32), np.asarray(ref_out), atol=1e-4, rtol=1e-4)
    assert np.allclose(np.asarray(hid32), np.asarray(ref_hid), atol=1e-4, rtol=1e-4)

    # Default fast path: bf16 gate stream + larger time block (looser tolerance).
    fwd = jax.jit(encoder_rnn_forward)
    outputs, hidden = fwd(input_seq, input_lengths, params)
    outputs = jax.block_until_ready(outputs)
    hidden = jax.block_until_ready(hidden)
    assert outputs.shape == (T, B, H) and hidden.shape == (2, B, H)
    assert np.allclose(np.asarray(outputs), np.asarray(ref_out), atol=2e-2, rtol=2e-2)
    assert np.allclose(np.asarray(hidden), np.asarray(ref_hid), atol=2e-2, rtol=2e-2)

    print("KERNEL_OK")
</pallas_src>

<mosaic_0001>
module attributes {stable_mosaic.version = 11 : i64} {
  func.func @_bigru_kernel(%arg0: i32, %arg1: memref<8x8x384xf32, #tpu.memory_space<vmem>>, %arg2: memref<8x8x384xf32, #tpu.memory_space<vmem>>, %arg3: memref<8x128xi32, #tpu.memory_space<vmem>>, %arg4: memref<256x768xf32, #tpu.memory_space<vmem>>, %arg5: memref<8x256xf32, #tpu.memory_space<vmem>>, %arg6: memref<8x8x128xf32, #tpu.memory_space<vmem>>, %arg7: memref<8x8x128xf32, #tpu.memory_space<vmem>>, %arg8: memref<8x256xf32, #tpu.memory_space<vmem>>) attributes {dimension_semantics = [#tpu.dimension_semantics<arbitrary>], iteration_bounds = array<i64: 2>, scalar_prefetch = 0 : i64, scratch_operands = 0 : i64, tpu.core_type = #tpu.core_type<tc>, window_params = [{transform_indices = @transform_0, window_bounds = array<i64: 8, 8, 384>}, {transform_indices = @transform_1, window_bounds = array<i64: 8, 8, 384>}, {pipeline_mode = #tpu.pipeline_mode<synchronous>, transform_indices = @transform_2, window_bounds = array<i64: 8, 128>}, {pipeline_mode = #tpu.pipeline_mode<synchronous>, transform_indices = @transform_3, window_bounds = array<i64: 256, 768>}, {pipeline_mode = #tpu.pipeline_mode<synchronous>, transform_indices = @transform_4, window_bounds = array<i64: 8, 256>}, {transform_indices = @transform_5, window_bounds = array<i64: 8, 8, 128>}, {transform_indices = @transform_6, window_bounds = array<i64: 8, 8, 128>}, {pipeline_mode = #tpu.pipeline_mode<synchronous>, transform_indices = @transform_7, window_bounds = array<i64: 8, 256>}]} {
    %c0_i32 = arith.constant 0 : i32
    %0 = arith.cmpi eq, %arg0, %c0_i32 : i32
    %1 = arith.extui %0 : i1 to i32
    %c0_i32_0 = arith.constant 0 : i32
    %2 = arith.cmpi ne, %1, %c0_i32_0 : i32
    scf.if %2 {
      %cst_169 = arith.constant 0.000000e+00 : f32
      %714 = vector.broadcast %cst_169 : f32 to vector<8x256xf32>
      %c0_170 = arith.constant 0 : index
      %c0_171 = arith.constant 0 : index
      %715 = vector.load %arg8[%c0_170, %c0_171] : memref<8x256xf32, #tpu.memory_space<vmem>>, vector<8x256xf32>
      tpu.vector_store %arg8[%c0_170, %c0_171], %714 {strides = array<i32>} : memref<8x256xf32, #tpu.memory_space<vmem>>, vector<8x256xf32>,
    } else {
    }
    %c0 = arith.constant 0 : index
    %c0_1 = arith.constant 0 : index
    %3 = vector.load %arg3[%c0, %c0_1] : memref<8x128xi32, #tpu.memory_space<vmem>>, vector<8x128xi32>
    %c0_2 = arith.constant 0 : index
    %c0_3 = arith.constant 0 : index
    %4 = vector.load %arg4[%c0_2, %c0_3] : memref<256x768xf32, #tpu.memory_space<vmem>>, vector<256x768xf32>
    %c0_4 = arith.constant 0 : index
    %c0_5 = arith.constant 0 : index
    %5 = vector.load %arg5[%c0_4, %c0_5] : memref<8x256xf32, #tpu.memory_space<vmem>>, vector<8x256xf32>
    %6 = vector.extract_strided_slice %5 {offsets = [0, 0], sizes = [8, 128], strides = [1, 1]} : vector<8x256xf32> to vector<8x128xf32>
    %7 = vector.extract_strided_slice %5 {offsets = [0, 128], sizes = [8, 128], strides = [1, 1]} : vector<8x256xf32> to vector<8x128xf32>
    %c0_6 = arith.constant 0 : index
    %c0_7 = arith.constant 0 : index
    %8 = vector.load %arg8[%c0_6, %c0_7] : memref<8x256xf32, #tpu.memory_space<vmem>>, vector<8x256xf32>
    %c0_i32_8 = arith.constant 0 : i32
    %c8_i32 = arith.constant 8 : i32
    %9 = arith.muli %arg0, %c8_i32 : i32
    %10 = arith.addi %9, %c0_i32_8 : i32
    %c15_i32 = arith.constant 15 : i32
    %11 = arith.subi %c15_i32, %10 : i32
    %c7_i32 = arith.constant 7 : i32
    %12 = arith.subi %c7_i32, %c0_i32_8 : i32
    %13 = arith.index_cast %c0_i32_8 : i32 to index
    %c0_9 = arith.constant 0 : index
    %c0_10 = arith.constant 0 : index
    %14 = vector.load %arg1[%13, %c0_9, %c0_10] : memref<8x8x384xf32, #tpu.memory_space<vmem>>, vector<1x8x384xf32>
    %15 = vector.shape_cast %14 : vector<1x8x384xf32> to vector<8x384xf32>
    %16 = arith.index_cast %12 : i32 to index
    %c0_11 = arith.constant 0 : index
    %c0_12 = arith.constant 0 : index
    %17 = vector.load %arg2[%16, %c0_11, %c0_12] : memref<8x8x384xf32, #tpu.memory_space<vmem>>, vector<1x8x384xf32>
    %18 = vector.shape_cast %17 : vector<1x8x384xf32> to vector<8x384xf32>
    %cst = arith.constant dense<0.000000e+00> : vector<8x768xf32>
    %19 = tpu.matmul %8, %4, %cst {dimension_numbers = #tpu.dot_dimension_numbers<[1], [0], [0], [1], [0, 0, 1, 1], [], []>} : vector<8x256xf32>, vector<256x768xf32>, vector<8x768xf32> -> vector<8x768xf32>
    %20 = vector.extract_strided_slice %15 {offsets = [0, 0], sizes = [8, 128], strides = [1, 1]} : vector<8x384xf32> to vector<8x128xf32>
    %21 = vector.extract_strided_slice %19 {offsets = [0, 0], sizes = [8, 128], strides = [1, 1]} : vector<8x768xf32> to vector<8x128xf32>
    %22 = arith.addf %20, %21 : vector<8x128xf32>
    %23 = arith.negf %22 : vector<8x128xf32>
    %24 = math.exp %23 : vector<8x128xf32>
    %cst_13 = arith.constant 1.000000e+00 : f32
    %25 = vector.broadcast %cst_13 : f32 to vector<8x128xf32>
    %26 = arith.addf %25, %24 : vector<8x128xf32>
    %27 = arith.divf %25, %26 : vector<8x128xf32>
    %28 = vector.extract_strided_slice %15 {offsets = [0, 128], sizes = [8, 128], strides = [1, 1]} : vector<8x384xf32> to vector<8x128xf32>
    %29 = vector.extract_strided_slice %19 {offsets = [0, 128], sizes = [8, 128], strides = [1, 1]} : vector<8x768xf32> to vector<8x128xf32>
    %30 = arith.addf %28, %29 : vector<8x128xf32>
    %31 = arith.negf %30 : vector<8x128xf32>
    %32 = math.exp %31 : vector<8x128xf32>
    %cst_14 = arith.constant 1.000000e+00 : f32
    %33 = vector.broadcast %cst_14 : f32 to vector<8x128xf32>
    %34 = arith.addf %33, %32 : vector<8x128xf32>
    %35 = arith.divf %33, %34 : vector<8x128xf32>
    %36 = vector.extract_strided_slice %15 {offsets = [0, 256], sizes = [8, 128], strides = [1, 1]} : vector<8x384xf32> to vector<8x128xf32>
    %37 = vector.extract_strided_slice %19 {offsets = [0, 256], sizes = [8, 128], strides = [1, 1]} : vector<8x768xf32> to vector<8x128xf32>
    %38 = arith.addf %37, %6 : vector<8x128xf32>
    %39 = arith.mulf %27, %38 : vector<8x128xf32>
    %40 = arith.addf %36, %39 : vector<8x128xf32>
    %41 = math.tanh %40 : vector<8x128xf32>
    %cst_15 = arith.constant 1.000000e+00 : f32
    %42 = vector.broadcast %cst_15 : f32 to vector<8x128xf32>
    %43 = arith.subf %42, %35 : vector<8x128xf32>
    %44 = arith.mulf %43, %41 : vector<8x128xf32>
    %45 = vector.extract_strided_slice %8 {offsets = [0, 0], sizes = [8, 128], strides = [1, 1]} : vector<8x256xf32> to vector<8x128xf32>
    %46 = arith.mulf %35, %45 : vector<8x128xf32>
    %47 = arith.addf %44, %46 : vector<8x128xf32>
    %48 = vector.extract_strided_slice %18 {offsets = [0, 0], sizes = [8, 128], strides = [1, 1]} : vector<8x384xf32> to vector<8x128xf32>
    %49 = vector.extract_strided_slice %19 {offsets = [0, 384], sizes = [8, 128], strides = [1, 1]} : vector<8x768xf32> to vector<8x128xf32>
    %50 = arith.addf %48, %49 : vector<8x128xf32>
    %51 = arith.negf %50 : vector<8x128xf32>
    %52 = math.exp %51 : vector<8x128xf32>
    %cst_16 = arith.constant 1.000000e+00 : f32
    %53 = vector.broadcast %cst_16 : f32 to vector<8x128xf32>
    %54 = arith.addf %53, %52 : vector<8x128xf32>
    %55 = arith.divf %53, %54 : vector<8x128xf32>
    %56 = vector.extract_strided_slice %18 {offsets = [0, 128], sizes = [8, 128], strides = [1, 1]} : vector<8x384xf32> to vector<8x128xf32>
    %57 = vector.extract_strided_slice %19 {offsets = [0, 512], sizes = [8, 128], strides = [1, 1]} : vector<8x768xf32> to vector<8x128xf32>
    %58 = arith.addf %56, %57 : vector<8x128xf32>
    %59 = arith.negf %58 : vector<8x128xf32>
    %60 = math.exp %59 : vector<8x128xf32>
    %cst_17 = arith.constant 1.000000e+00 : f32
    %61 = vector.broadcast %cst_17 : f32 to vector<8x128xf32>
    %62 = arith.addf %61, %60 : vector<8x128xf32>
    %63 = arith.divf %61, %62 : vector<8x128xf32>
    %64 = vector.extract_strided_slice %18 {offsets = [0, 256], sizes = [8, 128], strides = [1, 1]} : vector<8x384xf32> to vector<8x128xf32>
    %65 = vector.extract_strided_slice %19 {offsets = [0, 640], sizes = [8, 128], strides = [1, 1]} : vector<8x768xf32> to vector<8x128xf32>
    %66 = arith.addf %65, %7 : vector<8x128xf32>
    %67 = arith.mulf %55, %66 : vector<8x128xf32>
    %68 = arith.addf %64, %67 : vector<8x128xf32>
    %69 = math.tanh %68 : vector<8x128xf32>
    %cst_18 = arith.constant 1.000000e+00 : f32
    %70 = vector.broadcast %cst_18 : f32 to vector<8x128xf32>
    %71 = arith.subf %70, %63 : vector<8x128xf32>
    %72 = arith.mulf %71, %69 : vector<8x128xf32>
    %73 = vector.extract_strided_slice %8 {offsets = [0, 128], sizes = [8, 128], strides = [1, 1]} : vector<8x256xf32> to vector<8x128xf32>
    %74 = arith.mulf %63, %73 : vector<8x128xf32>
    %75 = arith.addf %72, %74 : vector<8x128xf32>
    %76 = vector.broadcast %10 : i32 to vector<8x128xi32>
    %77 = arith.cmpi slt, %76, %3 : vector<8x128xi32>
    %78 = vector.broadcast %11 : i32 to vector<8x128xi32>
    %79 = arith.cmpi slt, %78, %3 : vector<8x128xi32>
    %cst_19 = arith.constant 0.000000e+00 : f32
    %80 = vector.broadcast %cst_19 : f32 to vector<8x128xf32>
    %81 = arith.select %77, %47, %80 : vector<8x128xi1>, vector<8x128xf32>
    %82 = arith.index_cast %c0_i32_8 : i32 to index
    %c0_20 = arith.constant 0 : index
    %c0_21 = arith.constant 0 : index
    %83 = vector.load %arg6[%82, %c0_20, %c0_21] : memref<8x8x128xf32, #tpu.memory_space<vmem>>, vector<1x8x128xf32>
    %84 = vector.shape_cast %83 : vector<1x8x128xf32> to vector<8x128xf32>
    %85 = vector.shape_cast %81 : vector<8x128xf32> to vector<1x8x128xf32>
    tpu.vector_store %arg6[%82, %c0_20, %c0_21], %85 {strides = array<i32>} : memref<8x8x128xf32, #tpu.memory_space<vmem>>, vector<1x8x128xf32>,
    %cst_22 = arith.constant 0.000000e+00 : f32
    %86 = vector.broadcast %cst_22 : f32 to vector<8x128xf32>
    %87 = arith.select %79, %75, %86 : vector<8x128xi1>, vector<8x128xf32>
    %88 = arith.index_cast %12 : i32 to index
    %c0_23 = arith.constant 0 : index
    %c0_24 = arith.constant 0 : index
    %89 = vector.load %arg7[%88, %c0_23, %c0_24] : memref<8x8x128xf32, #tpu.memory_space<vmem>>, vector<1x8x128xf32>
    %90 = vector.shape_cast %89 : vector<1x8x128xf32> to vector<8x128xf32>
    %91 = vector.shape_cast %87 : vector<8x128xf32> to vector<1x8x128xf32>
    tpu.vector_store %arg7[%88, %c0_23, %c0_24], %91 {strides = array<i32>} : memref<8x8x128xf32, #tpu.memory_space<vmem>>, vector<1x8x128xf32>,
    %92 = vector.extract_strided_slice %8 {offsets = [0, 0], sizes = [8, 128], strides = [1, 1]} : vector<8x256xf32> to vector<8x128xf32>
    %93 = arith.select %77, %47, %92 : vector<8x128xi1>, vector<8x128xf32>
    %94 = vector.extract_strided_slice %8 {offsets = [0, 128], sizes = [8, 128], strides = [1, 1]} : vector<8x256xf32> to vector<8x128xf32>
    %95 = arith.select %79, %75, %94 : vector<8x128xi1>, vector<8x128xf32>
    %96 = tpu.concatenate %93, %95 in 1 : vector<8x128xf32>, vector<8x128xf32> -> vector<8x256xf32>
    %c1_i32 = arith.constant 1 : i32
    %c8_i32_25 = arith.constant 8 : i32
    %97 = arith.muli %arg0, %c8_i32_25 : i32
    %98 = arith.addi %97, %c1_i32 : i32
    %c15_i32_26 = arith.constant 15 : i32
    %99 = arith.subi %c15_i32_26, %98 : i32
    %c7_i32_27 = arith.constant 7 : i32
    %100 = arith.subi %c7_i32_27, %c1_i32 : i32
    %101 = arith.index_cast %c1_i32 : i32 to index
    %c0_28 = arith.constant 0 : index
    %c0_29 = arith.constant 0 : index
    %102 = vector.load %arg1[%101, %c0_28, %c0_29] : memref<8x8x384xf32, #tpu.memory_space<vmem>>, vector<1x8x384xf32>
    %103 = vector.shape_cast %102 : vector<1x8x384xf32> to vector<8x384xf32>
    %104 = arith.index_cast %100 : i32 to index
    %c0_30 = arith.constant 0 : index
    %c0_31 = arith.constant 0 : index
    %105 = vector.load %arg2[%104, %c0_30, %c0_31] : memref<8x8x384xf32, #tpu.memory_space<vmem>>, vector<1x8x384xf32>
    %106 = vector.shape_cast %105 : vector<1x8x384xf32> to vector<8x384xf32>
    %cst_32 = arith.constant dense<0.000000e+00> : vector<8x768xf32>
    %107 = tpu.matmul %96, %4, %cst_32 {dimension_numbers = #tpu.dot_dimension_numbers<[1], [0], [0], [1], [0, 0, 1, 1], [], []>} : vector<8x256xf32>, vector<256x768xf32>, vector<8x768xf32> -> vector<8x768xf32>
    %108 = vector.extract_strided_slice %103 {offsets = [0, 0], sizes = [8, 128], strides = [1, 1]} : vector<8x384xf32> to vector<8x128xf32>
    %109 = vector.extract_strided_slice %107 {offsets = [0, 0], sizes = [8, 128], strides = [1, 1]} : vector<8x768xf32> to vector<8x128xf32>
    %110 = arith.addf %108, %109 : vector<8x128xf32>
    %111 = arith.negf %110 : vector<8x128xf32>
    %112 = math.exp %111 : vector<8x128xf32>
    %cst_33 = arith.constant 1.000000e+00 : f32
    %113 = vector.broadcast %cst_33 : f32 to vector<8x128xf32>
    %114 = arith.addf %113, %112 : vector<8x128xf32>
    %115 = arith.divf %113, %114 : vector<8x128xf32>
    %116 = vector.extract_strided_slice %103 {offsets = [0, 128], sizes = [8, 128], strides = [1, 1]} : vector<8x384xf32> to vector<8x128xf32>
    %117 = vector.extract_strided_slice %107 {offsets = [0, 128], sizes = [8, 128], strides = [1, 1]} : vector<8x768xf32> to vector<8x128xf32>
    %118 = arith.addf %116, %117 : vector<8x128xf32>
    %119 = arith.negf %118 : vector<8x128xf32>
    %120 = math.exp %119 : vector<8x128xf32>
    %cst_34 = arith.constant 1.000000e+00 : f32
    %121 = vector.broadcast %cst_34 : f32 to vector<8x128xf32>
    %122 = arith.addf %121, %120 : vector<8x128xf32>
    %123 = arith.divf %121, %122 : vector<8x128xf32>
    %124 = vector.extract_strided_slice %103 {offsets = [0, 256], sizes = [8, 128], strides = [1, 1]} : vector<8x384xf32> to vector<8x128xf32>
    %125 = vector.extract_strided_slice %107 {offsets = [0, 256], sizes = [8, 128], strides = [1, 1]} : vector<8x768xf32> to vector<8x128xf32>
    %126 = arith.addf %125, %6 : vector<8x128xf32>
    %127 = arith.mulf %115, %126 : vector<8x128xf32>
    %128 = arith.addf %124, %127 : vector<8x128xf32>
    %129 = math.tanh %128 : vector<8x128xf32>
    %cst_35 = arith.constant 1.000000e+00 : f32
    %130 = vector.broadcast %cst_35 : f32 to vector<8x128xf32>
    %131 = arith.subf %130, %123 : vector<8x128xf32>
    %132 = arith.mulf %131, %129 : vector<8x128xf32>
    %133 = vector.extract_strided_slice %96 {offsets = [0, 0], sizes = [8, 128], strides = [1, 1]} : vector<8x256xf32> to vector<8x128xf32>
    %134 = arith.mulf %123, %133 : vector<8x128xf32>
    %135 = arith.addf %132, %134 : vector<8x128xf32>
    %136 = vector.extract_strided_slice %106 {offsets = [0, 0], sizes = [8, 128], strides = [1, 1]} : vector<8x384xf32> to vector<8x128xf32>
    %137 = vector.extract_strided_slice %107 {offsets = [0, 384], sizes = [8, 128], strides = [1, 1]} : vector<8x768xf32> to vector<8x128xf32>
    %138 = arith.addf %136, %137 : vector<8x128xf32>
    %139 = arith.negf %138 : vector<8x128xf32>
    %140 = math.exp %139 : vector<8x128xf32>
    %cst_36 = arith.constant 1.000000e+00 : f32
    %141 = vector.broadcast %cst_36 : f32 to vector<8x128xf32>
    %142 = arith.addf %141, %140 : vector<8x128xf32>
    %143 = arith.divf %141, %142 : vector<8x128xf32>
    %144 = vector.extract_strided_slice %106 {offsets = [0, 128], sizes = [8, 128], strides = [1, 1]} : vector<8x384xf32> to vector<8x128xf32>
    %145 = vector.extract_strided_slice %107 {offsets = [0, 512], sizes = [8, 128], strides = [1, 1]} : vector<8x768xf32> to vector<8x128xf32>
    %146 = arith.addf %144, %145 : vector<8x128xf32>
    %147 = arith.negf %146 : vector<8x128xf32>
    %148 = math.exp %147 : vector<8x128xf32>
    %cst_37 = arith.constant 1.000000e+00 : f32
    %149 = vector.broadcast %cst_37 : f32 to vector<8x128xf32>
    %150 = arith.addf %149, %148 : vector<8x128xf32>
    %151 = arith.divf %149, %150 : vector<8x128xf32>
    %152 = vector.extract_strided_slice %106 {offsets = [0, 256], sizes = [8, 128], strides = [1, 1]} : vector<8x384xf32> to vector<8x128xf32>
    %153 = vector.extract_strided_slice %107 {offsets = [0, 640], sizes = [8, 128], strides = [1, 1]} : vector<8x768xf32> to vector<8x128xf32>
    %154 = arith.addf %153, %7 : vector<8x128xf32>
    %155 = arith.mulf %143, %154 : vector<8x128xf32>
    %156 = arith.addf %152, %155 : vector<8x128xf32>
    %157 = math.tanh %156 : vector<8x128xf32>
    %cst_38 = arith.constant 1.000000e+00 : f32
    %158 = vector.broadcast %cst_38 : f32 to vector<8x128xf32>
    %159 = arith.subf %158, %151 : vector<8x128xf32>
    %160 = arith.mulf %159, %157 : vector<8x128xf32>
    %161 = vector.extract_strided_slice %96 {offsets = [0, 128], sizes = [8, 128], strides = [1, 1]} : vector<8x256xf32> to vector<8x128xf32>
    %162 = arith.mulf %151, %161 : vector<8x128xf32>
    %163 = arith.addf %160, %162 : vector<8x128xf32>
    %164 = vector.broadcast %98 : i32 to vector<8x128xi32>
    %165 = arith.cmpi slt, %164, %3 : vector<8x128xi32>
    %166 = vector.broadcast %99 : i32 to vector<8x128xi32>
    %167 = arith.cmpi slt, %166, %3 : vector<8x128xi32>
    %cst_39 = arith.constant 0.000000e+00 : f32
    %168 = vector.broadcast %cst_39 : f32 to vector<8x128xf32>
    %169 = arith.select %165, %135, %168 : vector<8x128xi1>, vector<8x128xf32>
    %170 = arith.index_cast %c1_i32 : i32 to index
    %c0_40 = arith.constant 0 : index
    %c0_41 = arith.constant 0 : index
    %171 = vector.load %arg6[%170, %c0_40, %c0_41] : memref<8x8x128xf32, #tpu.memory_space<vmem>>, vector<1x8x128xf32>
    %172 = vector.shape_cast %171 : vector<1x8x128xf32> to vector<8x128xf32>
    %173 = vector.shape_cast %169 : vector<8x128xf32> to vector<1x8x128xf32>
    tpu.vector_store %arg6[%170, %c0_40, %c0_41], %173 {strides = array<i32>} : memref<8x8x128xf32, #tpu.memory_space<vmem>>, vector<1x8x128xf32>,
    %cst_42 = arith.constant 0.000000e+00 : f32
    %174 = vector.broadcast %cst_42 : f32 to vector<8x128xf32>
    %175 = arith.select %167, %163, %174 : vector<8x128xi1>, vector<8x128xf32>
    %176 = arith.index_cast %100 : i32 to index
    %c0_43 = arith.constant 0 : index
    %c0_44 = arith.constant 0 : index
    %177 = vector.load %arg7[%176, %c0_43, %c0_44] : memref<8x8x128xf32, #tpu.memory_space<vmem>>, vector<1x8x128xf32>
    %178 = vector.shape_cast %177 : vector<1x8x128xf32> to vector<8x128xf32>
    %179 = vector.shape_cast %175 : vector<8x128xf32> to vector<1x8x128xf32>
    tpu.vector_store %arg7[%176, %c0_43, %c0_44], %179 {strides = array<i32>} : memref<8x8x128xf32, #tpu.memory_space<vmem>>, vector<1x8x128xf32>,
    %180 = vector.extract_strided_slice %96 {offsets = [0, 0], sizes = [8, 128], strides = [1, 1]} : vector<8x256xf32> to vector<8x128xf32>
    %181 = arith.select %165, %135, %180 : vector<8x128xi1>, vector<8x128xf32>
    %182 = vector.extract_strided_slice %96 {offsets = [0, 128], sizes = [8, 128], strides = [1, 1]} : vector<8x256xf32> to vector<8x128xf32>
    %183 = arith.select %167, %163, %182 : vector<8x128xi1>, vector<8x128xf32>
    %184 = tpu.concatenate %181, %183 in 1 : vector<8x128xf32>, vector<8x128xf32> -> vector<8x256xf32>
    %c2_i32 = arith.constant 2 : i32
    %c8_i32_45 = arith.constant 8 : i32
    %185 = arith.muli %arg0, %c8_i32_45 : i32
    %186 = arith.addi %185, %c2_i32 : i32
    %c15_i32_46 = arith.constant 15 : i32
    %187 = arith.subi %c15_i32_46, %186 : i32
    %c7_i32_47 = arith.constant 7 : i32
    %188 = arith.subi %c7_i32_47, %c2_i32 : i32
    %189 = arith.index_cast %c2_i32 : i32 to index
    %c0_48 = arith.constant 0 : index
    %c0_49 = arith.constant 0 : index
    %190 = vector.load %arg1[%189, %c0_48, %c0_49] : memref<8x8x384xf32, #tpu.memory_space<vmem>>, vector<1x8x384xf32>
    %191 = vector.shape_cast %190 : vector<1x8x384xf32> to vector<8x384xf32>
    %192 = arith.index_cast %188 : i32 to index
    %c0_50 = arith.constant 0 : index
    %c0_51 = arith.constant 0 : index
    %193 = vector.load %arg2[%192, %c0_50, %c0_51] : memref<8x8x384xf32, #tpu.memory_space<vmem>>, vector<1x8x384xf32>
    %194 = vector.shape_cast %193 : vector<1x8x384xf32> to vector<8x384xf32>
    %cst_52 = arith.constant dense<0.000000e+00> : vector<8x768xf32>
    %195 = tpu.matmul %184, %4, %cst_52 {dimension_numbers = #tpu.dot_dimension_numbers<[1], [0], [0], [1], [0, 0, 1, 1], [], []>} : vector<8x256xf32>, vector<256x768xf32>, vector<8x768xf32> -> vector<8x768xf32>
    %196 = vector.extract_strided_slice %191 {offsets = [0, 0], sizes = [8, 128], strides = [1, 1]} : vector<8x384xf32> to vector<8x128xf32>
    %197 = vector.extract_strided_slice %195 {offsets = [0, 0], sizes = [8, 128], strides = [1, 1]} : vector<8x768xf32> to vector<8x128xf32>
    %198 = arith.addf %196, %197 : vector<8x128xf32>
    %199 = arith.negf %198 : vector<8x128xf32>
    %200 = math.exp %199 : vector<8x128xf32>
    %cst_53 = arith.constant 1.000000e+00 : f32
    %201 = vector.broadcast %cst_53 : f32 to vector<8x128xf32>
    %202 = arith.addf %201, %200 : vector<8x128xf32>
    %203 = arith.divf %201, %202 : vector<8x128xf32>
    %204 = vector.extract_strided_slice %191 {offsets = [0, 128], sizes = [8, 128], strides = [1, 1]} : vector<8x384xf32> to vector<8x128xf32>
    %205 = vector.extract_strided_slice %195 {offsets = [0, 128], sizes = [8, 128], strides = [1, 1]} : vector<8x768xf32> to vector<8x128xf32>
    %206 = arith.addf %204, %205 : vector<8x128xf32>
    %207 = arith.negf %206 : vector<8x128xf32>
    %208 = math.exp %207 : vector<8x128xf32>
    %cst_54 = arith.constant 1.000000e+00 : f32
    %209 = vector.broadcast %cst_54 : f32 to vector<8x128xf32>
    %210 = arith.addf %209, %208 : vector<8x128xf32>
    %211 = arith.divf %209, %210 : vector<8x128xf32>
    %212 = vector.extract_strided_slice %191 {offsets = [0, 256], sizes = [8, 128], strides = [1, 1]} : vector<8x384xf32> to vector<8x128xf32>
    %213 = vector.extract_strided_slice %195 {offsets = [0, 256], sizes = [8, 128], strides = [1, 1]} : vector<8x768xf32> to vector<8x128xf32>
    %214 = arith.addf %213, %6 : vector<8x128xf32>
    %215 = arith.mulf %203, %214 : vector<8x128xf32>
    %216 = arith.addf %212, %215 : vector<8x128xf32>
    %217 = math.tanh %216 : vector<8x128xf32>
    %cst_55 = arith.constant 1.000000e+00 : f32
    %218 = vector.broadcast %cst_55 : f32 to vector<8x128xf32>
    %219 = arith.subf %218, %211 : vector<8x128xf32>
    %220 = arith.mulf %219, %217 : vector<8x128xf32>
    %221 = vector.extract_strided_slice %184 {offsets = [0, 0], sizes = [8, 128], strides = [1, 1]} : vector<8x256xf32> to vector<8x128xf32>
    %222 = arith.mulf %211, %221 : vector<8x128xf32>
    %223 = arith.addf %220, %222 : vector<8x128xf32>
    %224 = vector.extract_strided_slice %194 {offsets = [0, 0], sizes = [8, 128], strides = [1, 1]} : vector<8x384xf32> to vector<8x128xf32>
    %225 = vector.extract_strided_slice %195 {offsets = [0, 384], sizes = [8, 128], strides = [1, 1]} : vector<8x768xf32> to vector<8x128xf32>
    %226 = arith.addf %224, %225 : vector<8x128xf32>
    %227 = arith.negf %226 : vector<8x128xf32>
    %228 = math.exp %227 : vector<8x128xf32>
    %cst_56 = arith.constant 1.000000e+00 : f32
    %229 = vector.broadcast %cst_56 : f32 to vector<8x128xf32>
    %230 = arith.addf %229, %228 : vector<8x128xf32>
    %231 = arith.divf %229, %230 : vector<8x128xf32>
    %232 = vector.extract_strided_slice %194 {offsets = [0, 128], sizes = [8, 128], strides = [1, 1]} : vector<8x384xf32> to vector<8x128xf32>
    %233 = vector.extract_strided_slice %195 {offsets = [0, 512], sizes = [8, 128], strides = [1, 1]} : vector<8x768xf32> to vector<8x128xf32>
    %234 = arith.addf %232, %233 : vector<8x128xf32>
    %235 = arith.negf %234 : vector<8x128xf32>
    %236 = math.exp %235 : vector<8x128xf32>
    %cst_57 = arith.constant 1.000000e+00 : f32
    %237 = vector.broadcast %cst_57 : f32 to vector<8x128xf32>
    %238 = arith.addf %237, %236 : vector<8x128xf32>
    %239 = arith.divf %237, %238 : vector<8x128xf32>
    %240 = vector.extract_strided_slice %194 {offsets = [0, 256], sizes = [8, 128], strides = [1, 1]} : vector<8x384xf32> to vector<8x128xf32>
    %241 = vector.extract_strided_slice %195 {offsets = [0, 640], sizes = [8, 128], strides = [1, 1]} : vector<8x768xf32> to vector<8x128xf32>
    %242 = arith.addf %241, %7 : vector<8x128xf32>
    %243 = arith.mulf %231, %242 : vector<8x128xf32>
    %244 = arith.addf %240, %243 : vector<8x128xf32>
    %245 = math.tanh %244 : vector<8x128xf32>
    %cst_58 = arith.constant 1.000000e+00 : f32
    %246 = vector.broadcast %cst_58 : f32 to vector<8x128xf32>
    %247 = arith.subf %246, %239 : vector<8x128xf32>
    %248 = arith.mulf %247, %245 : vector<8x128xf32>
    %249 = vector.extract_strided_slice %184 {offsets = [0, 128], sizes = [8, 128], strides = [1, 1]} : vector<8x256xf32> to vector<8x128xf32>
    %250 = arith.mulf %239, %249 : vector<8x128xf32>
    %251 = arith.addf %248, %250 : vector<8x128xf32>
    %252 = vector.broadcast %186 : i32 to vector<8x128xi32>
    %253 = arith.cmpi slt, %252, %3 : vector<8x128xi32>
    %254 = vector.broadcast %187 : i32 to vector<8x128xi32>
    %255 = arith.cmpi slt, %254, %3 : vector<8x128xi32>
    %cst_59 = arith.constant 0.000000e+00 : f32
    %256 = vector.broadcast %cst_59 : f32 to vector<8x128xf32>
    %257 = arith.select %253, %223, %256 : vector<8x128xi1>, vector<8x128xf32>
    %258 = arith.index_cast %c2_i32 : i32 to index
    %c0_60 = arith.constant 0 : index
    %c0_61 = arith.constant 0 : index
    %259 = vector.load %arg6[%258, %c0_60, %c0_61] : memref<8x8x128xf32, #tpu.memory_space<vmem>>, vector<1x8x128xf32>
    %260 = vector.shape_cast %259 : vector<1x8x128xf32> to vector<8x128xf32>
    %261 = vector.shape_cast %257 : vector<8x128xf32> to vector<1x8x128xf32>
    tpu.vector_store %arg6[%258, %c0_60, %c0_61], %261 {strides = array<i32>} : memref<8x8x128xf32, #tpu.memory_space<vmem>>, vector<1x8x128xf32>,
    %cst_62 = arith.constant 0.000000e+00 : f32
    %262 = vector.broadcast %cst_62 : f32 to vector<8x128xf32>
    %263 = arith.select %255, %251, %262 : vector<8x128xi1>, vector<8x128xf32>
    %264 = arith.index_cast %188 : i32 to index
    %c0_63 = arith.constant 0 : index
    %c0_64 = arith.constant 0 : index
    %265 = vector.load %arg7[%264, %c0_63, %c0_64] : memref<8x8x128xf32, #tpu.memory_space<vmem>>, vector<1x8x128xf32>
    %266 = vector.shape_cast %265 : vector<1x8x128xf32> to vector<8x128xf32>
    %267 = vector.shape_cast %263 : vector<8x128xf32> to vector<1x8x128xf32>
    tpu.vector_store %arg7[%264, %c0_63, %c0_64], %267 {strides = array<i32>} : memref<8x8x128xf32, #tpu.memory_space<vmem>>, vector<1x8x128xf32>,
    %268 = vector.extract_strided_slice %184 {offsets = [0, 0], sizes = [8, 128], strides = [1, 1]} : vector<8x256xf32> to vector<8x128xf32>
    %269 = arith.select %253, %223, %268 : vector<8x128xi1>, vector<8x128xf32>
    %270 = vector.extract_strided_slice %184 {offsets = [0, 128], sizes = [8, 128], strides = [1, 1]} : vector<8x256xf32> to vector<8x128xf32>
    %271 = arith.select %255, %251, %270 : vector<8x128xi1>, vector<8x128xf32>
    %272 = tpu.concatenate %269, %271 in 1 : vector<8x128xf32>, vector<8x128xf32> -> vector<8x256xf32>
    %c3_i32 = arith.constant 3 : i32
    %c8_i32_65 = arith.constant 8 : i32
    %273 = arith.muli %arg0, %c8_i32_65 : i32
    %274 = arith.addi %273, %c3_i32 : i32
    %c15_i32_66 = arith.constant 15 : i32
    %275 = arith.subi %c15_i32_66, %274 : i32
    %c7_i32_67 = arith.constant 7 : i32
    %276 = arith.subi %c7_i32_67, %c3_i32 : i32
    %277 = arith.index_cast %c3_i32 : i32 to index
    %c0_68 = arith.constant 0 : index
    %c0_69 = arith.constant 0 : index
    %278 = vector.load %arg1[%277, %c0_68, %c0_69] : memref<8x8x384xf32, #tpu.memory_space<vmem>>, vector<1x8x384xf32>
    %279 = vector.shape_cast %278 : vector<1x8x384xf32> to vector<8x384xf32>
    %280 = arith.index_cast %276 : i32 to index
    %c0_70 = arith.constant 0 : index
    %c0_71 = arith.constant 0 : index
    %281 = vector.load %arg2[%280, %c0_70, %c0_71] : memref<8x8x384xf32, #tpu.memory_space<vmem>>, vector<1x8x384xf32>
    %282 = vector.shape_cast %281 : vector<1x8x384xf32> to vector<8x384xf32>
    %cst_72 = arith.constant dense<0.000000e+00> : vector<8x768xf32>
    %283 = tpu.matmul %272, %4, %cst_72 {dimension_numbers = #tpu.dot_dimension_numbers<[1], [0], [0], [1], [0, 0, 1, 1], [], []>} : vector<8x256xf32>, vector<256x768xf32>, vector<8x768xf32> -> vector<8x768xf32>
    %284 = vector.extract_strided_slice %279 {offsets = [0, 0], sizes = [8, 128], strides = [1, 1]} : vector<8x384xf32> to vector<8x128xf32>
    %285 = vector.extract_strided_slice %283 {offsets = [0, 0], sizes = [8, 128], strides = [1, 1]} : vector<8x768xf32> to vector<8x128xf32>
    %286 = arith.addf %284, %285 : vector<8x128xf32>
    %287 = arith.negf %286 : vector<8x128xf32>
    %288 = math.exp %287 : vector<8x128xf32>
    %cst_73 = arith.constant 1.000000e+00 : f32
    %289 = vector.broadcast %cst_73 : f32 to vector<8x128xf32>
    %290 = arith.addf %289, %288 : vector<8x128xf32>
    %291 = arith.divf %289, %290 : vector<8x128xf32>
    %292 = vector.extract_strided_slice %279 {offsets = [0, 128], sizes = [8, 128], strides = [1, 1]} : vector<8x384xf32> to vector<8x128xf32>
    %293 = vector.extract_strided_slice %283 {offsets = [0, 128], sizes = [8, 128], strides = [1, 1]} : vector<8x768xf32> to vector<8x128xf32>
    %294 = arith.addf %292, %293 : vector<8x128xf32>
    %295 = arith.negf %294 : vector<8x128xf32>
    %296 = math.exp %295 : vector<8x128xf32>
    %cst_74 = arith.constant 1.000000e+00 : f32
    %297 = vector.broadcast %cst_74 : f32 to vector<8x128xf32>
    %298 = arith.addf %297, %296 : vector<8x128xf32>
    %299 = arith.divf %297, %298 : vector<8x128xf32>
    %300 = vector.extract_strided_slice %279 {offsets = [0, 256], sizes = [8, 128], strides = [1, 1]} : vector<8x384xf32> to vector<8x128xf32>
    %301 = vector.extract_strided_slice %283 {offsets = [0, 256], sizes = [8, 128], strides = [1, 1]} : vector<8x768xf32> to vector<8x128xf32>
    %302 = arith.addf %301, %6 : vector<8x128xf32>
    %303 = arith.mulf %291, %302 : vector<8x128xf32>
    %304 = arith.addf %300, %303 : vector<8x128xf32>
    %305 = math.tanh %304 : vector<8x128xf32>
    %cst_75 = arith.constant 1.000000e+00 : f32
    %306 = vector.broadcast %cst_75 : f32 to vector<8x128xf32>
    %307 = arith.subf %306, %299 : vector<8x128xf32>
    %308 = arith.mulf %307, %305 : vector<8x128xf32>
    %309 = vector.extract_strided_slice %272 {offsets = [0, 0], sizes = [8, 128], strides = [1, 1]} : vector<8x256xf32> to vector<8x128xf32>
    %310 = arith.mulf %299, %309 : vector<8x128xf32>
    %311 = arith.addf %308, %310 : vector<8x128xf32>
    %312 = vector.extract_strided_slice %282 {offsets = [0, 0], sizes = [8, 128], strides = [1, 1]} : vector<8x384xf32> to vector<8x128xf32>
    %313 = vector.extract_strided_slice %283 {offsets = [0, 384], sizes = [8, 128], strides = [1, 1]} : vector<8x768xf32> to vector<8x128xf32>
    %314 = arith.addf %312, %313 : vector<8x128xf32>
    %315 = arith.negf %314 : vector<8x128xf32>
    %316 = math.exp %315 : vector<8x128xf32>
    %cst_76 = arith.constant 1.000000e+00 : f32
    %317 = vector.broadcast %cst_76 : f32 to vector<8x128xf32>
    %318 = arith.addf %317, %316 : vector<8x128xf32>
    %319 = arith.divf %317, %318 : vector<8x128xf32>
    %320 = vector.extract_strided_slice %282 {offsets = [0, 128], sizes = [8, 128], strides = [1, 1]} : vector<8x384xf32> to vector<8x128xf32>
    %321 = vector.extract_strided_slice %283 {offsets = [0, 512], sizes = [8, 128], strides = [1, 1]} : vector<8x768xf32> to vector<8x128xf32>
    %322 = arith.addf %320, %321 : vector<8x128xf32>
    %323 = arith.negf %322 : vector<8x128xf32>
    %324 = math.exp %323 : vector<8x128xf32>
    %cst_77 = arith.constant 1.000000e+00 : f32
    %325 = vector.broadcast %cst_77 : f32 to vector<8x128xf32>
    %326 = arith.addf %325, %324 : vector<8x128xf32>
    %327 = arith.divf %325, %326 : vector<8x128xf32>
    %328 = vector.extract_strided_slice %282 {offsets = [0, 256], sizes = [8, 128], strides = [1, 1]} : vector<8x384xf32> to vector<8x128xf32>
    %329 = vector.extract_strided_slice %283 {offsets = [0, 640], sizes = [8, 128], strides = [1, 1]} : vector<8x768xf32> to vector<8x128xf32>
    %330 = arith.addf %329, %7 : vector<8x128xf32>
    %331 = arith.mulf %319, %330 : vector<8x128xf32>
    %332 = arith.addf %328, %331 : vector<8x128xf32>
    %333 = math.tanh %332 : vector<8x128xf32>
    %cst_78 = arith.constant 1.000000e+00 : f32
    %334 = vector.broadcast %cst_78 : f32 to vector<8x128xf32>
    %335 = arith.subf %334, %327 : vector<8x128xf32>
    %336 = arith.mulf %335, %333 : vector<8x128xf32>
    %337 = vector.extract_strided_slice %272 {offsets = [0, 128], sizes = [8, 128], strides = [1, 1]} : vector<8x256xf32> to vector<8x128xf32>
    %338 = arith.mulf %327, %337 : vector<8x128xf32>
    %339 = arith.addf %336, %338 : vector<8x128xf32>
    %340 = vector.broadcast %274 : i32 to vector<8x128xi32>
    %341 = arith.cmpi slt, %340, %3 : vector<8x128xi32>
    %342 = vector.broadcast %275 : i32 to vector<8x128xi32>
    %343 = arith.cmpi slt, %342, %3 : vector<8x128xi32>
    %cst_79 = arith.constant 0.000000e+00 : f32
    %344 = vector.broadcast %cst_79 : f32 to vector<8x128xf32>
    %345 = arith.select %341, %311, %344 : vector<8x128xi1>, vector<8x128xf32>
    %346 = arith.index_cast %c3_i32 : i32 to index
    %c0_80 = arith.constant 0 : index
    %c0_81 = arith.constant 0 : index
    %347 = vector.load %arg6[%346, %c0_80, %c0_81] : memref<8x8x128xf32, #tpu.memory_space<vmem>>, vector<1x8x128xf32>
    %348 = vector.shape_cast %347 : vector<1x8x128xf32> to vector<8x128xf32>
    %349 = vector.shape_cast %345 : vector<8x128xf32> to vector<1x8x128xf32>
    tpu.vector_store %arg6[%346, %c0_80, %c0_81], %349 {strides = array<i32>} : memref<8x8x128xf32, #tpu.memory_space<vmem>>, vector<1x8x128xf32>,
    %cst_82 = arith.constant 0.000000e+00 : f32
    %350 = vector.broadcast %cst_82 : f32 to vector<8x128xf32>
    %351 = arith.select %343, %339, %350 : vector<8x128xi1>, vector<8x128xf32>
    %352 = arith.index_cast %276 : i32 to index
    %c0_83 = arith.constant 0 : index
    %c0_84 = arith.constant 0 : index
    %353 = vector.load %arg7[%352, %c0_83, %c0_84] : memref<8x8x128xf32, #tpu.memory_space<vmem>>, vector<1x8x128xf32>
    %354 = vector.shape_cast %353 : vector<1x8x128xf32> to vector<8x128xf32>
    %355 = vector.shape_cast %351 : vector<8x128xf32> to vector<1x8x128xf32>
    tpu.vector_store %arg7[%352, %c0_83, %c0_84], %355 {strides = array<i32>} : memref<8x8x128xf32, #tpu.memory_space<vmem>>, vector<1x8x128xf32>,
    %356 = vector.extract_strided_slice %272 {offsets = [0, 0], sizes = [8, 128], strides = [1, 1]} : vector<8x256xf32> to vector<8x128xf32>
    %357 = arith.select %341, %311, %356 : vector<8x128xi1>, vector<8x128xf32>
    %358 = vector.extract_strided_slice %272 {offsets = [0, 128], sizes = [8, 128], strides = [1, 1]} : vector<8x256xf32> to vector<8x128xf32>
    %359 = arith.select %343, %339, %358 : vector<8x128xi1>, vector<8x128xf32>
    %360 = tpu.concatenate %357, %359 in 1 : vector<8x128xf32>, vector<8x128xf32> -> vector<8x256xf32>
    %c4_i32 = arith.constant 4 : i32
    %c8_i32_85 = arith.constant 8 : i32
    %361 = arith.muli %arg0, %c8_i32_85 : i32
    %362 = arith.addi %361, %c4_i32 : i32
    %c15_i32_86 = arith.constant 15 : i32
    %363 = arith.subi %c15_i32_86, %362 : i32
    %c7_i32_87 = arith.constant 7 : i32
    %364 = arith.subi %c7_i32_87, %c4_i32 : i32
    %365 = arith.index_cast %c4_i32 : i32 to index
    %c0_88 = arith.constant 0 : index
    %c0_89 = arith.constant 0 : index
    %366 = vector.load %arg1[%365, %c0_88, %c0_89] : memref<8x8x384xf32, #tpu.memory_space<vmem>>, vector<1x8x384xf32>
    %367 = vector.shape_cast %366 : vector<1x8x384xf32> to vector<8x384xf32>
    %368 = arith.index_cast %364 : i32 to index
    %c0_90 = arith.constant 0 : index
    %c0_91 = arith.constant 0 : index
    %369 = vector.load %arg2[%368, %c0_90, %c0_91] : memref<8x8x384xf32, #tpu.memory_space<vmem>>, vector<1x8x384xf32>
    %370 = vector.shape_cast %369 : vector<1x8x384xf32> to vector<8x384xf32>
    %cst_92 = arith.constant dense<0.000000e+00> : vector<8x768xf32>
    %371 = tpu.matmul %360, %4, %cst_92 {dimension_numbers = #tpu.dot_dimension_numbers<[1], [0], [0], [1], [0, 0, 1, 1], [], []>} : vector<8x256xf32>, vector<256x768xf32>, vector<8x768xf32> -> vector<8x768xf32>
    %372 = vector.extract_strided_slice %367 {offsets = [0, 0], sizes = [8, 128], strides = [1, 1]} : vector<8x384xf32> to vector<8x128xf32>
    %373 = vector.extract_strided_slice %371 {offsets = [0, 0], sizes = [8, 128], strides = [1, 1]} : vector<8x768xf32> to vector<8x128xf32>
    %374 = arith.addf %372, %373 : vector<8x128xf32>
    %375 = arith.negf %374 : vector<8x128xf32>
    %376 = math.exp %375 : vector<8x128xf32>
    %cst_93 = arith.constant 1.000000e+00 : f32
    %377 = vector.broadcast %cst_93 : f32 to vector<8x128xf32>
    %378 = arith.addf %377, %376 : vector<8x128xf32>
    %379 = arith.divf %377, %378 : vector<8x128xf32>
    %380 = vector.extract_strided_slice %367 {offsets = [0, 128], sizes = [8, 128], strides = [1, 1]} : vector<8x384xf32> to vector<8x128xf32>
    %381 = vector.extract_strided_slice %371 {offsets = [0, 128], sizes = [8, 128], strides = [1, 1]} : vector<8x768xf32> to vector<8x128xf32>
    %382 = arith.addf %380, %381 : vector<8x128xf32>
    %383 = arith.negf %382 : vector<8x128xf32>
    %384 = math.exp %383 : vector<8x128xf32>
    %cst_94 = arith.constant 1.000000e+00 : f32
    %385 = vector.broadcast %cst_94 : f32 to vector<8x128xf32>
    %386 = arith.addf %385, %384 : vector<8x128xf32>
    %387 = arith.divf %385, %386 : vector<8x128xf32>
    %388 = vector.extract_strided_slice %367 {offsets = [0, 256], sizes = [8, 128], strides = [1, 1]} : vector<8x384xf32> to vector<8x128xf32>
    %389 = vector.extract_strided_slice %371 {offsets = [0, 256], sizes = [8, 128], strides = [1, 1]} : vector<8x768xf32> to vector<8x128xf32>
    %390 = arith.addf %389, %6 : vector<8x128xf32>
    %391 = arith.mulf %379, %390 : vector<8x128xf32>
    %392 = arith.addf %388, %391 : vector<8x128xf32>
    %393 = math.tanh %392 : vector<8x128xf32>
    %cst_95 = arith.constant 1.000000e+00 : f32
    %394 = vector.broadcast %cst_95 : f32 to vector<8x128xf32>
    %395 = arith.subf %394, %387 : vector<8x128xf32>
    %396 = arith.mulf %395, %393 : vector<8x128xf32>
    %397 = vector.extract_strided_slice %360 {offsets = [0, 0], sizes = [8, 128], strides = [1, 1]} : vector<8x256xf32> to vector<8x128xf32>
    %398 = arith.mulf %387, %397 : vector<8x128xf32>
    %399 = arith.addf %396, %398 : vector<8x128xf32>
    %400 = vector.extract_strided_slice %370 {offsets = [0, 0], sizes = [8, 128], strides = [1, 1]} : vector<8x384xf32> to vector<8x128xf32>
    %401 = vector.extract_strided_slice %371 {offsets = [0, 384], sizes = [8, 128], strides = [1, 1]} : vector<8x768xf32> to vector<8x128xf32>
    %402 = arith.addf %400, %401 : vector<8x128xf32>
    %403 = arith.negf %402 : vector<8x128xf32>
    %404 = math.exp %403 : vector<8x128xf32>
    %cst_96 = arith.constant 1.000000e+00 : f32
    %405 = vector.broadcast %cst_96 : f32 to vector<8x128xf32>
    %406 = arith.addf %405, %404 : vector<8x128xf32>
    %407 = arith.divf %405, %406 : vector<8x128xf32>
    %408 = vector.extract_strided_slice %370 {offsets = [0, 128], sizes = [8, 128], strides = [1, 1]} : vector<8x384xf32> to vector<8x128xf32>
    %409 = vector.extract_strided_slice %371 {offsets = [0, 512], sizes = [8, 128], strides = [1, 1]} : vector<8x768xf32> to vector<8x128xf32>
    %410 = arith.addf %408, %409 : vector<8x128xf32>
    %411 = arith.negf %410 : vector<8x128xf32>
    %412 = math.exp %411 : vector<8x128xf32>
    %cst_97 = arith.constant 1.000000e+00 : f32
    %413 = vector.broadcast %cst_97 : f32 to vector<8x128xf32>
    %414 = arith.addf %413, %412 : vector<8x128xf32>
    %415 = arith.divf %413, %414 : vector<8x128xf32>
    %416 = vector.extract_strided_slice %370 {offsets = [0, 256], sizes = [8, 128], strides = [1, 1]} : vector<8x384xf32> to vector<8x128xf32>
    %417 = vector.extract_strided_slice %371 {offsets = [0, 640], sizes = [8, 128], strides = [1, 1]} : vector<8x768xf32> to vector<8x128xf32>
    %418 = arith.addf %417, %7 : vector<8x128xf32>
    %419 = arith.mulf %407, %418 : vector<8x128xf32>
    %420 = arith.addf %416, %419 : vector<8x128xf32>
    %421 = math.tanh %420 : vector<8x128xf32>
    %cst_98 = arith.constant 1.000000e+00 : f32
    %422 = vector.broadcast %cst_98 : f32 to vector<8x128xf32>
    %423 = arith.subf %422, %415 : vector<8x128xf32>
    %424 = arith.mulf %423, %421 : vector<8x128xf32>
    %425 = vector.extract_strided_slice %360 {offsets = [0, 128], sizes = [8, 128], strides = [1, 1]} : vector<8x256xf32> to vector<8x128xf32>
    %426 = arith.mulf %415, %425 : vector<8x128xf32>
    %427 = arith.addf %424, %426 : vector<8x128xf32>
    %428 = vector.broadcast %362 : i32 to vector<8x128xi32>
    %429 = arith.cmpi slt, %428, %3 : vector<8x128xi32>
    %430 = vector.broadcast %363 : i32 to vector<8x128xi32>
    %431 = arith.cmpi slt, %430, %3 : vector<8x128xi32>
    %cst_99 = arith.constant 0.000000e+00 : f32
    %432 = vector.broadcast %cst_99 : f32 to vector<8x128xf32>
    %433 = arith.select %429, %399, %432 : vector<8x128xi1>, vector<8x128xf32>
    %434 = arith.index_cast %c4_i32 : i32 to index
    %c0_100 = arith.constant 0 : index
    %c0_101 = arith.constant 0 : index
    %435 = vector.load %arg6[%434, %c0_100, %c0_101] : memref<8x8x128xf32, #tpu.memory_space<vmem>>, vector<1x8x128xf32>
    %436 = vector.shape_cast %435 : vector<1x8x128xf32> to vector<8x128xf32>
    %437 = vector.shape_cast %433 : vector<8x128xf32> to vector<1x8x128xf32>
    tpu.vector_store %arg6[%434, %c0_100, %c0_101], %437 {strides = array<i32>} : memref<8x8x128xf32, #tpu.memory_space<vmem>>, vector<1x8x128xf32>,
    %cst_102 = arith.constant 0.000000e+00 : f32
    %438 = vector.broadcast %cst_102 : f32 to vector<8x128xf32>
    %439 = arith.select %431, %427, %438 : vector<8x128xi1>, vector<8x128xf32>
    %440 = arith.index_cast %364 : i32 to index
    %c0_103 = arith.constant 0 : index
    %c0_104 = arith.constant 0 : index
    %441 = vector.load %arg7[%440, %c0_103, %c0_104] : memref<8x8x128xf32, #tpu.memory_space<vmem>>, vector<1x8x128xf32>
    %442 = vector.shape_cast %441 : vector<1x8x128xf32> to vector<8x128xf32>
    %443 = vector.shape_cast %439 : vector<8x128xf32> to vector<1x8x128xf32>
    tpu.vector_store %arg7[%440, %c0_103, %c0_104], %443 {strides = array<i32>} : memref<8x8x128xf32, #tpu.memory_space<vmem>>, vector<1x8x128xf32>,
    %444 = vector.extract_strided_slice %360 {offsets = [0, 0], sizes = [8, 128], strides = [1, 1]} : vector<8x256xf32> to vector<8x128xf32>
    %445 = arith.select %429, %399, %444 : vector<8x128xi1>, vector<8x128xf32>
    %446 = vector.extract_strided_slice %360 {offsets = [0, 128], sizes = [8, 128], strides = [1, 1]} : vector<8x256xf32> to vector<8x128xf32>
    %447 = arith.select %431, %427, %446 : vector<8x128xi1>, vector<8x128xf32>
    %448 = tpu.concatenate %445, %447 in 1 : vector<8x128xf32>, vector<8x128xf32> -> vector<8x256xf32>
    %c5_i32 = arith.constant 5 : i32
    %c8_i32_105 = arith.constant 8 : i32
    %449 = arith.muli %arg0, %c8_i32_105 : i32
    %450 = arith.addi %449, %c5_i32 : i32
    %c15_i32_106 = arith.constant 15 : i32
    %451 = arith.subi %c15_i32_106, %450 : i32
    %c7_i32_107 = arith.constant 7 : i32
    %452 = arith.subi %c7_i32_107, %c5_i32 : i32
    %453 = arith.index_cast %c5_i32 : i32 to index
    %c0_108 = arith.constant 0 : index
    %c0_109 = arith.constant 0 : index
    %454 = vector.load %arg1[%453, %c0_108, %c0_109] : memref<8x8x384xf32, #tpu.memory_space<vmem>>, vector<1x8x384xf32>
    %455 = vector.shape_cast %454 : vector<1x8x384xf32> to vector<8x384xf32>
    %456 = arith.index_cast %452 : i32 to index
    %c0_110 = arith.constant 0 : index
    %c0_111 = arith.constant 0 : index
    %457 = vector.load %arg2[%456, %c0_110, %c0_111] : memref<8x8x384xf32, #tpu.memory_space<vmem>>, vector<1x8x384xf32>
    %458 = vector.shape_cast %457 : vector<1x8x384xf32> to vector<8x384xf32>
    %cst_112 = arith.constant dense<0.000000e+00> : vector<8x768xf32>
    %459 = tpu.matmul %448, %4, %cst_112 {dimension_numbers = #tpu.dot_dimension_numbers<[1], [0], [0], [1], [0, 0, 1, 1], [], []>} : vector<8x256xf32>, vector<256x768xf32>, vector<8x768xf32> -> vector<8x768xf32>
    %460 = vector.extract_strided_slice %455 {offsets = [0, 0], sizes = [8, 128], strides = [1, 1]} : vector<8x384xf32> to vector<8x128xf32>
    %461 = vector.extract_strided_slice %459 {offsets = [0, 0], sizes = [8, 128], strides = [1, 1]} : vector<8x768xf32> to vector<8x128xf32>
    %462 = arith.addf %460, %461 : vector<8x128xf32>
    %463 = arith.negf %462 : vector<8x128xf32>
    %464 = math.exp %463 : vector<8x128xf32>
    %cst_113 = arith.constant 1.000000e+00 : f32
    %465 = vector.broadcast %cst_113 : f32 to vector<8x128xf32>
    %466 = arith.addf %465, %464 : vector<8x128xf32>
    %467 = arith.divf %465, %466 : vector<8x128xf32>
    %468 = vector.extract_strided_slice %455 {offsets = [0, 128], sizes = [8, 128], strides = [1, 1]} : vector<8x384xf32> to vector<8x128xf32>
    %469 = vector.extract_strided_slice %459 {offsets = [0, 128], sizes = [8, 128], strides = [1, 1]} : vector<8x768xf32> to vector<8x128xf32>
    %470 = arith.addf %468, %469 : vector<8x128xf32>
    %471 = arith.negf %470 : vector<8x128xf32>
    %472 = math.exp %471 : vector<8x128xf32>
    %cst_114 = arith.constant 1.000000e+00 : f32
    %473 = vector.broadcast %cst_114 : f32 to vector<8x128xf32>
    %474 = arith.addf %473, %472 : vector<8x128xf32>
    %475 = arith.divf %473, %474 : vector<8x128xf32>
    %476 = vector.extract_strided_slice %455 {offsets = [0, 256], sizes = [8, 128], strides = [1, 1]} : vector<8x384xf32> to vector<8x128xf32>
    %477 = vector.extract_strided_slice %459 {offsets = [0, 256], sizes = [8, 128], strides = [1, 1]} : vector<8x768xf32> to vector<8x128xf32>
    %478 = arith.addf %477, %6 : vector<8x128xf32>
    %479 = arith.mulf %467, %478 : vector<8x128xf32>
    %480 = arith.addf %476, %479 : vector<8x128xf32>
    %481 = math.tanh %480 : vector<8x128xf32>
    %cst_115 = arith.constant 1.000000e+00 : f32
    %482 = vector.broadcast %cst_115 : f32 to vector<8x128xf32>
    %483 = arith.subf %482, %475 : vector<8x128xf32>
    %484 = arith.mulf %483, %481 : vector<8x128xf32>
    %485 = vector.extract_strided_slice %448 {offsets = [0, 0], sizes = [8, 128], strides = [1, 1]} : vector<8x256xf32> to vector<8x128xf32>
    %486 = arith.mulf %475, %485 : vector<8x128xf32>
    %487 = arith.addf %484, %486 : vector<8x128xf32>
    %488 = vector.extract_strided_slice %458 {offsets = [0, 0], sizes = [8, 128], strides = [1, 1]} : vector<8x384xf32> to vector<8x128xf32>
    %489 = vector.extract_strided_slice %459 {offsets = [0, 384], sizes = [8, 128], strides = [1, 1]} : vector<8x768xf32> to vector<8x128xf32>
    %490 = arith.addf %488, %489 : vector<8x128xf32>
    %491 = arith.negf %490 : vector<8x128xf32>
    %492 = math.exp %491 : vector<8x128xf32>
    %cst_116 = arith.constant 1.000000e+00 : f32
    %493 = vector.broadcast %cst_116 : f32 to vector<8x128xf32>
    %494 = arith.addf %493, %492 : vector<8x128xf32>
    %495 = arith.divf %493, %494 : vector<8x128xf32>
    %496 = vector.extract_strided_slice %458 {offsets = [0, 128], sizes = [8, 128], strides = [1, 1]} : vector<8x384xf32> to vector<8x128xf32>
    %497 = vector.extract_strided_slice %459 {offsets = [0, 512], sizes = [8, 128], strides = [1, 1]} : vector<8x768xf32> to vector<8x128xf32>
    %498 = arith.addf %496, %497 : vector<8x128xf32>
    %499 = arith.negf %498 : vector<8x128xf32>
    %500 = math.exp %499 : vector<8x128xf32>
    %cst_117 = arith.constant 1.000000e+00 : f32
    %501 = vector.broadcast %cst_117 : f32 to vector<8x128xf32>
    %502 = arith.addf %501, %500 : vector<8x128xf32>
    %503 = arith.divf %501, %502 : vector<8x128xf32>
    %504 = vector.extract_strided_slice %458 {offsets = [0, 256], sizes = [8, 128], strides = [1, 1]} : vector<8x384xf32> to vector<8x128xf32>
    %505 = vector.extract_strided_slice %459 {offsets = [0, 640], sizes = [8, 128], strides = [1, 1]} : vector<8x768xf32> to vector<8x128xf32>
    %506 = arith.addf %505, %7 : vector<8x128xf32>
    %507 = arith.mulf %495, %506 : vector<8x128xf32>
    %508 = arith.addf %504, %507 : vector<8x128xf32>
    %509 = math.tanh %508 : vector<8x128xf32>
    %cst_118 = arith.constant 1.000000e+00 : f32
    %510 = vector.broadcast %cst_118 : f32 to vector<8x128xf32>
    %511 = arith.subf %510, %503 : vector<8x128xf32>
    %512 = arith.mulf %511, %509 : vector<8x128xf32>
    %513 = vector.extract_strided_slice %448 {offsets = [0, 128], sizes = [8, 128], strides = [1, 1]} : vector<8x256xf32> to vector<8x128xf32>
    %514 = arith.mulf %503, %513 : vector<8x128xf32>
    %515 = arith.addf %512, %514 : vector<8x128xf32>
    %516 = vector.broadcast %450 : i32 to vector<8x128xi32>
    %517 = arith.cmpi slt, %516, %3 : vector<8x128xi32>
    %518 = vector.broadcast %451 : i32 to vector<8x128xi32>
    %519 = arith.cmpi slt, %518, %3 : vector<8x128xi32>
    %cst_119 = arith.constant 0.000000e+00 : f32
    %520 = vector.broadcast %cst_119 : f32 to vector<8x128xf32>
    %521 = arith.select %517, %487, %520 : vector<8x128xi1>, vector<8x128xf32>
    %522 = arith.index_cast %c5_i32 : i32 to index
    %c0_120 = arith.constant 0 : index
    %c0_121 = arith.constant 0 : index
    %523 = vector.load %arg6[%522, %c0_120, %c0_121] : memref<8x8x128xf32, #tpu.memory_space<vmem>>, vector<1x8x128xf32>
    %524 = vector.shape_cast %523 : vector<1x8x128xf32> to vector<8x128xf32>
    %525 = vector.shape_cast %521 : vector<8x128xf32> to vector<1x8x128xf32>
    tpu.vector_store %arg6[%522, %c0_120, %c0_121], %525 {strides = array<i32>} : memref<8x8x128xf32, #tpu.memory_space<vmem>>, vector<1x8x128xf32>,
    %cst_122 = arith.constant 0.000000e+00 : f32
    %526 = vector.broadcast %cst_122 : f32 to vector<8x128xf32>
    %527 = arith.select %519, %515, %526 : vector<8x128xi1>, vector<8x128xf32>
    %528 = arith.index_cast %452 : i32 to index
    %c0_123 = arith.constant 0 : index
    %c0_124 = arith.constant 0 : index
    %529 = vector.load %arg7[%528, %c0_123, %c0_124] : memref<8x8x128xf32, #tpu.memory_space<vmem>>, vector<1x8x128xf32>
    %530 = vector.shape_cast %529 : vector<1x8x128xf32> to vector<8x128xf32>
    %531 = vector.shape_cast %527 : vector<8x128xf32> to vector<1x8x128xf32>
    tpu.vector_store %arg7[%528, %c0_123, %c0_124], %531 {strides = array<i32>} : memref<8x8x128xf32, #tpu.memory_space<vmem>>, vector<1x8x128xf32>,
    %532 = vector.extract_strided_slice %448 {offsets = [0, 0], sizes = [8, 128], strides = [1, 1]} : vector<8x256xf32> to vector<8x128xf32>
    %533 = arith.select %517, %487, %532 : vector<8x128xi1>, vector<8x128xf32>
    %534 = vector.extract_strided_slice %448 {offsets = [0, 128], sizes = [8, 128], strides = [1, 1]} : vector<8x256xf32> to vector<8x128xf32>
    %535 = arith.select %519, %515, %534 : vector<8x128xi1>, vector<8x128xf32>
    %536 = tpu.concatenate %533, %535 in 1 : vector<8x128xf32>, vector<8x128xf32> -> vector<8x256xf32>
    %c6_i32 = arith.constant 6 : i32
    %c8_i32_125 = arith.constant 8 : i32
    %537 = arith.muli %arg0, %c8_i32_125 : i32
    %538 = arith.addi %537, %c6_i32 : i32
    %c15_i32_126 = arith.constant 15 : i32
    %539 = arith.subi %c15_i32_126, %538 : i32
    %c7_i32_127 = arith.constant 7 : i32
    %540 = arith.subi %c7_i32_127, %c6_i32 : i32
    %541 = arith.index_cast %c6_i32 : i32 to index
    %c0_128 = arith.constant 0 : index
    %c0_129 = arith.constant 0 : index
    %542 = vector.load %arg1[%541, %c0_128, %c0_129] : memref<8x8x384xf32, #tpu.memory_space<vmem>>, vector<1x8x384xf32>
    %543 = vector.shape_cast %542 : vector<1x8x384xf32> to vector<8x384xf32>
    %544 = arith.index_cast %540 : i32 to index
    %c0_130 = arith.constant 0 : index
    %c0_131 = arith.constant 0 : index
    %545 = vector.load %arg2[%544, %c0_130, %c0_131] : memref<8x8x384xf32, #tpu.memory_space<vmem>>, vector<1x8x384xf32>
    %546 = vector.shape_cast %545 : vector<1x8x384xf32> to vector<8x384xf32>
    %cst_132 = arith.constant dense<0.000000e+00> : vector<8x768xf32>
    %547 = tpu.matmul %536, %4, %cst_132 {dimension_numbers = #tpu.dot_dimension_numbers<[1], [0], [0], [1], [0, 0, 1, 1], [], []>} : vector<8x256xf32>, vector<256x768xf32>, vector<8x768xf32> -> vector<8x768xf32>
    %548 = vector.extract_strided_slice %543 {offsets = [0, 0], sizes = [8, 128], strides = [1, 1]} : vector<8x384xf32> to vector<8x128xf32>
    %549 = vector.extract_strided_slice %547 {offsets = [0, 0], sizes = [8, 128], strides = [1, 1]} : vector<8x768xf32> to vector<8x128xf32>
    %550 = arith.addf %548, %549 : vector<8x128xf32>
    %551 = arith.negf %550 : vector<8x128xf32>
    %552 = math.exp %551 : vector<8x128xf32>
    %cst_133 = arith.constant 1.000000e+00 : f32
    %553 = vector.broadcast %cst_133 : f32 to vector<8x128xf32>
    %554 = arith.addf %553, %552 : vector<8x128xf32>
    %555 = arith.divf %553, %554 : vector<8x128xf32>
    %556 = vector.extract_strided_slice %543 {offsets = [0, 128], sizes = [8, 128], strides = [1, 1]} : vector<8x384xf32> to vector<8x128xf32>
    %557 = vector.extract_strided_slice %547 {offsets = [0, 128], sizes = [8, 128], strides = [1, 1]} : vector<8x768xf32> to vector<8x128xf32>
    %558 = arith.addf %556, %557 : vector<8x128xf32>
    %559 = arith.negf %558 : vector<8x128xf32>
    %560 = math.exp %559 : vector<8x128xf32>
    %cst_134 = arith.constant 1.000000e+00 : f32
    %561 = vector.broadcast %cst_134 : f32 to vector<8x128xf32>
    %562 = arith.addf %561, %560 : vector<8x128xf32>
    %563 = arith.divf %561, %562 : vector<8x128xf32>
    %564 = vector.extract_strided_slice %543 {offsets = [0, 256], sizes = [8, 128], strides = [1, 1]} : vector<8x384xf32> to vector<8x128xf32>
    %565 = vector.extract_strided_slice %547 {offsets = [0, 256], sizes = [8, 128], strides = [1, 1]} : vector<8x768xf32> to vector<8x128xf32>
    %566 = arith.addf %565, %6 : vector<8x128xf32>
    %567 = arith.mulf %555, %566 : vector<8x128xf32>
    %568 = arith.addf %564, %567 : vector<8x128xf32>
    %569 = math.tanh %568 : vector<8x128xf32>
    %cst_135 = arith.constant 1.000000e+00 : f32
    %570 = vector.broadcast %cst_135 : f32 to vector<8x128xf32>
    %571 = arith.subf %570, %563 : vector<8x128xf32>
    %572 = arith.mulf %571, %569 : vector<8x128xf32>
    %573 = vector.extract_strided_slice %536 {offsets = [0, 0], sizes = [8, 128], strides = [1, 1]} : vector<8x256xf32> to vector<8x128xf32>
    %574 = arith.mulf %563, %573 : vector<8x128xf32>
    %575 = arith.addf %572, %574 : vector<8x128xf32>
    %576 = vector.extract_strided_slice %546 {offsets = [0, 0], sizes = [8, 128], strides = [1, 1]} : vector<8x384xf32> to vector<8x128xf32>
    %577 = vector.extract_strided_slice %547 {offsets = [0, 384], sizes = [8, 128], strides = [1, 1]} : vector<8x768xf32> to vector<8x128xf32>
    %578 = arith.addf %576, %577 : vector<8x128xf32>
    %579 = arith.negf %578 : vector<8x128xf32>
    %580 = math.exp %579 : vector<8x128xf32>
    %cst_136 = arith.constant 1.000000e+00 : f32
    %581 = vector.broadcast %cst_136 : f32 to vector<8x128xf32>
    %582 = arith.addf %581, %580 : vector<8x128xf32>
    %583 = arith.divf %581, %582 : vector<8x128xf32>
    %584 = vector.extract_strided_slice %546 {offsets = [0, 128], sizes = [8, 128], strides = [1, 1]} : vector<8x384xf32> to vector<8x128xf32>
    %585 = vector.extract_strided_slice %547 {offsets = [0, 512], sizes = [8, 128], strides = [1, 1]} : vector<8x768xf32> to vector<8x128xf32>
    %586 = arith.addf %584, %585 : vector<8x128xf32>
    %587 = arith.negf %586 : vector<8x128xf32>
    %588 = math.exp %587 : vector<8x128xf32>
    %cst_137 = arith.constant 1.000000e+00 : f32
    %589 = vector.broadcast %cst_137 : f32 to vector<8x128xf32>
    %590 = arith.addf %589, %588 : vector<8x128xf32>
    %591 = arith.divf %589, %590 : vector<8x128xf32>
    %592 = vector.extract_strided_slice %546 {offsets = [0, 256], sizes = [8, 128], strides = [1, 1]} : vector<8x384xf32> to vector<8x128xf32>
    %593 = vector.extract_strided_slice %547 {offsets = [0, 640], sizes = [8, 128], strides = [1, 1]} : vector<8x768xf32> to vector<8x128xf32>
    %594 = arith.addf %593, %7 : vector<8x128xf32>
    %595 = arith.mulf %583, %594 : vector<8x128xf32>
    %596 = arith.addf %592, %595 : vector<8x128xf32>
    %597 = math.tanh %596 : vector<8x128xf32>
    %cst_138 = arith.constant 1.000000e+00 : f32
    %598 = vector.broadcast %cst_138 : f32 to vector<8x128xf32>
    %599 = arith.subf %598, %591 : vector<8x128xf32>
    %600 = arith.mulf %599, %597 : vector<8x128xf32>
    %601 = vector.extract_strided_slice %536 {offsets = [0, 128], sizes = [8, 128], strides = [1, 1]} : vector<8x256xf32> to vector<8x128xf32>
    %602 = arith.mulf %591, %601 : vector<8x128xf32>
    %603 = arith.addf %600, %602 : vector<8x128xf32>
    %604 = vector.broadcast %538 : i32 to vector<8x128xi32>
    %605 = arith.cmpi slt, %604, %3 : vector<8x128xi32>
    %606 = vector.broadcast %539 : i32 to vector<8x128xi32>
    %607 = arith.cmpi slt, %606, %3 : vector<8x128xi32>
    %cst_139 = arith.constant 0.000000e+00 : f32
    %608 = vector.broadcast %cst_139 : f32 to vector<8x128xf32>
    %609 = arith.select %605, %575, %608 : vector<8x128xi1>, vector<8x128xf32>
    %610 = arith.index_cast %c6_i32 : i32 to index
    %c0_140 = arith.constant 0 : index
    %c0_141 = arith.constant 0 : index
    %611 = vector.load %arg6[%610, %c0_140, %c0_141] : memref<8x8x128xf32, #tpu.memory_space<vmem>>, vector<1x8x128xf32>
    %612 = vector.shape_cast %611 : vector<1x8x128xf32> to vector<8x128xf32>
    %613 = vector.shape_cast %609 : vector<8x128xf32> to vector<1x8x128xf32>
    tpu.vector_store %arg6[%610, %c0_140, %c0_141], %613 {strides = array<i32>} : memref<8x8x128xf32, #tpu.memory_space<vmem>>, vector<1x8x128xf32>,
    %cst_142 = arith.constant 0.000000e+00 : f32
    %614 = vector.broadcast %cst_142 : f32 to vector<8x128xf32>
    %615 = arith.select %607, %603, %614 : vector<8x128xi1>, vector<8x128xf32>
    %616 = arith.index_cast %540 : i32 to index
    %c0_143 = arith.constant 0 : index
    %c0_144 = arith.constant 0 : index
    %617 = vector.load %arg7[%616, %c0_143, %c0_144] : memref<8x8x128xf32, #tpu.memory_space<vmem>>, vector<1x8x128xf32>
    %618 = vector.shape_cast %617 : vector<1x8x128xf32> to vector<8x128xf32>
    %619 = vector.shape_cast %615 : vector<8x128xf32> to vector<1x8x128xf32>
    tpu.vector_store %arg7[%616, %c0_143, %c0_144], %619 {strides = array<i32>} : memref<8x8x128xf32, #tpu.memory_space<vmem>>, vector<1x8x128xf32>,
    %620 = vector.extract_strided_slice %536 {offsets = [0, 0], sizes = [8, 128], strides = [1, 1]} : vector<8x256xf32> to vector<8x128xf32>
    %621 = arith.select %605, %575, %620 : vector<8x128xi1>, vector<8x128xf32>
    %622 = vector.extract_strided_slice %536 {offsets = [0, 128], sizes = [8, 128], strides = [1, 1]} : vector<8x256xf32> to vector<8x128xf32>
    %623 = arith.select %607, %603, %622 : vector<8x128xi1>, vector<8x128xf32>
    %624 = tpu.concatenate %621, %623 in 1 : vector<8x128xf32>, vector<8x128xf32> -> vector<8x256xf32>
    %c7_i32_145 = arith.constant 7 : i32
    %c8_i32_146 = arith.constant 8 : i32
    %625 = arith.muli %arg0, %c8_i32_146 : i32
    %626 = arith.addi %625, %c7_i32_145 : i32
    %c15_i32_147 = arith.constant 15 : i32
    %627 = arith.subi %c15_i32_147, %626 : i32
    %c7_i32_148 = arith.constant 7 : i32
    %628 = arith.subi %c7_i32_148, %c7_i32_145 : i32
    %629 = arith.index_cast %c7_i32_145 : i32 to index
    %c0_149 = arith.constant 0 : index
    %c0_150 = arith.constant 0 : index
    %630 = vector.load %arg1[%629, %c0_149, %c0_150] : memref<8x8x384xf32, #tpu.memory_space<vmem>>, vector<1x8x384xf32>
    %631 = vector.shape_cast %630 : vector<1x8x384xf32> to vector<8x384xf32>
    %632 = arith.index_cast %628 : i32 to index
    %c0_151 = arith.constant 0 : index
    %c0_152 = arith.constant 0 : index
    %633 = vector.load %arg2[%632, %c0_151, %c0_152] : memref<8x8x384xf32, #tpu.memory_space<vmem>>, vector<1x8x384xf32>
    %634 = vector.shape_cast %633 : vector<1x8x384xf32> to vector<8x384xf32>
    %cst_153 = arith.constant dense<0.000000e+00> : vector<8x768xf32>
    %635 = tpu.matmul %624, %4, %cst_153 {dimension_numbers = #tpu.dot_dimension_numbers<[1], [0], [0], [1], [0, 0, 1, 1], [], []>} : vector<8x256xf32>, vector<256x768xf32>, vector<8x768xf32> -> vector<8x768xf32>
    %636 = vector.extract_strided_slice %631 {offsets = [0, 0], sizes = [8, 128], strides = [1, 1]} : vector<8x384xf32> to vector<8x128xf32>
    %637 = vector.extract_strided_slice %635 {offsets = [0, 0], sizes = [8, 128], strides = [1, 1]} : vector<8x768xf32> to vector<8x128xf32>
    %638 = arith.addf %636, %637 : vector<8x128xf32>
    %639 = arith.negf %638 : vector<8x128xf32>
    %640 = math.exp %639 : vector<8x128xf32>
    %cst_154 = arith.constant 1.000000e+00 : f32
    %641 = vector.broadcast %cst_154 : f32 to vector<8x128xf32>
    %642 = arith.addf %641, %640 : vector<8x128xf32>
    %643 = arith.divf %641, %642 : vector<8x128xf32>
    %644 = vector.extract_strided_slice %631 {offsets = [0, 128], sizes = [8, 128], strides = [1, 1]} : vector<8x384xf32> to vector<8x128xf32>
    %645 = vector.extract_strided_slice %635 {offsets = [0, 128], sizes = [8, 128], strides = [1, 1]} : vector<8x768xf32> to vector<8x128xf32>
    %646 = arith.addf %644, %645 : vector<8x128xf32>
    %647 = arith.negf %646 : vector<8x128xf32>
    %648 = math.exp %647 : vector<8x128xf32>
    %cst_155 = arith.constant 1.000000e+00 : f32
    %649 = vector.broadcast %cst_155 : f32 to vector<8x128xf32>
    %650 = arith.addf %649, %648 : vector<8x128xf32>
    %651 = arith.divf %649, %650 : vector<8x128xf32>
    %652 = vector.extract_strided_slice %631 {offsets = [0, 256], sizes = [8, 128], strides = [1, 1]} : vector<8x384xf32> to vector<8x128xf32>
    %653 = vector.extract_strided_slice %635 {offsets = [0, 256], sizes = [8, 128], strides = [1, 1]} : vector<8x768xf32> to vector<8x128xf32>
    %654 = arith.addf %653, %6 : vector<8x128xf32>
    %655 = arith.mulf %643, %654 : vector<8x128xf32>
    %656 = arith.addf %652, %655 : vector<8x128xf32>
    %657 = math.tanh %656 : vector<8x128xf32>
    %cst_156 = arith.constant 1.000000e+00 : f32
    %658 = vector.broadcast %cst_156 : f32 to vector<8x128xf32>
    %659 = arith.subf %658, %651 : vector<8x128xf32>
    %660 = arith.mulf %659, %657 : vector<8x128xf32>
    %661 = vector.extract_strided_slice %624 {offsets = [0, 0], sizes = [8, 128], strides = [1, 1]} : vector<8x256xf32> to vector<8x128xf32>
    %662 = arith.mulf %651, %661 : vector<8x128xf32>
    %663 = arith.addf %660, %662 : vector<8x128xf32>
    %664 = vector.extract_strided_slice %634 {offsets = [0, 0], sizes = [8, 128], strides = [1, 1]} : vector<8x384xf32> to vector<8x128xf32>
    %665 = vector.extract_strided_slice %635 {offsets = [0, 384], sizes = [8, 128], strides = [1, 1]} : vector<8x768xf32> to vector<8x128xf32>
    %666 = arith.addf %664, %665 : vector<8x128xf32>
    %667 = arith.negf %666 : vector<8x128xf32>
    %668 = math.exp %667 : vector<8x128xf32>
    %cst_157 = arith.constant 1.000000e+00 : f32
    %669 = vector.broadcast %cst_157 : f32 to vector<8x128xf32>
    %670 = arith.addf %669, %668 : vector<8x128xf32>
    %671 = arith.divf %669, %670 : vector<8x128xf32>
    %672 = vector.extract_strided_slice %634 {offsets = [0, 128], sizes = [8, 128], strides = [1, 1]} : vector<8x384xf32> to vector<8x128xf32>
    %673 = vector.extract_strided_slice %635 {offsets = [0, 512], sizes = [8, 128], strides = [1, 1]} : vector<8x768xf32> to vector<8x128xf32>
    %674 = arith.addf %672, %673 : vector<8x128xf32>
    %675 = arith.negf %674 : vector<8x128xf32>
    %676 = math.exp %675 : vector<8x128xf32>
    %cst_158 = arith.constant 1.000000e+00 : f32
    %677 = vector.broadcast %cst_158 : f32 to vector<8x128xf32>
    %678 = arith.addf %677, %676 : vector<8x128xf32>
    %679 = arith.divf %677, %678 : vector<8x128xf32>
    %680 = vector.extract_strided_slice %634 {offsets = [0, 256], sizes = [8, 128], strides = [1, 1]} : vector<8x384xf32> to vector<8x128xf32>
    %681 = vector.extract_strided_slice %635 {offsets = [0, 640], sizes = [8, 128], strides = [1, 1]} : vector<8x768xf32> to vector<8x128xf32>
    %682 = arith.addf %681, %7 : vector<8x128xf32>
    %683 = arith.mulf %671, %682 : vector<8x128xf32>
    %684 = arith.addf %680, %683 : vector<8x128xf32>
    %685 = math.tanh %684 : vector<8x128xf32>
    %cst_159 = arith.constant 1.000000e+00 : f32
    %686 = vector.broadcast %cst_159 : f32 to vector<8x128xf32>
    %687 = arith.subf %686, %679 : vector<8x128xf32>
    %688 = arith.mulf %687, %685 : vector<8x128xf32>
    %689 = vector.extract_strided_slice %624 {offsets = [0, 128], sizes = [8, 128], strides = [1, 1]} : vector<8x256xf32> to vector<8x128xf32>
    %690 = arith.mulf %679, %689 : vector<8x128xf32>
    %691 = arith.addf %688, %690 : vector<8x128xf32>
    %692 = vector.broadcast %626 : i32 to vector<8x128xi32>
    %693 = arith.cmpi slt, %692, %3 : vector<8x128xi32>
    %694 = vector.broadcast %627 : i32 to vector<8x128xi32>
    %695 = arith.cmpi slt, %694, %3 : vector<8x128xi32>
    %cst_160 = arith.constant 0.000000e+00 : f32
    %696 = vector.broadcast %cst_160 : f32 to vector<8x128xf32>
    %697 = arith.select %693, %663, %696 : vector<8x128xi1>, vector<8x128xf32>
    %698 = arith.index_cast %c7_i32_145 : i32 to index
    %c0_161 = arith.constant 0 : index
    %c0_162 = arith.constant 0 : index
    %699 = vector.load %arg6[%698, %c0_161, %c0_162] : memref<8x8x128xf32, #tpu.memory_space<vmem>>, vector<1x8x128xf32>
    %700 = vector.shape_cast %699 : vector<1x8x128xf32> to vector<8x128xf32>
    %701 = vector.shape_cast %697 : vector<8x128xf32> to vector<1x8x128xf32>
    tpu.vector_store %arg6[%698, %c0_161, %c0_162], %701 {strides = array<i32>} : memref<8x8x128xf32, #tpu.memory_space<vmem>>, vector<1x8x128xf32>,
    %cst_163 = arith.constant 0.000000e+00 : f32
    %702 = vector.broadcast %cst_163 : f32 to vector<8x128xf32>
    %703 = arith.select %695, %691, %702 : vector<8x128xi1>, vector<8x128xf32>
    %704 = arith.index_cast %628 : i32 to index
    %c0_164 = arith.constant 0 : index
    %c0_165 = arith.constant 0 : index
    %705 = vector.load %arg7[%704, %c0_164, %c0_165] : memref<8x8x128xf32, #tpu.memory_space<vmem>>, vector<1x8x128xf32>
    %706 = vector.shape_cast %705 : vector<1x8x128xf32> to vector<8x128xf32>
    %707 = vector.shape_cast %703 : vector<8x128xf32> to vector<1x8x128xf32>
    tpu.vector_store %arg7[%704, %c0_164, %c0_165], %707 {strides = array<i32>} : memref<8x8x128xf32, #tpu.memory_space<vmem>>, vector<1x8x128xf32>,
    %708 = vector.extract_strided_slice %624 {offsets = [0, 0], sizes = [8, 128], strides = [1, 1]} : vector<8x256xf32> to vector<8x128xf32>
    %709 = arith.select %693, %663, %708 : vector<8x128xi1>, vector<8x128xf32>
    %710 = vector.extract_strided_slice %624 {offsets = [0, 128], sizes = [8, 128], strides = [1, 1]} : vector<8x256xf32> to vector<8x128xf32>
    %711 = arith.select %695, %691, %710 : vector<8x128xi1>, vector<8x128xf32>
    %712 = tpu.concatenate %709, %711 in 1 : vector<8x128xf32>, vector<8x128xf32> -> vector<8x256xf32>
    %c8_i32_166 = arith.constant 8 : i32
    %c0_167 = arith.constant 0 : index
    %c0_168 = arith.constant 0 : index
    %713 = vector.load %arg8[%c0_167, %c0_168] : memref<8x256xf32, #tpu.memory_space<vmem>>, vector<8x256xf32>
    tpu.vector_store %arg8[%c0_167, %c0_168], %712 {strides = array<i32>} : memref<8x256xf32, #tpu.memory_space<vmem>>, vector<8x256xf32>,
    return
  }
  func.func @transform_0(%arg0: i32) -> (i32, i32, i32) {
    %c0_i32 = arith.constant 0 : i32
    %c0_i32_0 = arith.constant 0 : i32
    %c0_i32_1 = arith.constant 0 : i32
    return %arg0, %c0_i32, %c0_i32_0 : i32, i32, i32
  }
  func.func @transform_1(%arg0: i32) -> (i32, i32, i32) {
    %c1_i32 = arith.constant 1 : i32
    %0 = arith.subi %c1_i32, %arg0 : i32
    %c0_i32 = arith.constant 0 : i32
    %c0_i32_0 = arith.constant 0 : i32
    %c0_i32_1 = arith.constant 0 : i32
    return %0, %c0_i32, %c0_i32_0 : i32, i32, i32
  }
  func.func @transform_2(%arg0: i32) -> (i32, i32) {
    %c0_i32 = arith.constant 0 : i32
    %c0_i32_0 = arith.constant 0 : i32
    %c0_i32_1 = arith.constant 0 : i32
    return %c0_i32, %c0_i32_0 : i32, i32
  }
  func.func @transform_3(%arg0: i32) -> (i32, i32) {
    %c0_i32 = arith.constant 0 : i32
    %c0_i32_0 = arith.constant 0 : i32
    %c0_i32_1 = arith.constant 0 : i32
    return %c0_i32, %c0_i32_0 : i32, i32
  }
  func.func @transform_4(%arg0: i32) -> (i32, i32) {
    %c0_i32 = arith.constant 0 : i32
    %c0_i32_0 = arith.constant 0 : i32
    %c0_i32_1 = arith.constant 0 : i32
    return %c0_i32, %c0_i32_0 : i32, i32
  }
  func.func @transform_5(%arg0: i32) -> (i32, i32, i32) {
    %c0_i32 = arith.constant 0 : i32
    %c0_i32_0 = arith.constant 0 : i32
    %c0_i32_1 = arith.constant 0 : i32
    return %arg0, %c0_i32, %c0_i32_0 : i32, i32, i32
  }
  func.func @transform_6(%arg0: i32) -> (i32, i32, i32) {
    %c1_i32 = arith.constant 1 : i32
    %0 = arith.subi %c1_i32, %arg0 : i32
    %c0_i32 = arith.constant 0 : i32
    %c0_i32_0 = arith.constant 0 : i32
    %c0_i32_1 = arith.constant 0 : i32
    return %0, %c0_i32, %c0_i32_0 : i32, i32, i32
  }
  func.func @transform_7(%arg0: i32) -> (i32, i32) {
    %c0_i32 = arith.constant 0 : i32
    %c0_i32_0 = arith.constant 0 : i32
    %c0_i32_1 = arith.constant 0 : i32
    return %c0_i32, %c0_i32_0 : i32, i32
  }
}

</mosaic_0001>

<llo_original>
// kernel: encoder_rnn_forward.1
$region0: #{encoder_rnn_forward.1}
  #allocation0 [shape = 'u32[]', space=smem, size = 0x4, offset = 0x4, fixed_abs, tag = 'smem constant byte address 0x4 - core index']
  #allocation1 [shape = 'u32[72,128]{1,0:T(1,128)}', space=vmem, size = 0x9000, scoped, tag = 'internal scratch']
  %s0 = inlined_call_operand.vmem [shape: f32[16,8,384], index: 0, kind: input, shape index: {}]
  %s1 = inlined_call_operand.vmem [shape: f32[16,8,384], index: 1, kind: input, shape index: {}]
  %s2 = inlined_call_operand.vmem [shape: s32[8,128], index: 2, kind: input, shape index: {}]
  %s3 = inlined_call_operand.vmem [shape: f32[256,768], index: 3, kind: input, shape index: {}]
  %s4 = inlined_call_operand.vmem [shape: f32[8,256], index: 4, kind: input, shape index: {}]
  %s5 = inlined_call_operand.vmem [shape: f32[16,8,128], index: 5, kind: output, shape index: {0}]
  %s6 = inlined_call_operand.vmem [shape: f32[16,8,128], index: 6, kind: output, shape index: {1}]
  %s7 = inlined_call_operand.vmem [shape: f32[8,256], index: 7, kind: output, shape index: {2}]
  %8 = xla_tuple %s5, %s6, %s7
  %s9 = sld [smem:[#allocation0]]
  $region73: #{encoder_rnn_forward.1} parent=0
    _
  %s11 = ssub.s32 1, %s9
  %s12 = scalar_select 0, %s11, %s9
  loop: start=0, step=1, limit=4
  $region2: #{encoder_rnn_forward.1} parent=0 // loop_pre_header
    _
  $region3: #{encoder_rnn_forward.1} parent=0 // loop_header
    %s14 = sphi 0, %s18
    %p15 = scmp.ge.s32.totalorder %s14, 4
    %s24 = sphi 0, %s26
    %s27 = sphi 0, %s24
    %s28 = sphi 0, %s27
    %s44 = sphi 0, %s28
    %s52 = sphi 0, %s54
    %s55 = sphi 0, %s52
    %s56 = sphi 0, %s55
    %s72 = sphi 0, %s56
    %s76 = sphi 0, %s76
    %s78 = sphi 0, %s76
    %s79 = sphi 0, %s78
    %s93 = sphi 0, %s79
    %s97 = sphi 0, %s97
    %s99 = sphi 0, %s97
    %s100 = sphi 0, %s99
    %s114 = sphi 0, %s100
    %s118 = sphi 0, %s118
    %s120 = sphi 0, %s118
    %s121 = sphi 0, %s120
    %s135 = sphi 0, %s121
    %s141 = sphi 0, %s143
    %s144 = sphi 0, %s141
    %s145 = sphi 0, %s144
    %s161 = sphi 0, %s145
    %s169 = sphi 0, %s171
    %s172 = sphi 0, %s169
    %s173 = sphi 0, %s172
    %s189 = sphi 0, %s173
    %s193 = sphi 0, %s193
    %s195 = sphi 0, %s193
    %s196 = sphi 0, %s195
    %s210 = sphi 0, %s196
  $region4: #{encoder_rnn_forward.1} parent=0 // loop_header_branch
    %17 = sbr.rel (%p15) target = $region8
  $region5: #{encoder_rnn_forward.1} parent=0 // loop_body
    %s19 = ssub.s32 %s14, 1
    %s20 = ssub.s32 %s14, 2
    %s21 = sadd.s32 %s14, 1
    %s22 = ssub.s32 %s14, %s21
    %p23 = scmp.eq.s32.totalorder %s22, 0
    %s25 = sadd.s32 %s24, 1
    %s26 = scalar_select %p23, %s24, %s25
    %p29 = pneg %p23
    %p30 = scmp.eq.s32.totalorder %s14, 1
    %p31 = por %p29, %p30
    %p32 = scmp.ne.s32.totalorder %s24, %s27
    %p33 = scmp.eq.s32.totalorder %s14, 0
    %p34 = por %p32, %p33
    %p35 = scmp.ne.s32.totalorder %s24, %s27
    %p36 = scmp.eq.s32.totalorder %s19, 1
    %p37 = por %p35, %p36
    %p38 = scmp.ne.s32.totalorder %s27, %s28
    %p39 = scmp.eq.s32.totalorder %s19, 0
    %p40 = por %p38, %p39
    %p41 = scmp.ne.s32.totalorder %s27, %s28
    %p42 = scmp.eq.s32.totalorder %s20, 1
    %p43 = por %p41, %p42
    %p45 = scmp.ne.s32.totalorder %s28, %s44
    %p46 = scmp.eq.s32.totalorder %s20, 0
    %p47 = por %p45, %p46
    %s48 = ssub.s32 1, %s14
    %s49 = ssub.s32 1, %s21
    %s50 = ssub.s32 %s48, %s49
    %p51 = scmp.eq.s32.totalorder %s50, 0
    %s53 = sadd.s32 %s52, 1
    %s54 = scalar_select %p51, %s52, %s53
    %p57 = pneg %p51
    %p58 = scmp.eq.s32.totalorder %s14, 1
    %p59 = por %p57, %p58
    %p60 = scmp.ne.s32.totalorder %s52, %s55
    %p61 = scmp.eq.s32.totalorder %s14, 0
    %p62 = por %p60, %p61
    %p63 = scmp.ne.s32.totalorder %s52, %s55
    %p64 = scmp.eq.s32.totalorder %s19, 1
    %p65 = por %p63, %p64
    %p66 = scmp.ne.s32.totalorder %s55, %s56
    %p67 = scmp.eq.s32.totalorder %s19, 0
    %p68 = por %p66, %p67
    %p69 = scmp.ne.s32.totalorder %s55, %s56
    %p70 = scmp.eq.s32.totalorder %s20, 1
    %p71 = por %p69, %p70
    %p73 = scmp.ne.s32.totalorder %s56, %s72
    %p74 = scmp.eq.s32.totalorder %s20, 0
    %p75 = por %p73, %p74
    %s77 = sadd.s32 %s76, 1
    %p80 = scmp.eq.s32.totalorder %s14, 1
    %p81 = scmp.ne.s32.totalorder %s76, %s78
    %p82 = scmp.eq.s32.totalorder %s14, 0
    %p83 = por %p81, %p82
    %p84 = scmp.ne.s32.totalorder %s76, %s78
    %p85 = scmp.eq.s32.totalorder %s19, 1
    %p86 = por %p84, %p85
    %p87 = scmp.ne.s32.totalorder %s78, %s79
    %p88 = scmp.eq.s32.totalorder %s19, 0
    %p89 = por %p87, %p88
    %p90 = scmp.ne.s32.totalorder %s78, %s79
    %p91 = scmp.eq.s32.totalorder %s20, 1
    %p92 = por %p90, %p91
    %p94 = scmp.ne.s32.totalorder %s79, %s93
    %p95 = scmp.eq.s32.totalorder %s20, 0
    %p96 = por %p94, %p95
    %s98 = sadd.s32 %s97, 1
    %p101 = scmp.eq.s32.totalorder %s14, 1
    %p102 = scmp.ne.s32.totalorder %s97, %s99
    %p103 = scmp.eq.s32.totalorder %s14, 0
    %p104 = por %p102, %p103
    %p105 = scmp.ne.s32.totalorder %s97, %s99
    %p106 = scmp.eq.s32.totalorder %s19, 1
    %p107 = por %p105, %p106
    %p108 = scmp.ne.s32.totalorder %s99, %s100
    %p109 = scmp.eq.s32.totalorder %s19, 0
    %p110 = por %p108, %p109
    %p111 = scmp.ne.s32.totalorder %s99, %s100
    %p112 = scmp.eq.s32.totalorder %s20, 1
    %p113 = por %p111, %p112
    %p115 = scmp.ne.s32.totalorder %s100, %s114
    %p116 = scmp.eq.s32.totalorder %s20, 0
    %p117 = por %p115, %p116
    %s119 = sadd.s32 %s118, 1
    %p122 = scmp.eq.s32.totalorder %s14, 1
    %p123 = scmp.ne.s32.totalorder %s118, %s120
    %p124 = scmp.eq.s32.totalorder %s14, 0
    %p125 = por %p123, %p124
    %p126 = scmp.ne.s32.totalorder %s118, %s120
    %p127 = scmp.eq.s32.totalorder %s19, 1
    %p128 = por %p126, %p127
    %p129 = scmp.ne.s32.totalorder %s120, %s121
    %p130 = scmp.eq.s32.totalorder %s19, 0
    %p131 = por %p129, %p130
    %p132 = scmp.ne.s32.totalorder %s120, %s121
    %p133 = scmp.eq.s32.totalorder %s20, 1
    %p134 = por %p132, %p133
    %p136 = scmp.ne.s32.totalorder %s121, %s135
    %p137 = scmp.eq.s32.totalorder %s20, 0
    %p138 = por %p136, %p137
    %s139 = ssub.s32 %s14, %s21
    %p140 = scmp.eq.s32.totalorder %s139, 0
    %s142 = sadd.s32 %s141, 1
    %s143 = scalar_select %p140, %s141, %s142
    %p146 = pneg %p140
    %p147 = scmp.eq.s32.totalorder %s14, 1
    %p148 = por %p146, %p147
    %p149 = scmp.ne.s32.totalorder %s141, %s144
    %p150 = scmp.eq.s32.totalorder %s14, 0
    %p151 = por %p149, %p150
    %p152 = scmp.ne.s32.totalorder %s141, %s144
    %p153 = scmp.eq.s32.totalorder %s19, 1
    %p154 = por %p152, %p153
    %p155 = scmp.ne.s32.totalorder %s144, %s145
    %p156 = scmp.eq.s32.totalorder %s19, 0
    %p157 = por %p155, %p156
    %p158 = scmp.ne.s32.totalorder %s144, %s145
    %p159 = scmp.eq.s32.totalorder %s20, 1
    %p160 = por %p158, %p159
    %p162 = scmp.ne.s32.totalorder %s145, %s161
    %p163 = scmp.eq.s32.totalorder %s20, 0
    %p164 = por %p162, %p163
    %s165 = ssub.s32 1, %s14
    %s166 = ssub.s32 1, %s21
    %s167 = ssub.s32 %s165, %s166
    %p168 = scmp.eq.s32.totalorder %s167, 0
    %s170 = sadd.s32 %s169, 1
    %s171 = scalar_select %p168, %s169, %s170
    %p174 = pneg %p168
    %p175 = scmp.eq.s32.totalorder %s14, 1
    %p176 = por %p174, %p175
    %p177 = scmp.ne.s32.totalorder %s169, %s172
    %p178 = scmp.eq.s32.totalorder %s14, 0
    %p179 = por %p177, %p178
    %p180 = scmp.ne.s32.totalorder %s169, %s172
    %p181 = scmp.eq.s32.totalorder %s19, 1
    %p182 = por %p180, %p181
    %p183 = scmp.ne.s32.totalorder %s172, %s173
    %p184 = scmp.eq.s32.totalorder %s19, 0
    %p185 = por %p183, %p184
    %p186 = scmp.ne.s32.totalorder %s172, %s173
    %p187 = scmp.eq.s32.totalorder %s20, 1
    %p188 = por %p186, %p187
    %p190 = scmp.ne.s32.totalorder %s173, %s189
    %p191 = scmp.eq.s32.totalorder %s20, 0
    %p192 = por %p190, %p191
    %s194 = sadd.s32 %s193, 1
    %p197 = scmp.eq.s32.totalorder %s14, 1
    %p198 = scmp.ne.s32.totalorder %s193, %s195
    %p199 = scmp.eq.s32.totalorder %s14, 0
    %p200 = por %p198, %p199
    %p201 = scmp.ne.s32.totalorder %s193, %s195
    %p202 = scmp.eq.s32.totalorder %s19, 1
    %p203 = por %p201, %p202
    %p204 = scmp.ne.s32.totalorder %s195, %s196
    %p205 = scmp.eq.s32.totalorder %s19, 0
    %p206 = por %p204, %p205
    %p207 = scmp.ne.s32.totalorder %s195, %s196
    %p208 = scmp.eq.s32.totalorder %s20, 1
    %p209 = por %p207, %p208
    %p211 = scmp.ne.s32.totalorder %s196, %s210
    %p212 = scmp.eq.s32.totalorder %s20, 0
    %p213 = por %p211, %p212
    %p214 = scmp.le.s32.totalorder 1, %s14
    %p215 = scmp.lt.s32.totalorder %s14, 3
    %p216 = pnand %p214, %p215
    %p217 = pneg %p216
    // Predicated region
    $region9: #{encoder_rnn_forward.1} parent=5 // pred_check
      _
    $region10: #{encoder_rnn_forward.1} parent=5 // pred_check_branch
      %219 = sbr.rel (%p216) target = $region12
    $region11: #{encoder_rnn_forward.1} parent=5 // pred_region
      %s220 = ssub.s32 %s14, 1
      // Predicated region
      $region13: #{encoder_rnn_forward.1} parent=11 // pred_check
        %p221 = pneg %p89
      $region14: #{encoder_rnn_forward.1} parent=11 // pred_check_branch
        %223 = sbr.rel (%p221) target = $region16
      $region15: #{encoder_rnn_forward.1} parent=11 // pred_region
        _
      $region16: #{encoder_rnn_forward.1} parent=11 // pred_fallthru
        _
      // Predicated region
      $region17: #{encoder_rnn_forward.1} parent=11 // pred_check
        %p224 = pneg %p110
      $region18: #{encoder_rnn_forward.1} parent=11 // pred_check_branch
        %226 = sbr.rel (%p224) target = $region20
      $region19: #{encoder_rnn_forward.1} parent=11 // pred_region
        _
      $region20: #{encoder_rnn_forward.1} parent=11 // pred_fallthru
        _
      // Predicated region
      $region21: #{encoder_rnn_forward.1} parent=11 // pred_check
        %p227 = pneg %p131
      $region22: #{encoder_rnn_forward.1} parent=11 // pred_check_branch
        %229 = sbr.rel (%p227) target = $region24
      $region23: #{encoder_rnn_forward.1} parent=11 // pred_region
        _
      $region24: #{encoder_rnn_forward.1} parent=11 // pred_fallthru
        _
    $region12: #{encoder_rnn_forward.1} parent=5 // pred_fallthru
      _
    %p230 = scmp.lt.s32.totalorder %s14, 2
    // Predicated region
    $region25: #{encoder_rnn_forward.1} parent=5 // pred_check
      %p231 = pneg %p230
    $region26: #{encoder_rnn_forward.1} parent=5 // pred_check_branch
      %233 = sbr.rel (%p231) target = $region28
    $region27: #{encoder_rnn_forward.1} parent=5 // pred_region
      // Predicated region
      $region29: #{encoder_rnn_forward.1} parent=27 // pred_check
        %p234 = pneg %p34
      $region30: #{encoder_rnn_forward.1} parent=27 // pred_check_branch
        %236 = sbr.rel (%p234) target = $region32
      $region31: #{encoder_rnn_forward.1} parent=27 // pred_region
        %s237 = smul.u32 8, %s14
        %p238 = scmp.lt.s32.totalorder %s237, 15
        %s239 = scalar_select %p238, %s237, 15
        %s240 = smul.addr %s239, 3
        %s241 = smul.addr %s240, 8
        %s242 = scalar_lea.vmem %s0, %s241
        %s243 = smul.u32 8, %s14
      $region32: #{encoder_rnn_forward.1} parent=27 // pred_fallthru
        _
      // Predicated region
      $region33: #{encoder_rnn_forward.1} parent=27 // pred_check
        %p244 = pneg %p62
      $region34: #{encoder_rnn_forward.1} parent=27 // pred_check_branch
        %246 = sbr.rel (%p244) target = $region36
      $region35: #{encoder_rnn_forward.1} parent=27 // pred_region
        %s247 = ssub.s32 1, %s14
        %s248 = smul.u32 8, %s247
        %p249 = scmp.lt.s32.totalorder %s248, 15
        %s250 = scalar_select %p249, %s248, 15
        %s251 = smul.addr %s250, 3
        %s252 = smul.addr %s251, 8
        %s253 = scalar_lea.vmem %s1, %s252
        %s254 = ssub.s32 1, %s14
        %s255 = smul.u32 8, %s254
      $region36: #{encoder_rnn_forward.1} parent=27 // pred_fallthru
        _
    $region28: #{encoder_rnn_forward.1} parent=5 // pred_fallthru
      _
    %p256 = scmp.le.s32.totalorder 1, %s14
    %p257 = scmp.lt.s32.totalorder %s14, 3
    %p258 = pnand %p256, %p257
    %p259 = pneg %p258
    // Predicated region
    $region37: #{encoder_rnn_forward.1} parent=5 // pred_check
      _
    $region38: #{encoder_rnn_forward.1} parent=5 // pred_check_branch
      %261 = sbr.rel (%p258) target = $region40
    $region39: #{encoder_rnn_forward.1} parent=5 // pred_region
      %s262 = ssub.s32 %s14, 1
      %s263 = smul.u32 8, %s19
      %p264 = scmp.lt.s32.totalorder %s263, 15
      %s265 = scalar_select %p264, %s263, 15
      %s266 = smul.addr %s265, 3
      %s267 = smul.addr %s266, 8
      %s268 = scalar_lea.vmem %s0, %s267
      %p269 = pneg %p40
      %p270 = pneg %p37
      %s271 = ssub.s32 1, %s19
      %s272 = smul.u32 8, %s271
      %p273 = scmp.lt.s32.totalorder %s272, 15
      %s274 = scalar_select %p273, %s272, 15
      %s275 = smul.addr %s274, 3
      %s276 = smul.addr %s275, 8
      %s277 = scalar_lea.vmem %s1, %s276
      %p278 = pneg %p68
      %p279 = pneg %p65
      %p280 = pneg %p89
      %p281 = pneg %p86
      %p282 = pneg %p110
      %p283 = pneg %p107
      %p284 = pneg %p131
      %p285 = pneg %p128
      %p286 = pneg %p157
      %p287 = pneg %p154
      %s288 = smul.u32 8, %s19
      %p289 = scmp.lt.s32.totalorder %s288, 15
      %s290 = scalar_select %p289, %s288, 15
      %s291 = smul.addr %s290, 8
      %s292 = scalar_lea.vmem %s5, %s291
      %p293 = pneg %p185
      %p294 = pneg %p182
      %s295 = ssub.s32 1, %s19
      %s296 = smul.u32 8, %s295
      %p297 = scmp.lt.s32.totalorder %s296, 15
      %s298 = scalar_select %p297, %s296, 15
      %s299 = smul.addr %s298, 8
      %s300 = scalar_lea.vmem %s6, %s299
      %p301 = pneg %p206
      %p302 = pneg %p203
      %s303 = smul.u32 8, %s19
      %p304 = scmp.lt.s32.totalorder %s303, 15
      %s305 = scalar_select %p304, %s303, 15
      %s306 = smul.addr %s305, 3
      %s307 = smul.addr %s306, 8
      %s308 = scalar_lea.vmem %s0, %s307
      %s309 = smul.u32 8, %s19
      %s310 = ssub.s32 1, %s19
      %s311 = smul.u32 8, %s310
      %p312 = scmp.lt.s32.totalorder %s311, 15
      %s313 = scalar_select %p312, %s311, 15
      %s314 = smul.addr %s313, 3
      %s315 = smul.addr %s314, 8
      %s316 = scalar_lea.vmem %s1, %s315
      %s317 = ssub.s32 1, %s19
      %s318 = smul.u32 8, %s317
      %s319 = smul.u32 8, %s19
      %p320 = scmp.lt.s32.totalorder %s319, 15
      %s321 = scalar_select %p320, %s319, 15
      %s322 = smul.addr %s321, 8
      %s323 = scalar_lea.vmem %s5, %s322
      %s324 = smul.u32 8, %s19
      %s325 = ssub.s32 1, %s19
      %s326 = smul.u32 8, %s325
      %p327 = scmp.lt.s32.totalorder %s326, 15
      %s328 = scalar_select %p327, %s326, 15
      %s329 = smul.addr %s328, 8
      %s330 = scalar_lea.vmem %s6, %s329
      %s331 = ssub.s32 1, %s19
      %s332 = smul.u32 8, %s331
      %p333 = scmp.eq.s32.totalorder %s19, 0
      // Predicated region
      $region41: #{encoder_rnn_forward.1} parent=39 // pred_check
        %p334 = pneg %p333
      $region42: #{encoder_rnn_forward.1} parent=39 // pred_check_branch
        %336 = sbr.rel (%p334) target = $region44
      $region43: #{encoder_rnn_forward.1} parent=39 // pred_region
        %337 = vst [vmem:[%s7] sm:$0xff] 0.0
        %338 = vst [vmem:[%s7 + $0x8] sm:$0xff] 0.0
      $region44: #{encoder_rnn_forward.1} parent=39 // pred_fallthru
        _
      %v339 = vld [vmem:[%s2] sm:$0xff]
      %v340 = vld [vmem:[%s3] sm:$0xff]
      %v341 = vld [vmem:[%s3 + $0x8] sm:$0xff]
      %v342 = vld [vmem:[%s3 + $0x10] sm:$0xff]
      %v343 = vld [vmem:[%s3 + $0x18] sm:$0xff]
      %v344 = vld [vmem:[%s3 + $0x20] sm:$0xff]
      %v345 = vld [vmem:[%s3 + $0x28] sm:$0xff]
      %v346 = vld [vmem:[%s3 + $0x30] sm:$0xff]
      %v347 = vld [vmem:[%s3 + $0x38] sm:$0xff]
      %v348 = vld [vmem:[%s3 + $0x40] sm:$0xff]
      %v349 = vld [vmem:[%s3 + $0x48] sm:$0xff]
      %v350 = vld [vmem:[%s3 + $0x50] sm:$0xff]
      %v351 = vld [vmem:[%s3 + $0x58] sm:$0xff]
      %v352 = vld [vmem:[%s3 + $0x60] sm:$0xff]
      %v353 = vld [vmem:[%s3 + $0x68] sm:$0xff]
      %v354 = vld [vmem:[%s3 + $0x70] sm:$0xff]
      %v355 = vld [vmem:[%s3 + $0x78] sm:$0xff]
      %v356 = vld [vmem:[%s3 + $0x80] sm:$0xff]
      %v357 = vld [vmem:[%s3 + $0x88] sm:$0xff]
      %v358 = vld [vmem:[%s3 + $0x90] sm:$0xff]
      %v359 = vld [vmem:[%s3 + $0x98] sm:$0xff]
      %v360 = vld [vmem:[%s3 + $0xa0] sm:$0xff]
      %v361 = vld [vmem:[%s3 + $0xa8] sm:$0xff]
      %v362 = vld [vmem:[%s3 + $0xb0] sm:$0xff]
      %v363 = vld [vmem:[%s3 + $0xb8] sm:$0xff]
      %v364 = vld [vmem:[%s3 + $0xc0] sm:$0xff]
      %v365 = vld [vmem:[%s3 + $0xc8] sm:$0xff]
      %v366 = vld [vmem:[%s3 + $0xd0] sm:$0xff]
      %v367 = vld [vmem:[%s3 + $0xd8] sm:$0xff]
      %v368 = vld [vmem:[%s3 + $0xe0] sm:$0xff]
      %v369 = vld [vmem:[%s3 + $0xe8] sm:$0xff]
      %v370 = vld [vmem:[%s3 + $0xf0] sm:$0xff]
      %v371 = vld [vmem:[%s3 + $0xf8] sm:$0xff]
      %v372 = vld [vmem:[%s3 + $0x100] sm:$0xff]
      %v373 = vld [vmem:[%s3 + $0x108] sm:$0xff]
      %v374 = vld [vmem:[%s3 + $0x110] sm:$0xff]
      %v375 = vld [vmem:[%s3 + $0x118] sm:$0xff]
      %v376 = vld [vmem:[%s3 + $0x120] sm:$0xff]
      %v377 = vld [vmem:[%s3 + $0x128] sm:$0xff]
      %v378 = vld [vmem:[%s3 + $0x130] sm:$0xff]
      %v379 = vld [vmem:[%s3 + $0x138] sm:$0xff]
      %v380 = vld [vmem:[%s3 + $0x140] sm:$0xff]
      %v381 = vld [vmem:[%s3 + $0x148] sm:$0xff]
      %v382 = vld [vmem:[%s3 + $0x150] sm:$0xff]
      %v383 = vld [vmem:[%s3 + $0x158] sm:$0xff]
      %v384 = vld [vmem:[%s3 + $0x160] sm:$0xff]
      %v385 = vld [vmem:[%s3 + $0x168] sm:$0xff]
      %v386 = vld [vmem:[%s3 + $0x170] sm:$0xff]
      %v387 = vld [vmem:[%s3 + $0x178] sm:$0xff]
      %v388 = vld [vmem:[%s3 + $0x180] sm:$0xff]
      %v389 = vld [vmem:[%s3 + $0x188] sm:$0xff]
      %v390 = vld [vmem:[%s3 + $0x190] sm:$0xff]
      %v391 = vld [vmem:[%s3 + $0x198] sm:$0xff]
      %v392 = vld [vmem:[%s3 + $0x1a0] sm:$0xff]
      %v393 = vld [vmem:[%s3 + $0x1a8] sm:$0xff]
      %v394 = vld [vmem:[%s3 + $0x1b0] sm:$0xff]
      %v395 = vld [vmem:[%s3 + $0x1b8] sm:$0xff]
      %v396 = vld [vmem:[%s3 + $0x1c0] sm:$0xff]
      %v397 = vld [vmem:[%s3 + $0x1c8] sm:$0xff]
      %v398 = vld [vmem:[%s3 + $0x1d0] sm:$0xff]
      %v399 = vld [vmem:[%s3 + $0x1d8] sm:$0xff]
      %v400 = vld [vmem:[%s3 + $0x1e0] sm:$0xff]
      %v401 = vld [vmem:[%s3 + $0x1e8] sm:$0xff]
      %v402 = vld [vmem:[%s3 + $0x1f0] sm:$0xff]
      %v403 = vld [vmem:[%s3 + $0x1f8] sm:$0xff]
      %v404 = vld [vmem:[%s3 + $0x200] sm:$0xff]
      %v405 = vld [vmem:[%s3 + $0x208] sm:$0xff]
      %v406 = vld [vmem:[%s3 + $0x210] sm:$0xff]
      %v407 = vld [vmem:[%s3 + $0x218] sm:$0xff]
      %v408 = vld [vmem:[%s3 + $0x220] sm:$0xff]
      %v409 = vld [vmem:[%s3 + $0x228] sm:$0xff]
      %v410 = vld [vmem:[%s3 + $0x230] sm:$0xff]
      %v411 = vld [vmem:[%s3 + $0x238] sm:$0xff]
      %v412 = vld [vmem:[%s3 + $0x240] sm:$0xff]
      %v413 = vld [vmem:[%s3 + $0x248] sm:$0xff]
      %v414 = vld [vmem:[%s3 + $0x250] sm:$0xff]
      %v415 = vld [vmem:[%s3 + $0x258] sm:$0xff]
      %v416 = vld [vmem:[%s3 + $0x260] sm:$0xff]
      %v417 = vld [vmem:[%s3 + $0x268] sm:$0xff]
      %v418 = vld [vmem:[%s3 + $0x270] sm:$0xff]
      %v419 = vld [vmem:[%s3 + $0x278] sm:$0xff]
      %v420 = vld [vmem:[%s3 + $0x280] sm:$0xff]
      %v421 = vld [vmem:[%s3 + $0x288] sm:$0xff]
      %v422 = vld [vmem:[%s3 + $0x290] sm:$0xff]
      %v423 = vld [vmem:[%s3 + $0x298] sm:$0xff]
      %v424 = vld [vmem:[%s3 + $0x2a0] sm:$0xff]
      %v425 = vld [vmem:[%s3 + $0x2a8] sm:$0xff]
      %v426 = vld [vmem:[%s3 + $0x2b0] sm:$0xff]
      %v427 = vld [vmem:[%s3 + $0x2b8] sm:$0xff]
      %v428 = vld [vmem:[%s3 + $0x2c0] sm:$0xff]
      %v429 = vld [vmem:[%s3 + $0x2c8] sm:$0xff]
      %v430 = vld [vmem:[%s3 + $0x2d0] sm:$0xff]
      %v431 = vld [vmem:[%s3 + $0x2d8] sm:$0xff]
      %v432 = vld [vmem:[%s3 + $0x2e0] sm:$0xff]
      %v433 = vld [vmem:[%s3 + $0x2e8] sm:$0xff]
      %v434 = vld [vmem:[%s3 + $0x2f0] sm:$0xff]
      %v435 = vld [vmem:[%s3 + $0x2f8] sm:$0xff]
      %v436 = vld [vmem:[%s3 + $0x300] sm:$0xff]
      %v437 = vld [vmem:[%s3 + $0x308] sm:$0xff]
      %v438 = vld [vmem:[%s3 + $0x310] sm:$0xff]
      %v439 = vld [vmem:[%s3 + $0x318] sm:$0xff]
      %v440 = vld [vmem:[%s3 + $0x320] sm:$0xff]
      %v441 = vld [vmem:[%s3 + $0x328] sm:$0xff]
      %v442 = vld [vmem:[%s3 + $0x330] sm:$0xff]
      %v443 = vld [vmem:[%s3 + $0x338] sm:$0xff]
      %v444 = vld [vmem:[%s3 + $0x340] sm:$0xff]
      %v445 = vld [vmem:[%s3 + $0x348] sm:$0xff]
      %v446 = vld [vmem:[%s3 + $0x350] sm:$0xff]
      %v447 = vld [vmem:[%s3 + $0x358] sm:$0xff]
      %v448 = vld [vmem:[%s3 + $0x360] sm:$0xff]
      %v449 = vld [vmem:[%s3 + $0x368] sm:$0xff]
      %v450 = vld [vmem:[%s3 + $0x370] sm:$0xff]
      %v451 = vld [vmem:[%s3 + $0x378] sm:$0xff]
      %v452 = vld [vmem:[%s3 + $0x380] sm:$0xff]
      %v453 = vld [vmem:[%s3 + $0x388] sm:$0xff]
      %v454 = vld [vmem:[%s3 + $0x390] sm:$0xff]
      %v455 = vld [vmem:[%s3 + $0x398] sm:$0xff]
      %v456 = vld [vmem:[%s3 + $0x3a0] sm:$0xff]
      %v457 = vld [vmem:[%s3 + $0x3a8] sm:$0xff]
      %v458 = vld [vmem:[%s3 + $0x3b0] sm:$0xff]
      %v459 = vld [vmem:[%s3 + $0x3b8] sm:$0xff]
      %v460 = vld [vmem:[%s3 + $0x3c0] sm:$0xff]
      %v461 = vld [vmem:[%s3 + $0x3c8] sm:$0xff]
      %v462 = vld [vmem:[%s3 + $0x3d0] sm:$0xff]
      %v463 = vld [vmem:[%s3 + $0x3d8] sm:$0xff]
      %v464 = vld [vmem:[%s3 + $0x3e0] sm:$0xff]
      %v465 = vld [vmem:[%s3 + $0x3e8] sm:$0xff]
      %v466 = vld [vmem:[%s3 + $0x3f0] sm:$0xff]
      %v467 = vld [vmem:[%s3 + $0x3f8] sm:$0xff]
      %v468 = vld [vmem:[%s3 + $0x400] sm:$0xff]
      %v469 = vld [vmem:[%s3 + $0x408] sm:$0xff]
      %v470 = vld [vmem:[%s3 + $0x410] sm:$0xff]
      %v471 = vld [vmem:[%s3 + $0x418] sm:$0xff]
      %v472 = vld [vmem:[%s3 + $0x420] sm:$0xff]
      %v473 = vld [vmem:[%s3 + $0x428] sm:$0xff]
      %v474 = vld [vmem:[%s3 + $0x430] sm:$0xff]
      %v475 = vld [vmem:[%s3 + $0x438] sm:$0xff]
      %v476 = vld [vmem:[%s3 + $0x440] sm:$0xff]
      %v477 = vld [vmem:[%s3 + $0x448] sm:$0xff]
      %v478 = vld [vmem:[%s3 + $0x450] sm:$0xff]
      %v479 = vld [vmem:[%s3 + $0x458] sm:$0xff]
      %v480 = vld [vmem:[%s3 + $0x460] sm:$0xff]
      %v481 = vld [vmem:[%s3 + $0x468] sm:$0xff]
      %v482 = vld [vmem:[%s3 + $0x470] sm:$0xff]
      %v483 = vld [vmem:[%s3 + $0x478] sm:$0xff]
      %v484 = vld [vmem:[%s3 + $0x480] sm:$0xff]
      %v485 = vld [vmem:[%s3 + $0x488] sm:$0xff]
      %v486 = vld [vmem:[%s3 + $0x490] sm:$0xff]
      %v487 = vld [vmem:[%s3 + $0x498] sm:$0xff]
      %v488 = vld [vmem:[%s3 + $0x4a0] sm:$0xff]
      %v489 = vld [vmem:[%s3 + $0x4a8] sm:$0xff]
      %v490 = vld [vmem:[%s3 + $0x4b0] sm:$0xff]
      %v491 = vld [vmem:[%s3 + $0x4b8] sm:$0xff]
      %v492 = vld [vmem:[%s3 + $0x4c0] sm:$0xff]
      %v493 = vld [vmem:[%s3 + $0x4c8] sm:$0xff]
      %v494 = vld [vmem:[%s3 + $0x4d0] sm:$0xff]
      %v495 = vld [vmem:[%s3 + $0x4d8] sm:$0xff]
      %v496 = vld [vmem:[%s3 + $0x4e0] sm:$0xff]
      %v497 = vld [vmem:[%s3 + $0x4e8] sm:$0xff]
      %v498 = vld [vmem:[%s3 + $0x4f0] sm:$0xff]
      %v499 = vld [vmem:[%s3 + $0x4f8] sm:$0xff]
      %v500 = vld [vmem:[%s3 + $0x500] sm:$0xff]
      %v501 = vld [vmem:[%s3 + $0x508] sm:$0xff]
      %v502 = vld [vmem:[%s3 + $0x510] sm:$0xff]
      %v503 = vld [vmem:[%s3 + $0x518] sm:$0xff]
      %v504 = vld [vmem:[%s3 + $0x520] sm:$0xff]
      %v505 = vld [vmem:[%s3 + $0x528] sm:$0xff]
      %v506 = vld [vmem:[%s3 + $0x530] sm:$0xff]
      %v507 = vld [vmem:[%s3 + $0x538] sm:$0xff]
      %v508 = vld [vmem:[%s3 + $0x540] sm:$0xff]
      %v509 = vld [vmem:[%s3 + $0x548] sm:$0xff]
      %v510 = vld [vmem:[%s3 + $0x550] sm:$0xff]
      %v511 = vld [vmem:[%s3 + $0x558] sm:$0xff]
      %v512 = vld [vmem:[%s3 + $0x560] sm:$0xff]
      %v513 = vld [vmem:[%s3 + $0x568] sm:$0xff]
      %v514 = vld [vmem:[%s3 + $0x570] sm:$0xff]
      %v515 = vld [vmem:[%s3 + $0x578] sm:$0xff]
      %v516 = vld [vmem:[%s3 + $0x580] sm:$0xff]
      %v517 = vld [vmem:[%s3 + $0x588] sm:$0xff]
      %v518 = vld [vmem:[%s3 + $0x590] sm:$0xff]
      %v519 = vld [vmem:[%s3 + $0x598] sm:$0xff]
      %v520 = vld [vmem:[%s3 + $0x5a0] sm:$0xff]
      %v521 = vld [vmem:[%s3 + $0x5a8] sm:$0xff]
      %v522 = vld [vmem:[%s3 + $0x5b0] sm:$0xff]
      %v523 = vld [vmem:[%s3 + $0x5b8] sm:$0xff]
      %v524 = vld [vmem:[%s3 + $0x5c0] sm:$0xff]
      %v525 = vld [vmem:[%s3 + $0x5c8] sm:$0xff]
      %v526 = vld [vmem:[%s3 + $0x5d0] sm:$0xff]
      %v527 = vld [vmem:[%s3 + $0x5d8] sm:$0xff]
      %v528 = vld [vmem:[%s3 + $0x5e0] sm:$0xff]
      %v529 = vld [vmem:[%s3 + $0x5e8] sm:$0xff]
      %v530 = vld [vmem:[%s3 + $0x5f0] sm:$0xff]
      %v531 = vld [vmem:[%s3 + $0x5f8] sm:$0xff]
      %v532 = vld [vmem:[%s4] sm:$0xff]
      %v533 = vld [vmem:[%s4 + $0x8] sm:$0xff]
      %v534 = vld [vmem:[%s7] sm:$0xff]
      %v535 = vld [vmem:[%s7 + $0x8] sm:$0xff]
      %s536 = smul.u32 %s19, 8
      %s537 = ssub.s32 15, %s536
      %v538 = vld [vmem:[%s308] sm:$0xff]
      %v539 = vld [vmem:[%s308 + $0x8] sm:$0xff]
      %v540 = vld [vmem:[%s308 + $0x10] sm:$0xff]
      %s541 = scalar_lea.vmem %s316, 168
      %v542 = vld [vmem:[%s541] sm:$0xff]
      %v543 = vld [vmem:[%s541 + $0x8] sm:$0xff]
      %v544 = vld [vmem:[%s541 + $0x10] sm:$0xff]
      %545 = vmatpush.msra.mxu0 %v430
      %546 = vmatpush.msra.mxu0 %v424
      %547 = vmatpush.msra.mxu0 %v418
      %548 = vmatpush.msra.mxu0 %v412
      %549 = vmatpush.msra.mxu0 %v406
      %550 = vmatpush.msra.mxu0 %v400
      %551 = vmatpush.msra.mxu0 %v394
      %552 = vmatpush.msra.mxu0 %v388
      %553 = vmatpush.msra.mxu0 %v382
      %554 = vmatpush.msra.mxu0 %v376
      %555 = vmatpush.msra.mxu0 %v370
      %556 = vmatpush.msra.mxu0 %v364
      %557 = vmatpush.msra.mxu0 %v358
      %558 = vmatpush.msra.mxu0 %v352
      %559 = vmatpush.msra.mxu0 %v346
      %560 = vmatpush.msra.mxu0 %v340
      %561 = vmatmul.f32.gmra.mxu0 %v534
      %v562 = vpop.f32.mrf.mxu0
      %v563 = vadd.f32 0.0, %v562
      %564 = vdwg.mxu0
      %565 = vmatpush.msra.mxu0 %v526
      %566 = vmatpush.msra.mxu0 %v520
      %567 = vmatpush.msra.mxu0 %v514
      %568 = vmatpush.msra.mxu0 %v508
      %569 = vmatpush.msra.mxu0 %v502
      %570 = vmatpush.msra.mxu0 %v496
      %571 = vmatpush.msra.mxu0 %v490
      %572 = vmatpush.msra.mxu0 %v484
      %573 = vmatpush.msra.mxu0 %v478
      %574 = vmatpush.msra.mxu0 %v472
      %575 = vmatpush.msra.mxu0 %v466
      %576 = vmatpush.msra.mxu0 %v460
      %577 = vmatpush.msra.mxu0 %v454
      %578 = vmatpush.msra.mxu0 %v448
      %579 = vmatpush.msra.mxu0 %v442
      %580 = vmatpush.msra.mxu0 %v436
      %581 = vmatmul.f32.gmra.mxu0 %v535
      %v582 = vpop.f32.mrf.mxu0
      %v583 = vadd.f32 %v563, %v582
      %584 = vdwg.mxu0
      %585 = vmatpush.msra.mxu0 %v431
      %586 = vmatpush.msra.mxu0 %v425
      %587 = vmatpush.msra.mxu0 %v419
      %588 = vmatpush.msra.mxu0 %v413
      %589 = vmatpush.msra.mxu0 %v407
      %590 = vmatpush.msra.mxu0 %v401
      %591 = vmatpush.msra.mxu0 %v395
      %592 = vmatpush.msra.mxu0 %v389
      %593 = vmatpush.msra.mxu0 %v383
      %594 = vmatpush.msra.mxu0 %v377
      %595 = vmatpush.msra.mxu0 %v371
      %596 = vmatpush.msra.mxu0 %v365
      %597 = vmatpush.msra.mxu0 %v359
      %598 = vmatpush.msra.mxu0 %v353
      %599 = vmatpush.msra.mxu0 %v347
      %600 = vmatpush.msra.mxu0 %v341
      %601 = vmatmul.f32.gmra.mxu0 %v534
      %v602 = vpop.f32.mrf.mxu0
      %v603 = vadd.f32 0.0, %v602
      %604 = vdwg.mxu0
      %605 = vmatpush.msra.mxu0 %v527
      %606 = vmatpush.msra.mxu0 %v521
      %607 = vmatpush.msra.mxu0 %v515
      %608 = vmatpush.msra.mxu0 %v509
      %609 = vmatpush.msra.mxu0 %v503
      %610 = vmatpush.msra.mxu0 %v497
      %611 = vmatpush.msra.mxu0 %v491
      %612 = vmatpush.msra.mxu0 %v485
      %613 = vmatpush.msra.mxu0 %v479
      %614 = vmatpush.msra.mxu0 %v473
      %615 = vmatpush.msra.mxu0 %v467
      %616 = vmatpush.msra.mxu0 %v461
      %617 = vmatpush.msra.mxu0 %v455
      %618 = vmatpush.msra.mxu0 %v449
      %619 = vmatpush.msra.mxu0 %v443
      %620 = vmatpush.msra.mxu0 %v437
      %621 = vmatmul.f32.gmra.mxu0 %v535
      %v622 = vpop.f32.mrf.mxu0
      %v623 = vadd.f32 %v603, %v622
      %624 = vdwg.mxu0
      %625 = vmatpush.msra.mxu0 %v432
      %626 = vmatpush.msra.mxu0 %v426
      %627 = vmatpush.msra.mxu0 %v420
      %628 = vmatpush.msra.mxu0 %v414
      %629 = vmatpush.msra.mxu0 %v408
      %630 = vmatpush.msra.mxu0 %v402
      %631 = vmatpush.msra.mxu0 %v396
      %632 = vmatpush.msra.mxu0 %v390
      %633 = vmatpush.msra.mxu0 %v384
      %634 = vmatpush.msra.mxu0 %v378
      %635 = vmatpush.msra.mxu0 %v372
      %636 = vmatpush.msra.mxu0 %v366
      %637 = vmatpush.msra.mxu0 %v360
      %638 = vmatpush.msra.mxu0 %v354
      %639 = vmatpush.msra.mxu0 %v348
      %640 = vmatpush.msra.mxu0 %v342
      %641 = vmatmul.f32.gmra.mxu0 %v534
      %v642 = vpop.f32.mrf.mxu0
      %v643 = vadd.f32 0.0, %v642
      %644 = vdwg.mxu0
      %645 = vmatpush.msra.mxu0 %v528
      %646 = vmatpush.msra.mxu0 %v522
      %647 = vmatpush.msra.mxu0 %v516
      %648 = vmatpush.msra.mxu0 %v510
      %649 = vmatpush.msra.mxu0 %v504
      %650 = vmatpush.msra.mxu0 %v498
      %651 = vmatpush.msra.mxu0 %v492
      %652 = vmatpush.msra.mxu0 %v486
      %653 = vmatpush.msra.mxu0 %v480
      %654 = vmatpush.msra.mxu0 %v474
      %655 = vmatpush.msra.mxu0 %v468
      %656 = vmatpush.msra.mxu0 %v462
      %657 = vmatpush.msra.mxu0 %v456
      %658 = vmatpush.msra.mxu0 %v450
      %659 = vmatpush.msra.mxu0 %v444
      %660 = vmatpush.msra.mxu0 %v438
      %661 = vmatmul.f32.gmra.mxu0 %v535
      %v662 = vpop.f32.mrf.mxu0
      %v663 = vadd.f32 %v643, %v662
      %664 = vdwg.mxu0
      %665 = vmatpush.msra.mxu0 %v433
      %666 = vmatpush.msra.mxu0 %v427
      %667 = vmatpush.msra.mxu0 %v421
      %668 = vmatpush.msra.mxu0 %v415
      %669 = vmatpush.msra.mxu0 %v409
      %670 = vmatpush.msra.mxu0 %v403
      %671 = vmatpush.msra.mxu0 %v397
      %672 = vmatpush.msra.mxu0 %v391
      %673 = vmatpush.msra.mxu0 %v385
      %674 = vmatpush.msra.mxu0 %v379
      %675 = vmatpush.msra.mxu0 %v373
      %676 = vmatpush.msra.mxu0 %v367
      %677 = vmatpush.msra.mxu0 %v361
      %678 = vmatpush.msra.mxu0 %v355
      %679 = vmatpush.msra.mxu0 %v349
      %680 = vmatpush.msra.mxu0 %v343
      %681 = vmatmul.f32.gmra.mxu0 %v534
      %v682 = vpop.f32.mrf.mxu0
      %v683 = vadd.f32 0.0, %v682
      %684 = vdwg.mxu0
      %685 = vmatpush.msra.mxu0 %v529
      %686 = vmatpush.msra.mxu0 %v523
      %687 = vmatpush.msra.mxu0 %v517
      %688 = vmatpush.msra.mxu0 %v511
      %689 = vmatpush.msra.mxu0 %v505
      %690 = vmatpush.msra.mxu0 %v499
      %691 = vmatpush.msra.mxu0 %v493
      %692 = vmatpush.msra.mxu0 %v487
      %693 = vmatpush.msra.mxu0 %v481
      %694 = vmatpush.msra.mxu0 %v475
      %695 = vmatpush.msra.mxu0 %v469
      %696 = vmatpush.msra.mxu0 %v463
      %697 = vmatpush.msra.mxu0 %v457
      %698 = vmatpush.msra.mxu0 %v451
      %699 = vmatpush.msra.mxu0 %v445
      %700 = vmatpush.msra.mxu0 %v439
      %701 = vmatmul.f32.gmra.mxu0 %v535
      %v702 = vpop.f32.mrf.mxu0
      %v703 = vadd.f32 %v683, %v702
      %704 = vdwg.mxu0
      %705 = vmatpush.msra.mxu0 %v434
      %706 = vmatpush.msra.mxu0 %v428
      %707 = vmatpush.msra.mxu0 %v422
      %708 = vmatpush.msra.mxu0 %v416
      %709 = vmatpush.msra.mxu0 %v410
      %710 = vmatpush.msra.mxu0 %v404
      %711 = vmatpush.msra.mxu0 %v398
      %712 = vmatpush.msra.mxu0 %v392
      %713 = vmatpush.msra.mxu0 %v386
      %714 = vmatpush.msra.mxu0 %v380
      %715 = vmatpush.msra.mxu0 %v374
      %716 = vmatpush.msra.mxu0 %v368
      %717 = vmatpush.msra.mxu0 %v362
      %718 = vmatpush.msra.mxu0 %v356
      %719 = vmatpush.msra.mxu0 %v350
      %720 = vmatpush.msra.mxu0 %v344
      %721 = vmatmul.f32.gmra.mxu0 %v534
      %v722 = vpop.f32.mrf.mxu0
      %v723 = vadd.f32 0.0, %v722
      %724 = vdwg.mxu0
      %725 = vmatpush.msra.mxu0 %v530
      %726 = vmatpush.msra.mxu0 %v524
      %727 = vmatpush.msra.mxu0 %v518
      %728 = vmatpush.msra.mxu0 %v512
      %729 = vmatpush.msra.mxu0 %v506
      %730 = vmatpush.msra.mxu0 %v500
      %731 = vmatpush.msra.mxu0 %v494
      %732 = vmatpush.msra.mxu0 %v488
      %733 = vmatpush.msra.mxu0 %v482
      %734 = vmatpush.msra.mxu0 %v476
      %735 = vmatpush.msra.mxu0 %v470
      %736 = vmatpush.msra.mxu0 %v464
      %737 = vmatpush.msra.mxu0 %v458
      %738 = vmatpush.msra.mxu0 %v452
      %739 = vmatpush.msra.mxu0 %v446
      %740 = vmatpush.msra.mxu0 %v440
      %741 = vmatmul.f32.gmra.mxu0 %v535
      %v742 = vpop.f32.mrf.mxu0
      %v743 = vadd.f32 %v723, %v742
      %744 = vdwg.mxu0
      %745 = vmatpush.msra.mxu0 %v435
      %746 = vmatpush.msra.mxu0 %v429
      %747 = vmatpush.msra.mxu0 %v423
      %748 = vmatpush.msra.mxu0 %v417
      %749 = vmatpush.msra.mxu0 %v411
      %750 = vmatpush.msra.mxu0 %v405
      %751 = vmatpush.msra.mxu0 %v399
      %752 = vmatpush.msra.mxu0 %v393
      %753 = vmatpush.msra.mxu0 %v387
      %754 = vmatpush.msra.mxu0 %v381
      %755 = vmatpush.msra.mxu0 %v375
      %756 = vmatpush.msra.mxu0 %v369
      %757 = vmatpush.msra.mxu0 %v363
      %758 = vmatpush.msra.mxu0 %v357
      %759 = vmatpush.msra.mxu0 %v351
      %760 = vmatpush.msra.mxu0 %v345
      %761 = vmatmul.f32.gmra.mxu0 %v534
      %v762 = vpop.f32.mrf.mxu0
      %v763 = vadd.f32 0.0, %v762
      %764 = vdwg.mxu0
      %765 = vmatpush.msra.mxu0 %v531
      %766 = vmatpush.msra.mxu0 %v525
      %767 = vmatpush.msra.mxu0 %v519
      %768 = vmatpush.msra.mxu0 %v513
      %769 = vmatpush.msra.mxu0 %v507
      %770 = vmatpush.msra.mxu0 %v501
      %771 = vmatpush.msra.mxu0 %v495
      %772 = vmatpush.msra.mxu0 %v489
      %773 = vmatpush.msra.mxu0 %v483
      %774 = vmatpush.msra.mxu0 %v477
      %775 = vmatpush.msra.mxu0 %v471
      %776 = vmatpush.msra.mxu0 %v465
      %777 = vmatpush.msra.mxu0 %v459
      %778 = vmatpush.msra.mxu0 %v453
      %779 = vmatpush.msra.mxu0 %v447
      %780 = vmatpush.msra.mxu0 %v441
      %781 = vmatmul.f32.gmra.mxu0 %v535
      %v782 = vpop.f32.mrf.mxu0
      %v783 = vadd.f32 %v763, %v782
      %784 = vdwg.mxu0
      %v785 = vadd.f32 %v538, %v583
      %v786 = vxor.u32 %v785, 2147483648
      %v787 = vmul.f32 %v786, 1.442695
      %v788 = vpow.pop %v787
      %v789 = vadd.f32 %v788, 1.0
      %v790 = vrcp.pop %v789
      %v791 = vmul.f32 %v789, %v790
      %v792 = vsub.f32 1.0, %v791
      %v793 = vmul.f32 %v790, %v792
      %v794 = vadd.f32 %v790, %v793
      %vm795 = vweird.f32 %v789
      %vm796 = vweird.f32 %v790
      %vm797 = vmor %vm795, %vm796
      %v798 = vsel %vm797, %v790, %v794
      %v799 = vand.u32 2147483647, %v789
      %vm800 = vcmp.eq.f32.partialorder %v799, 8.507059e+37
      %v801 = vand.u32 %v789, 2147483648
      %v802 = vor.u32 1.1754944e-38, %v801
      %v803 = vsel %vm800, %v802, %v798
      %v804 = vmul.f32 1.0, %v803
      %v805 = vadd.f32 %v539, %v623
      %v806 = vxor.u32 %v805, 2147483648
      %v807 = vmul.f32 %v806, 1.442695
      %v808 = vpow.pop %v807
      %v809 = vadd.f32 %v808, 1.0
      %v810 = vrcp.pop %v809
      %v811 = vmul.f32 %v809, %v810
      %v812 = vsub.f32 1.0, %v811
      %v813 = vmul.f32 %v810, %v812
      %v814 = vadd.f32 %v810, %v813
      %vm815 = vweird.f32 %v809
      %vm816 = vweird.f32 %v810
      %vm817 = vmor %vm815, %vm816
      %v818 = vsel %vm817, %v810, %v814
      %v819 = vand.u32 2147483647, %v809
      %vm820 = vcmp.eq.f32.partialorder %v819, 8.507059e+37
      %v821 = vand.u32 %v809, 2147483648
      %v822 = vor.u32 1.1754944e-38, %v821
      %v823 = vsel %vm820, %v822, %v818
      %v824 = vmul.f32 1.0, %v823
      %v825 = vadd.f32 %v663, %v532
      %v826 = vmul.f32 %v804, %v825
      %v827 = vadd.f32 %v540, %v826
      %v828 = vtanh.pop %v827
      %v829 = vsub.f32 1.0, %v824
      %v830 = vmul.f32 %v829, %v828
      %v831 = vmul.f32 %v824, %v534
      %v832 = vadd.f32 %v830, %v831
      %v833 = vadd.f32 %v542, %v703
      %v834 = vxor.u32 %v833, 2147483648
      %v835 = vmul.f32 %v834, 1.442695
      %v836 = vpow.pop %v835
      %v837 = vadd.f32 %v836, 1.0
      %v838 = vrcp.pop %v837
      %v839 = vmul.f32 %v837, %v838
      %v840 = vsub.f32 1.0, %v839
      %v841 = vmul.f32 %v838, %v840
      %v842 = vadd.f32 %v838, %v841
      %vm843 = vweird.f32 %v837
      %vm844 = vweird.f32 %v838
      %vm845 = vmor %vm843, %vm844
      %v846 = vsel %vm845, %v838, %v842
      %v847 = vand.u32 2147483647, %v837
      %vm848 = vcmp.eq.f32.partialorder %v847, 8.507059e+37
      %v849 = vand.u32 %v837, 2147483648
      %v850 = vor.u32 1.1754944e-38, %v849
      %v851 = vsel %vm848, %v850, %v846
      %v852 = vmul.f32 1.0, %v851
      %v853 = vadd.f32 %v543, %v743
      %v854 = vxor.u32 %v853, 2147483648
      %v855 = vmul.f32 %v854, 1.442695
      %v856 = vpow.pop %v855
      %v857 = vadd.f32 %v856, 1.0
      %v858 = vrcp.pop %v857
      %v859 = vmul.f32 %v857, %v858
      %v860 = vsub.f32 1.0, %v859
      %v861 = vmul.f32 %v858, %v860
      %v862 = vadd.f32 %v858, %v861
      %vm863 = vweird.f32 %v857
      %vm864 = vweird.f32 %v858
      %vm865 = vmor %vm863, %vm864
      %v866 = vsel %vm865, %v858, %v862
      %v867 = vand.u32 2147483647, %v857
      %vm868 = vcmp.eq.f32.partialorder %v867, 8.507059e+37
      %v869 = vand.u32 %v857, 2147483648
      %v870 = vor.u32 1.1754944e-38, %v869
      %v871 = vsel %vm868, %v870, %v866
      %v872 = vmul.f32 1.0, %v871
      %v873 = vadd.f32 %v783, %v533
      %v874 = vmul.f32 %v852, %v873
      %v875 = vadd.f32 %v544, %v874
      %v876 = vtanh.pop %v875
      %v877 = vsub.f32 1.0, %v872
      %v878 = vmul.f32 %v877, %v876
      %v879 = vmul.f32 %v872, %v535
      %v880 = vadd.f32 %v878, %v879
      %v881 = vstv %s536
      %vm882 = vcmp.lt.s32.totalorder %v881, %v339
      %v883 = vstv %s537
      %vm884 = vcmp.lt.s32.totalorder %v883, %v339
      %v885 = vsel %vm882, %v832, 0.0
      %886 = vst [vmem:[%s323] sm:$0xff] %v885
      %v887 = vsel %vm884, %v880, 0.0
      %s888 = scalar_lea.vmem %s330, 56
      %889 = vst [vmem:[%s888] sm:$0xff] %v887
      %v890 = vsel %vm882, %v832, %v534
      %v891 = vsel %vm884, %v880, %v535
      %s892 = sadd.s32 %s536, 1
      %s893 = ssub.s32 14, %s536
      %s894 = scalar_lea.vmem %s308, 24
      %v895 = vld [vmem:[%s894] sm:$0xff]
      %v896 = vld [vmem:[%s894 + $0x8] sm:$0xff]
      %v897 = vld [vmem:[%s894 + $0x10] sm:$0xff]
      %s898 = scalar_lea.vmem %s316, 144
      %v899 = vld [vmem:[%s898] sm:$0xff]
      %v900 = vld [vmem:[%s898 + $0x8] sm:$0xff]
      %v901 = vld [vmem:[%s898 + $0x10] sm:$0xff]
      %902 = vmatpush.msra.mxu0 %v430
      %903 = vmatpush.msra.mxu0 %v424
      %904 = vmatpush.msra.mxu0 %v418
      %905 = vmatpush.msra.mxu0 %v412
      %906 = vmatpush.msra.mxu0 %v406
      %907 = vmatpush.msra.mxu0 %v400
      %908 = vmatpush.msra.mxu0 %v394
      %909 = vmatpush.msra.mxu0 %v388
      %910 = vmatpush.msra.mxu0 %v382
      %911 = vmatpush.msra.mxu0 %v376
      %912 = vmatpush.msra.mxu0 %v370
      %913 = vmatpush.msra.mxu0 %v364
      %914 = vmatpush.msra.mxu0 %v358
      %915 = vmatpush.msra.mxu0 %v352
      %916 = vmatpush.msra.mxu0 %v346
      %917 = vmatpush.msra.mxu0 %v340
      %918 = vmatmul.f32.gmra.mxu0 %v890
      %v919 = vpop.f32.mrf.mxu0
      %v920 = vadd.f32 0.0, %v919
      %921 = vdwg.mxu0
      %922 = vmatpush.msra.mxu0 %v526
      %923 = vmatpush.msra.mxu0 %v520
      %924 = vmatpush.msra.mxu0 %v514
      %925 = vmatpush.msra.mxu0 %v508
      %926 = vmatpush.msra.mxu0 %v502
      %927 = vmatpush.msra.mxu0 %v496
      %928 = vmatpush.msra.mxu0 %v490
      %929 = vmatpush.msra.mxu0 %v484
      %930 = vmatpush.msra.mxu0 %v478
      %931 = vmatpush.msra.mxu0 %v472
      %932 = vmatpush.msra.mxu0 %v466
      %933 = vmatpush.msra.mxu0 %v460
      %934 = vmatpush.msra.mxu0 %v454
      %935 = vmatpush.msra.mxu0 %v448
      %936 = vmatpush.msra.mxu0 %v442
      %937 = vmatpush.msra.mxu0 %v436
      %938 = vmatmul.f32.gmra.mxu0 %v891
      %v939 = vpop.f32.mrf.mxu0
      %v940 = vadd.f32 %v920, %v939
      %941 = vdwg.mxu0
      %942 = vmatpush.msra.mxu0 %v431
      %943 = vmatpush.msra.mxu0 %v425
      %944 = vmatpush.msra.mxu0 %v419
      %945 = vmatpush.msra.mxu0 %v413
      %946 = vmatpush.msra.mxu0 %v407
      %947 = vmatpush.msra.mxu0 %v401
      %948 = vmatpush.msra.mxu0 %v395
      %949 = vmatpush.msra.mxu0 %v389
      %950 = vmatpush.msra.mxu0 %v383
      %951 = vmatpush.msra.mxu0 %v377
      %952 = vmatpush.msra.mxu0 %v371
      %953 = vmatpush.msra.mxu0 %v365
      %954 = vmatpush.msra.mxu0 %v359
      %955 = vmatpush.msra.mxu0 %v353
      %956 = vmatpush.msra.mxu0 %v347
      %957 = vmatpush.msra.mxu0 %v341
      %958 = vmatmul.f32.gmra.mxu0 %v890
      %v959 = vpop.f32.mrf.mxu0
      %v960 = vadd.f32 0.0, %v959
      %961 = vdwg.mxu0
      %962 = vmatpush.msra.mxu0 %v527
      %963 = vmatpush.msra.mxu0 %v521
      %964 = vmatpush.msra.mxu0 %v515
      %965 = vmatpush.msra.mxu0 %v509
      %966 = vmatpush.msra.mxu0 %v503
      %967 = vmatpush.msra.mxu0 %v497
      %968 = vmatpush.msra.mxu0 %v491
      %969 = vmatpush.msra.mxu0 %v485
      %970 = vmatpush.msra.mxu0 %v479
      %971 = vmatpush.msra.mxu0 %v473
      %972 = vmatpush.msra.mxu0 %v467
      %973 = vmatpush.msra.mxu0 %v461
      %974 = vmatpush.msra.mxu0 %v455
      %975 = vmatpush.msra.mxu0 %v449
      %976 = vmatpush.msra.mxu0 %v443
      %977 = vmatpush.msra.mxu0 %v437
      %978 = vmatmul.f32.gmra.mxu0 %v891
      %v979 = vpop.f32.mrf.mxu0
      %v980 = vadd.f32 %v960, %v979
      %981 = vdwg.mxu0
      %982 = vmatpush.msra.mxu0 %v432
      %983 = vmatpush.msra.mxu0 %v426
      %984 = vmatpush.msra.mxu0 %v420
      %985 = vmatpush.msra.mxu0 %v414
      %986 = vmatpush.msra.mxu0 %v408
      %987 = vmatpush.msra.mxu0 %v402
      %988 = vmatpush.msra.mxu0 %v396
      %989 = vmatpush.msra.mxu0 %v390
      %990 = vmatpush.msra.mxu0 %v384
      %991 = vmatpush.msra.mxu0 %v378
      %992 = vmatpush.msra.mxu0 %v372
      %993 = vmatpush.msra.mxu0 %v366
      %994 = vmatpush.msra.mxu0 %v360
      %995 = vmatpush.msra.mxu0 %v354
      %996 = vmatpush.msra.mxu0 %v348
      %997 = vmatpush.msra.mxu0 %v342
      %998 = vmatmul.f32.gmra.mxu0 %v890
      %v999 = vpop.f32.mrf.mxu0
      %v1000 = vadd.f32 0.0, %v999
      %1001 = vdwg.mxu0
      %1002 = vmatpush.msra.mxu0 %v528
      %1003 = vmatpush.msra.mxu0 %v522
      %1004 = vmatpush.msra.mxu0 %v516
      %1005 = vmatpush.msra.mxu0 %v510
      %1006 = vmatpush.msra.mxu0 %v504
      %1007 = vmatpush.msra.mxu0 %v498
      %1008 = vmatpush.msra.mxu0 %v492
      %1009 = vmatpush.msra.mxu0 %v486
      %1010 = vmatpush.msra.mxu0 %v480
      %1011 = vmatpush.msra.mxu0 %v474
      %1012 = vmatpush.msra.mxu0 %v468
      %1013 = vmatpush.msra.mxu0 %v462
      %1014 = vmatpush.msra.mxu0 %v456
      %1015 = vmatpush.msra.mxu0 %v450
      %1016 = vmatpush.msra.mxu0 %v444
      %1017 = vmatpush.msra.mxu0 %v438
      %1018 = vmatmul.f32.gmra.mxu0 %v891
      %v1019 = vpop.f32.mrf.mxu0
      %v1020 = vadd.f32 %v1000, %v1019
      %1021 = vdwg.mxu0
      %1022 = vmatpush.msra.mxu0 %v433
      %1023 = vmatpush.msra.mxu0 %v427
      %1024 = vmatpush.msra.mxu0 %v421
      %1025 = vmatpush.msra.mxu0 %v415
      %1026 = vmatpush.msra.mxu0 %v409
      %1027 = vmatpush.msra.mxu0 %v403
      %1028 = vmatpush.msra.mxu0 %v397
      %1029 = vmatpush.msra.mxu0 %v391
      %1030 = vmatpush.msra.mxu0 %v385
      %1031 = vmatpush.msra.mxu0 %v379
      %1032 = vmatpush.msra.mxu0 %v373
      %1033 = vmatpush.msra.mxu0 %v367
      %1034 = vmatpush.msra.mxu0 %v361
      %1035 = vmatpush.msra.mxu0 %v355
      %1036 = vmatpush.msra.mxu0 %v349
      %1037 = vmatpush.msra.mxu0 %v343
      %1038 = vmatmul.f32.gmra.mxu0 %v890
      %v1039 = vpop.f32.mrf.mxu0
      %v1040 = vadd.f32 0.0, %v1039
      %1041 = vdwg.mxu0
      %1042 = vmatpush.msra.mxu0 %v529
      %1043 = vmatpush.msra.mxu0 %v523
      %1044 = vmatpush.msra.mxu0 %v517
      %1045 = vmatpush.msra.mxu0 %v511
      %1046 = vmatpush.msra.mxu0 %v505
      %1047 = vmatpush.msra.mxu0 %v499
      %1048 = vmatpush.msra.mxu0 %v493
      %1049 = vmatpush.msra.mxu0 %v487
      %1050 = vmatpush.msra.mxu0 %v481
      %1051 = vmatpush.msra.mxu0 %v475
      %1052 = vmatpush.msra.mxu0 %v469
      %1053 = vmatpush.msra.mxu0 %v463
      %1054 = vmatpush.msra.mxu0 %v457
      %1055 = vmatpush.msra.mxu0 %v451
      %1056 = vmatpush.msra.mxu0 %v445
      %1057 = vmatpush.msra.mxu0 %v439
      %1058 = vmatmul.f32.gmra.mxu0 %v891
      %v1059 = vpop.f32.mrf.mxu0
      %v1060 = vadd.f32 %v1040, %v1059
      %1061 = vdwg.mxu0
      %1062 = vmatpush.msra.mxu0 %v434
      %1063 = vmatpush.msra.mxu0 %v428
      %1064 = vmatpush.msra.mxu0 %v422
      %1065 = vmatpush.msra.mxu0 %v416
      %1066 = vmatpush.msra.mxu0 %v410
      %1067 = vmatpush.msra.mxu0 %v404
      %1068 = vmatpush.msra.mxu0 %v398
      %1069 = vmatpush.msra.mxu0 %v392
      %1070 = vmatpush.msra.mxu0 %v386
      %1071 = vmatpush.msra.mxu0 %v380
      %1072 = vmatpush.msra.mxu0 %v374
      %1073 = vmatpush.msra.mxu0 %v368
      %1074 = vmatpush.msra.mxu0 %v362
      %1075 = vmatpush.msra.mxu0 %v356
      %1076 = vmatpush.msra.mxu0 %v350
      %1077 = vmatpush.msra.mxu0 %v344
      %1078 = vmatmul.f32.gmra.mxu0 %v890
      %v1079 = vpop.f32.mrf.mxu0
      %v1080 = vadd.f32 0.0, %v1079
      %1081 = vdwg.mxu0
      %1082 = vmatpush.msra.mxu0 %v530
      %1083 = vmatpush.msra.mxu0 %v524
      %1084 = vmatpush.msra.mxu0 %v518
      %1085 = vmatpush.msra.mxu0 %v512
      %1086 = vmatpush.msra.mxu0 %v506
      %1087 = vmatpush.msra.mxu0 %v500
      %1088 = vmatpush.msra.mxu0 %v494
      %1089 = vmatpush.msra.mxu0 %v488
      %1090 = vmatpush.msra.mxu0 %v482
      %1091 = vmatpush.msra.mxu0 %v476
      %1092 = vmatpush.msra.mxu0 %v470
      %1093 = vmatpush.msra.mxu0 %v464
      %1094 = vmatpush.msra.mxu0 %v458
      %1095 = vmatpush.msra.mxu0 %v452
      %1096 = vmatpush.msra.mxu0 %v446
      %1097 = vmatpush.msra.mxu0 %v440
      %1098 = vmatmul.f32.gmra.mxu0 %v891
      %v1099 = vpop.f32.mrf.mxu0
      %v1100 = vadd.f32 %v1080, %v1099
      %1101 = vdwg.mxu0
      %1102 = vmatpush.msra.mxu0 %v435
      %1103 = vmatpush.msra.mxu0 %v429
      %1104 = vmatpush.msra.mxu0 %v423
      %1105 = vmatpush.msra.mxu0 %v417
      %1106 = vmatpush.msra.mxu0 %v411
      %1107 = vmatpush.msra.mxu0 %v405
      %1108 = vmatpush.msra.mxu0 %v399
      %1109 = vmatpush.msra.mxu0 %v393
      %1110 = vmatpush.msra.mxu0 %v387
      %1111 = vmatpush.msra.mxu0 %v381
      %1112 = vmatpush.msra.mxu0 %v375
      %1113 = vmatpush.msra.mxu0 %v369
      %1114 = vmatpush.msra.mxu0 %v363
      %1115 = vmatpush.msra.mxu0 %v357
      %1116 = vmatpush.msra.mxu0 %v351
      %1117 = vmatpush.msra.mxu0 %v345
      %1118 = vmatmul.f32.gmra.mxu0 %v890
      %v1119 = vpop.f32.mrf.mxu0
      %v1120 = vadd.f32 0.0, %v1119
      %1121 = vdwg.mxu0
      %1122 = vmatpush.msra.mxu0 %v531
      %1123 = vmatpush.msra.mxu0 %v525
      %1124 = vmatpush.msra.mxu0 %v519
      %1125 = vmatpush.msra.mxu0 %v513
      %1126 = vmatpush.msra.mxu0 %v507
      %1127 = vmatpush.msra.mxu0 %v501
      %1128 = vmatpush.msra.mxu0 %v495
      %1129 = vmatpush.msra.mxu0 %v489
      %1130 = vmatpush.msra.mxu0 %v483
      %1131 = vmatpush.msra.mxu0 %v477
      %1132 = vmatpush.msra.mxu0 %v471
      %1133 = vmatpush.msra.mxu0 %v465
      %1134 = vmatpush.msra.mxu0 %v459
      %1135 = vmatpush.msra.mxu0 %v453
      %1136 = vmatpush.msra.mxu0 %v447
      %1137 = vmatpush.msra.mxu0 %v441
      %1138 = vmatmul.f32.gmra.mxu0 %v891
      %v1139 = vpop.f32.mrf.mxu0
      %v1140 = vadd.f32 %v1120, %v1139
      %1141 = vdwg.mxu0
      %v1142 = vadd.f32 %v895, %v940
      %v1143 = vxor.u32 %v1142, 2147483648
      %v1144 = vmul.f32 %v1143, 1.442695
      %v1145 = vpow.pop %v1144
      %v1146 = vadd.f32 %v1145, 1.0
      %v1147 = vrcp.pop %v1146
      %v1148 = vmul.f32 %v1146, %v1147
      %v1149 = vsub.f32 1.0, %v1148
      %v1150 = vmul.f32 %v1147, %v1149
      %v1151 = vadd.f32 %v1147, %v1150
      %vm1152 = vweird.f32 %v1146
      %vm1153 = vweird.f32 %v1147
      %vm1154 = vmor %vm1152, %vm1153
      %v1155 = vsel %vm1154, %v1147, %v1151
      %v1156 = vand.u32 2147483647, %v1146
      %vm1157 = vcmp.eq.f32.partialorder %v1156, 8.507059e+37
      %v1158 = vand.u32 %v1146, 2147483648
      %v1159 = vor.u32 1.1754944e-38, %v1158
      %v1160 = vsel %vm1157, %v1159, %v1155
      %v1161 = vmul.f32 1.0, %v1160
      %v1162 = vadd.f32 %v896, %v980
      %v1163 = vxor.u32 %v1162, 2147483648
      %v1164 = vmul.f32 %v1163, 1.442695
      %v1165 = vpow.pop %v1164
      %v1166 = vadd.f32 %v1165, 1.0
      %v1167 = vrcp.pop %v1166
      %v1168 = vmul.f32 %v1166, %v1167
      %v1169 = vsub.f32 1.0, %v1168
      %v1170 = vmul.f32 %v1167, %v1169
      %v1171 = vadd.f32 %v1167, %v1170
      %vm1172 = vweird.f32 %v1166
      %vm1173 = vweird.f32 %v1167
      %vm1174 = vmor %vm1172, %vm1173
      %v1175 = vsel %vm1174, %v1167, %v1171
      %v1176 = vand.u32 2147483647, %v1166
      %vm1177 = vcmp.eq.f32.partialorder %v1176, 8.507059e+37
      %v1178 = vand.u32 %v1166, 2147483648
      %v1179 = vor.u32 1.1754944e-38, %v1178
      %v1180 = vsel %vm1177, %v1179, %v1175
      %v1181 = vmul.f32 1.0, %v1180
      %v1182 = vadd.f32 %v1020, %v532
      %v1183 = vmul.f32 %v1161, %v1182
      %v1184 = vadd.f32 %v897, %v1183
      %v1185 = vtanh.pop %v1184
      %v1186 = vsub.f32 1.0, %v1181
      %v1187 = vmul.f32 %v1186, %v1185
      %v1188 = vmul.f32 %v1181, %v890
      %v1189 = vadd.f32 %v1187, %v1188
      %v1190 = vadd.f32 %v899, %v1060
      %v1191 = vxor.u32 %v1190, 2147483648
      %v1192 = vmul.f32 %v1191, 1.442695
      %v1193 = vpow.pop %v1192
      %v1194 = vadd.f32 %v1193, 1.0
      %v1195 = vrcp.pop %v1194
      %v1196 = vmul.f32 %v1194, %v1195
      %v1197 = vsub.f32 1.0, %v1196
      %v1198 = vmul.f32 %v1195, %v1197
      %v1199 = vadd.f32 %v1195, %v1198
      %vm1200 = vweird.f32 %v1194
      %vm1201 = vweird.f32 %v1195
      %vm1202 = vmor %vm1200, %vm1201
      %v1203 = vsel %vm1202, %v1195, %v1199
      %v1204 = vand.u32 2147483647, %v1194
      %vm1205 = vcmp.eq.f32.partialorder %v1204, 8.507059e+37
      %v1206 = vand.u32 %v1194, 2147483648
      %v1207 = vor.u32 1.1754944e-38, %v1206
      %v1208 = vsel %vm1205, %v1207, %v1203
      %v1209 = vmul.f32 1.0, %v1208
      %v1210 = vadd.f32 %v900, %v1100
      %v1211 = vxor.u32 %v1210, 2147483648
      %v1212 = vmul.f32 %v1211, 1.442695
      %v1213 = vpow.pop %v1212
      %v1214 = vadd.f32 %v1213, 1.0
      %v1215 = vrcp.pop %v1214
      %v1216 = vmul.f32 %v1214, %v1215
      %v1217 = vsub.f32 1.0, %v1216
      %v1218 = vmul.f32 %v1215, %v1217
      %v1219 = vadd.f32 %v1215, %v1218
      %vm1220 = vweird.f32 %v1214
      %vm1221 = vweird.f32 %v1215
      %vm1222 = vmor %vm1220, %vm1221
      %v1223 = vsel %vm1222, %v1215, %v1219
      %v1224 = vand.u32 2147483647, %v1214
      %vm1225 = vcmp.eq.f32.partialorder %v1224, 8.507059e+37
      %v1226 = vand.u32 %v1214, 2147483648
      %v1227 = vor.u32 1.1754944e-38, %v1226
      %v1228 = vsel %vm1225, %v1227, %v1223
      %v1229 = vmul.f32 1.0, %v1228
      %v1230 = vadd.f32 %v1140, %v533
      %v1231 = vmul.f32 %v1209, %v1230
      %v1232 = vadd.f32 %v901, %v1231
      %v1233 = vtanh.pop %v1232
      %v1234 = vsub.f32 1.0, %v1229
      %v1235 = vmul.f32 %v1234, %v1233
      %v1236 = vmul.f32 %v1229, %v891
      %v1237 = vadd.f32 %v1235, %v1236
      %v1238 = vstv %s892
      %vm1239 = vcmp.lt.s32.totalorder %v1238, %v339
      %v1240 = vstv %s893
      %vm1241 = vcmp.lt.s32.totalorder %v1240, %v339
      %v1242 = vsel %vm1239, %v1189, 0.0
      %s1243 = scalar_lea.vmem %s323, 8
      %1244 = vst [vmem:[%s1243] sm:$0xff] %v1242
      %v1245 = vsel %vm1241, %v1237, 0.0
      %s1246 = scalar_lea.vmem %s330, 48
      %1247 = vst [vmem:[%s1246] sm:$0xff] %v1245
      %v1248 = vsel %vm1239, %v1189, %v890
      %v1249 = vsel %vm1241, %v1237, %v891
      %s1250 = sadd.s32 %s536, 2
      %s1251 = ssub.s32 13, %s536
      %s1252 = scalar_lea.vmem %s308, 48
      %v1253 = vld [vmem:[%s1252] sm:$0xff]
      %v1254 = vld [vmem:[%s1252 + $0x8] sm:$0xff]
      %v1255 = vld [vmem:[%s1252 + $0x10] sm:$0xff]
      %s1256 = scalar_lea.vmem %s316, 120
      %v1257 = vld [vmem:[%s1256] sm:$0xff]
      %v1258 = vld [vmem:[%s1256 + $0x8] sm:$0xff]
      %v1259 = vld [vmem:[%s1256 + $0x10] sm:$0xff]
      %1260 = vmatpush.msra.mxu0 %v430
      %1261 = vmatpush.msra.mxu0 %v424
      %1262 = vmatpush.msra.mxu0 %v418
      %1263 = vmatpush.msra.mxu0 %v412
      %1264 = vmatpush.msra.mxu0 %v406
      %1265 = vmatpush.msra.mxu0 %v400
      %1266 = vmatpush.msra.mxu0 %v394
      %1267 = vmatpush.msra.mxu0 %v388
      %1268 = vmatpush.msra.mxu0 %v382
      %1269 = vmatpush.msra.mxu0 %v376
      %1270 = vmatpush.msra.mxu0 %v370
      %1271 = vmatpush.msra.mxu0 %v364
      %1272 = vmatpush.msra.mxu0 %v358
      %1273 = vmatpush.msra.mxu0 %v352
      %1274 = vmatpush.msra.mxu0 %v346
      %1275 = vmatpush.msra.mxu0 %v340
      %1276 = vmatmul.f32.gmra.mxu0 %v1248
      %v1277 = vpop.f32.mrf.mxu0
      %v1278 = vadd.f32 0.0, %v1277
      %1279 = vdwg.mxu0
      %1280 = vmatpush.msra.mxu0 %v526
      %1281 = vmatpush.msra.mxu0 %v520
      %1282 = vmatpush.msra.mxu0 %v514
      %1283 = vmatpush.msra.mxu0 %v508
      %1284 = vmatpush.msra.mxu0 %v502
      %1285 = vmatpush.msra.mxu0 %v496
      %1286 = vmatpush.msra.mxu0 %v490
      %1287 = vmatpush.msra.mxu0 %v484
      %1288 = vmatpush.msra.mxu0 %v478
      %1289 = vmatpush.msra.mxu0 %v472
      %1290 = vmatpush.msra.mxu0 %v466
      %1291 = vmatpush.msra.mxu0 %v460
      %1292 = vmatpush.msra.mxu0 %v454
      %1293 = vmatpush.msra.mxu0 %v448
      %1294 = vmatpush.msra.mxu0 %v442
      %1295 = vmatpush.msra.mxu0 %v436
      %1296 = vmatmul.f32.gmra.mxu0 %v1249
      %v1297 = vpop.f32.mrf.mxu0
      %v1298 = vadd.f32 %v1278, %v1297
      %1299 = vdwg.mxu0
      %1300 = vmatpush.msra.mxu0 %v431
      %1301 = vmatpush.msra.mxu0 %v425
      %1302 = vmatpush.msra.mxu0 %v419
      %1303 = vmatpush.msra.mxu0 %v413
      %1304 = vmatpush.msra.mxu0 %v407
      %1305 = vmatpush.msra.mxu0 %v401
      %1306 = vmatpush.msra.mxu0 %v395
      %1307 = vmatpush.msra.mxu0 %v389
      %1308 = vmatpush.msra.mxu0 %v383
      %1309 = vmatpush.msra.mxu0 %v377
      %1310 = vmatpush.msra.mxu0 %v371
      %1311 = vmatpush.msra.mxu0 %v365
      %1312 = vmatpush.msra.mxu0 %v359
      %1313 = vmatpush.msra.mxu0 %v353
      %1314 = vmatpush.msra.mxu0 %v347
      %1315 = vmatpush.msra.mxu0 %v341
      %1316 = vmatmul.f32.gmra.mxu0 %v1248
      %v1317 = vpop.f32.mrf.mxu0
      %v1318 = vadd.f32 0.0, %v1317
      %1319 = vdwg.mxu0
      %1320 = vmatpush.msra.mxu0 %v527
      %1321 = vmatpush.msra.mxu0 %v521
      %1322 = vmatpush.msra.mxu0 %v515
      %1323 = vmatpush.msra.mxu0 %v509
      %1324 = vmatpush.msra.mxu0 %v503
      %1325 = vmatpush.msra.mxu0 %v497
      %1326 = vmatpush.msra.mxu0 %v491
      %1327 = vmatpush.msra.mxu0 %v485
      %1328 = vmatpush.msra.mxu0 %v479
      %1329 = vmatpush.msra.mxu0 %v473
      %1330 = vmatpush.msra.mxu0 %v467
      %1331 = vmatpush.msra.mxu0 %v461
      %1332 = vmatpush.msra.mxu0 %v455
      %1333 = vmatpush.msra.mxu0 %v449
      %1334 = vmatpush.msra.mxu0 %v443
      %1335 = vmatpush.msra.mxu0 %v437
      %1336 = vmatmul.f32.gmra.mxu0 %v1249
      %v1337 = vpop.f32.mrf.mxu0
      %v1338 = vadd.f32 %v1318, %v1337
      %1339 = vdwg.mxu0
      %1340 = vmatpush.msra.mxu0 %v432
      %1341 = vmatpush.msra.mxu0 %v426
      %1342 = vmatpush.msra.mxu0 %v420
      %1343 = vmatpush.msra.mxu0 %v414
      %1344 = vmatpush.msra.mxu0 %v408
      %1345 = vmatpush.msra.mxu0 %v402
      %1346 = vmatpush.msra.mxu0 %v396
      %1347 = vmatpush.msra.mxu0 %v390
      %1348 = vmatpush.msra.mxu0 %v384
      %1349 = vmatpush.msra.mxu0 %v378
      %1350 = vmatpush.msra.mxu0 %v372
      %1351 = vmatpush.msra.mxu0 %v366
      %1352 = vmatpush.msra.mxu0 %v360
      %1353 = vmatpush.msra.mxu0 %v354
      %1354 = vmatpush.msra.mxu0 %v348
      %1355 = vmatpush.msra.mxu0 %v342
      %1356 = vmatmul.f32.gmra.mxu0 %v1248
      %v1357 = vpop.f32.mrf.mxu0
      %v1358 = vadd.f32 0.0, %v1357
      %1359 = vdwg.mxu0
      %1360 = vmatpush.msra.mxu0 %v528
      %1361 = vmatpush.msra.mxu0 %v522
      %1362 = vmatpush.msra.mxu0 %v516
      %1363 = vmatpush.msra.mxu0 %v510
      %1364 = vmatpush.msra.mxu0 %v504
      %1365 = vmatpush.msra.mxu0 %v498
      %1366 = vmatpush.msra.mxu0 %v492
      %1367 = vmatpush.msra.mxu0 %v486
      %1368 = vmatpush.msra.mxu0 %v480
      %1369 = vmatpush.msra.mxu0 %v474
      %1370 = vmatpush.msra.mxu0 %v468
      %1371 = vmatpush.msra.mxu0 %v462
      %1372 = vmatpush.msra.mxu0 %v456
      %1373 = vmatpush.msra.mxu0 %v450
      %1374 = vmatpush.msra.mxu0 %v444
      %1375 = vmatpush.msra.mxu0 %v438
      %1376 = vmatmul.f32.gmra.mxu0 %v1249
      %v1377 = vpop.f32.mrf.mxu0
      %v1378 = vadd.f32 %v1358, %v1377
      %1379 = vdwg.mxu0
      %1380 = vmatpush.msra.mxu0 %v433
      %1381 = vmatpush.msra.mxu0 %v427
      %1382 = vmatpush.msra.mxu0 %v421
      %1383 = vmatpush.msra.mxu0 %v415
      %1384 = vmatpush.msra.mxu0 %v409
      %1385 = vmatpush.msra.mxu0 %v403
      %1386 = vmatpush.msra.mxu0 %v397
      %1387 = vmatpush.msra.mxu0 %v391
      %1388 = vmatpush.msra.mxu0 %v385
      %1389 = vmatpush.msra.mxu0 %v379
      %1390 = vmatpush.msra.mxu0 %v373
      %1391 = vmatpush.msra.mxu0 %v367
      %1392 = vmatpush.msra.mxu0 %v361
      %1393 = vmatpush.msra.mxu0 %v355
      %1394 = vmatpush.msra.mxu0 %v349
      %1395 = vmatpush.msra.mxu0 %v343
      %1396 = vmatmul.f32.gmra.mxu0 %v1248
      %v1397 = vpop.f32.mrf.mxu0
      %v1398 = vadd.f32 0.0, %v1397
      %1399 = vdwg.mxu0
      %1400 = vmatpush.msra.mxu0 %v529
      %1401 = vmatpush.msra.mxu0 %v523
      %1402 = vmatpush.msra.mxu0 %v517
      %1403 = vmatpush.msra.mxu0 %v511
      %1404 = vmatpush.msra.mxu0 %v505
      %1405 = vmatpush.msra.mxu0 %v499
      %1406 = vmatpush.msra.mxu0 %v493
      %1407 = vmatpush.msra.mxu0 %v487
      %1408 = vmatpush.msra.mxu0 %v481
      %1409 = vmatpush.msra.mxu0 %v475
      %1410 = vmatpush.msra.mxu0 %v469
      %1411 = vmatpush.msra.mxu0 %v463
      %1412 = vmatpush.msra.mxu0 %v457
      %1413 = vmatpush.msra.mxu0 %v451
      %1414 = vmatpush.msra.mxu0 %v445
      %1415 = vmatpush.msra.mxu0 %v439
      %1416 = vmatmul.f32.gmra.mxu0 %v1249
      %v1417 = vpop.f32.mrf.mxu0
      %v1418 = vadd.f32 %v1398, %v1417
      %1419 = vdwg.mxu0
      %1420 = vmatpush.msra.mxu0 %v434
      %1421 = vmatpush.msra.mxu0 %v428
      %1422 = vmatpush.msra.mxu0 %v422
      %1423 = vmatpush.msra.mxu0 %v416
      %1424 = vmatpush.msra.mxu0 %v410
      %1425 = vmatpush.msra.mxu0 %v404
      %1426 = vmatpush.msra.mxu0 %v398
      %1427 = vmatpush.msra.mxu0 %v392
      %1428 = vmatpush.msra.mxu0 %v386
      %1429 = vmatpush.msra.mxu0 %v380
      %1430 = vmatpush.msra.mxu0 %v374
      %1431 = vmatpush.msra.mxu0 %v368
      %1432 = vmatpush.msra.mxu0 %v362
      %1433 = vmatpush.msra.mxu0 %v356
      %1434 = vmatpush.msra.mxu0 %v350
      %1435 = vmatpush.msra.mxu0 %v344
      %1436 = vmatmul.f32.gmra.mxu0 %v1248
      %v1437 = vpop.f32.mrf.mxu0
      %v1438 = vadd.f32 0.0, %v1437
      %1439 = vdwg.mxu0
      %1440 = vmatpush.msra.mxu0 %v530
      %1441 = vmatpush.msra.mxu0 %v524
      %1442 = vmatpush.msra.mxu0 %v518
      %1443 = vmatpush.msra.mxu0 %v512
      %1444 = vmatpush.msra.mxu0 %v506
      %1445 = vmatpush.msra.mxu0 %v500
      %1446 = vmatpush.msra.mxu0 %v494
      %1447 = vmatpush.msra.mxu0 %v488
      %1448 = vmatpush.msra.mxu0 %v482
      %1449 = vmatpush.msra.mxu0 %v476
      %1450 = vmatpush.msra.mxu0 %v470
      %1451 = vmatpush.msra.mxu0 %v464
      %1452 = vmatpush.msra.mxu0 %v458
      %1453 = vmatpush.msra.mxu0 %v452
      %1454 = vmatpush.msra.mxu0 %v446
      %1455 = vmatpush.msra.mxu0 %v440
      %1456 = vmatmul.f32.gmra.mxu0 %v1249
      %v1457 = vpop.f32.mrf.mxu0
      %v1458 = vadd.f32 %v1438, %v1457
      %1459 = vdwg.mxu0
      %1460 = vmatpush.msra.mxu0 %v435
      %1461 = vmatpush.msra.mxu0 %v429
      %1462 = vmatpush.msra.mxu0 %v423
      %1463 = vmatpush.msra.mxu0 %v417
      %1464 = vmatpush.msra.mxu0 %v411
      %1465 = vmatpush.msra.mxu0 %v405
      %1466 = vmatpush.msra.mxu0 %v399
      %1467 = vmatpush.msra.mxu0 %v393
      %1468 = vmatpush.msra.mxu0 %v387
      %1469 = vmatpush.msra.mxu0 %v381
      %1470 = vmatpush.msra.mxu0 %v375
      %1471 = vmatpush.msra.mxu0 %v369
      %1472 = vmatpush.msra.mxu0 %v363
      %1473 = vmatpush.msra.mxu0 %v357
      %1474 = vmatpush.msra.mxu0 %v351
      %1475 = vmatpush.msra.mxu0 %v345
      %1476 = vmatmul.f32.gmra.mxu0 %v1248
      %v1477 = vpop.f32.mrf.mxu0
      %v1478 = vadd.f32 0.0, %v1477
      %1479 = vdwg.mxu0
      %1480 = vmatpush.msra.mxu0 %v531
      %1481 = vmatpush.msra.mxu0 %v525
      %1482 = vmatpush.msra.mxu0 %v519
      %1483 = vmatpush.msra.mxu0 %v513
      %1484 = vmatpush.msra.mxu0 %v507
      %1485 = vmatpush.msra.mxu0 %v501
      %1486 = vmatpush.msra.mxu0 %v495
      %1487 = vmatpush.msra.mxu0 %v489
      %1488 = vmatpush.msra.mxu0 %v483
      %1489 = vmatpush.msra.mxu0 %v477
      %1490 = vmatpush.msra.mxu0 %v471
      %1491 = vmatpush.msra.mxu0 %v465
      %1492 = vmatpush.msra.mxu0 %v459
      %1493 = vmatpush.msra.mxu0 %v453
      %1494 = vmatpush.msra.mxu0 %v447
      %1495 = vmatpush.msra.mxu0 %v441
      %1496 = vmatmul.f32.gmra.mxu0 %v1249
      %v1497 = vpop.f32.mrf.mxu0
      %v1498 = vadd.f32 %v1478, %v1497
      %1499 = vdwg.mxu0
      %v1500 = vadd.f32 %v1253, %v1298
      %v1501 = vxor.u32 %v1500, 2147483648
      %v1502 = vmul.f32 %v1501, 1.442695
      %v1503 = vpow.pop %v1502
      %v1504 = vadd.f32 %v1503, 1.0
      %v1505 = vrcp.pop %v1504
      %v1506 = vmul.f32 %v1504, %v1505
      %v1507 = vsub.f32 1.0, %v1506
      %v1508 = vmul.f32 %v1505, %v1507
      %v1509 = vadd.f32 %v1505, %v1508
      %vm1510 = vweird.f32 %v1504
      %vm1511 = vweird.f32 %v1505
      %vm1512 = vmor %vm1510, %vm1511
      %v1513 = vsel %vm1512, %v1505, %v1509
      %v1514 = vand.u32 2147483647, %v1504
      %vm1515 = vcmp.eq.f32.partialorder %v1514, 8.507059e+37
      %v1516 = vand.u32 %v1504, 2147483648
      %v1517 = vor.u32 1.1754944e-38, %v1516
      %v1518 = vsel %vm1515, %v1517, %v1513
      %v1519 = vmul.f32 1.0, %v1518
      %v1520 = vadd.f32 %v1254, %v1338
      %v1521 = vxor.u32 %v1520, 2147483648
      %v1522 = vmul.f32 %v1521, 1.442695
      %v1523 = vpow.pop %v1522
      %v1524 = vadd.f32 %v1523, 1.0
      %v1525 = vrcp.pop %v1524
      %v1526 = vmul.f32 %v1524, %v1525
      %v1527 = vsub.f32 1.0, %v1526
      %v1528 = vmul.f32 %v1525, %v1527
      %v1529 = vadd.f32 %v1525, %v1528
      %vm1530 = vweird.f32 %v1524
      %vm1531 = vweird.f32 %v1525
      %vm1532 = vmor %vm1530, %vm1531
      %v1533 = vsel %vm1532, %v1525, %v1529
      %v1534 = vand.u32 2147483647, %v1524
      %vm1535 = vcmp.eq.f32.partialorder %v1534, 8.507059e+37
      %v1536 = vand.u32 %v1524, 2147483648
      %v1537 = vor.u32 1.1754944e-38, %v1536
      %v1538 = vsel %vm1535, %v1537, %v1533
      %v1539 = vmul.f32 1.0, %v1538
      %v1540 = vadd.f32 %v1378, %v532
      %v1541 = vmul.f32 %v1519, %v1540
      %v1542 = vadd.f32 %v1255, %v1541
      %v1543 = vtanh.pop %v1542
      %v1544 = vsub.f32 1.0, %v1539
      %v1545 = vmul.f32 %v1544, %v1543
      %v1546 = vmul.f32 %v1539, %v1248
      %v1547 = vadd.f32 %v1545, %v1546
      %v1548 = vadd.f32 %v1257, %v1418
      %v1549 = vxor.u32 %v1548, 2147483648
      %v1550 = vmul.f32 %v1549, 1.442695
      %v1551 = vpow.pop %v1550
      %v1552 = vadd.f32 %v1551, 1.0
      %v1553 = vrcp.pop %v1552
      %v1554 = vmul.f32 %v1552, %v1553
      %v1555 = vsub.f32 1.0, %v1554
      %v1556 = vmul.f32 %v1553, %v1555
      %v1557 = vadd.f32 %v1553, %v1556
      %vm1558 = vweird.f32 %v1552
      %vm1559 = vweird.f32 %v1553
      %vm1560 = vmor %vm1558, %vm1559
      %v1561 = vsel %vm1560, %v1553, %v1557
      %v1562 = vand.u32 2147483647, %v1552
      %vm1563 = vcmp.eq.f32.partialorder %v1562, 8.507059e+37
      %v1564 = vand.u32 %v1552, 2147483648
      %v1565 = vor.u32 1.1754944e-38, %v1564
      %v1566 = vsel %vm1563, %v1565, %v1561
      %v1567 = vmul.f32 1.0, %v1566
      %v1568 = vadd.f32 %v1258, %v1458
      %v1569 = vxor.u32 %v1568, 2147483648
      %v1570 = vmul.f32 %v1569, 1.442695
      %v1571 = vpow.pop %v1570
      %v1572 = vadd.f32 %v1571, 1.0
      %v1573 = vrcp.pop %v1572
      %v1574 = vmul.f32 %v1572, %v1573
      %v1575 = vsub.f32 1.0, %v1574
      %v1576 = vmul.f32 %v1573, %v1575
      %v1577 = vadd.f32 %v1573, %v1576
      %vm1578 = vweird.f32 %v1572
      %vm1579 = vweird.f32 %v1573
      %vm1580 = vmor %vm1578, %vm1579
      %v1581 = vsel %vm1580, %v1573, %v1577
      %v1582 = vand.u32 2147483647, %v1572
      %vm1583 = vcmp.eq.f32.partialorder %v1582, 8.507059e+37
      %v1584 = vand.u32 %v1572, 2147483648
      %v1585 = vor.u32 1.1754944e-38, %v1584
      %v1586 = vsel %vm1583, %v1585, %v1581
      %v1587 = vmul.f32 1.0, %v1586
      %v1588 = vadd.f32 %v1498, %v533
      %v1589 = vmul.f32 %v1567, %v1588
      %v1590 = vadd.f32 %v1259, %v1589
      %v1591 = vtanh.pop %v1590
      %v1592 = vsub.f32 1.0, %v1587
      %v1593 = vmul.f32 %v1592, %v1591
      %v1594 = vmul.f32 %v1587, %v1249
      %v1595 = vadd.f32 %v1593, %v1594
      %v1596 = vstv %s1250
      %vm1597 = vcmp.lt.s32.totalorder %v1596, %v339
      %v1598 = vstv %s1251
      %vm1599 = vcmp.lt.s32.totalorder %v1598, %v339
      %v1600 = vsel %vm1597, %v1547, 0.0
      %s1601 = scalar_lea.vmem %s323, 16
      %1602 = vst [vmem:[%s1601] sm:$0xff] %v1600
      %v1603 = vsel %vm1599, %v1595, 0.0
      %s1604 = scalar_lea.vmem %s330, 40
      %1605 = vst [vmem:[%s1604] sm:$0xff] %v1603
      %v1606 = vsel %vm1597, %v1547, %v1248
      %v1607 = vsel %vm1599, %v1595, %v1249
      %s1608 = sadd.s32 %s536, 3
      %s1609 = ssub.s32 12, %s536
      %s1610 = scalar_lea.vmem %s308, 72
      %v1611 = vld [vmem:[%s1610] sm:$0xff]
      %v1612 = vld [vmem:[%s1610 + $0x8] sm:$0xff]
      %v1613 = vld [vmem:[%s1610 + $0x10] sm:$0xff]
      %s1614 = scalar_lea.vmem %s316, 96
      %v1615 = vld [vmem:[%s1614] sm:$0xff]
      %v1616 = vld [vmem:[%s1614 + $0x8] sm:$0xff]
      %v1617 = vld [vmem:[%s1614 + $0x10] sm:$0xff]
      %1618 = vmatpush.msra.mxu0 %v430
      %1619 = vmatpush.msra.mxu0 %v424
      %1620 = vmatpush.msra.mxu0 %v418
      %1621 = vmatpush.msra.mxu0 %v412
      %1622 = vmatpush.msra.mxu0 %v406
      %1623 = vmatpush.msra.mxu0 %v400
      %1624 = vmatpush.msra.mxu0 %v394
      %1625 = vmatpush.msra.mxu0 %v388
      %1626 = vmatpush.msra.mxu0 %v382
      %1627 = vmatpush.msra.mxu0 %v376
      %1628 = vmatpush.msra.mxu0 %v370
      %1629 = vmatpush.msra.mxu0 %v364
      %1630 = vmatpush.msra.mxu0 %v358
      %1631 = vmatpush.msra.mxu0 %v352
      %1632 = vmatpush.msra.mxu0 %v346
      %1633 = vmatpush.msra.mxu0 %v340
      %1634 = vmatmul.f32.gmra.mxu0 %v1606
      %v1635 = vpop.f32.mrf.mxu0
      %v1636 = vadd.f32 0.0, %v1635
      %1637 = vdwg.mxu0
      %1638 = vmatpush.msra.mxu0 %v526
      %1639 = vmatpush.msra.mxu0 %v520
      %1640 = vmatpush.msra.mxu0 %v514
      %1641 = vmatpush.msra.mxu0 %v508
      %1642 = vmatpush.msra.mxu0 %v502
      %1643 = vmatpush.msra.mxu0 %v496
      %1644 = vmatpush.msra.mxu0 %v490
      %1645 = vmatpush.msra.mxu0 %v484
      %1646 = vmatpush.msra.mxu0 %v478
      %1647 = vmatpush.msra.mxu0 %v472
      %1648 = vmatpush.msra.mxu0 %v466
      %1649 = vmatpush.msra.mxu0 %v460
      %1650 = vmatpush.msra.mxu0 %v454
      %1651 = vmatpush.msra.mxu0 %v448
      %1652 = vmatpush.msra.mxu0 %v442
      %1653 = vmatpush.msra.mxu0 %v436
      %1654 = vmatmul.f32.gmra.mxu0 %v1607
      %v1655 = vpop.f32.mrf.mxu0
      %v1656 = vadd.f32 %v1636, %v1655
      %1657 = vdwg.mxu0
      %1658 = vmatpush.msra.mxu0 %v431
      %1659 = vmatpush.msra.mxu0 %v425
      %1660 = vmatpush.msra.mxu0 %v419
      %1661 = vmatpush.msra.mxu0 %v413
      %1662 = vmatpush.msra.mxu0 %v407
      %1663 = vmatpush.msra.mxu0 %v401
      %1664 = vmatpush.msra.mxu0 %v395
      %1665 = vmatpush.msra.mxu0 %v389
      %1666 = vmatpush.msra.mxu0 %v383
      %1667 = vmatpush.msra.mxu0 %v377
      %1668 = vmatpush.msra.mxu0 %v371
      %1669 = vmatpush.msra.mxu0 %v365
      %1670 = vmatpush.msra.mxu0 %v359
      %1671 = vmatpush.msra.mxu0 %v353
      %1672 = vmatpush.msra.mxu0 %v347
      %1673 = vmatpush.msra.mxu0 %v341
      %1674 = vmatmul.f32.gmra.mxu0 %v1606
      %v1675 = vpop.f32.mrf.mxu0
      %v1676 = vadd.f32 0.0, %v1675
      %1677 = vdwg.mxu0
      %1678 = vmatpush.msra.mxu0 %v527
      %1679 = vmatpush.msra.mxu0 %v521
      %1680 = vmatpush.msra.mxu0 %v515
      %1681 = vmatpush.msra.mxu0 %v509
      %1682 = vmatpush.msra.mxu0 %v503
      %1683 = vmatpush.msra.mxu0 %v497
      %1684 = vmatpush.msra.mxu0 %v491
      %1685 = vmatpush.msra.mxu0 %v485
      %1686 = vmatpush.msra.mxu0 %v479
      %1687 = vmatpush.msra.mxu0 %v473
      %1688 = vmatpush.msra.mxu0 %v467
      %1689 = vmatpush.msra.mxu0 %v461
      %1690 = vmatpush.msra.mxu0 %v455
      %1691 = vmatpush.msra.mxu0 %v449
      %1692 = vmatpush.msra.mxu0 %v443
      %1693 = vmatpush.msra.mxu0 %v437
      %1694 = vmatmul.f32.gmra.mxu0 %v1607
      %v1695 = vpop.f32.mrf.mxu0
      %v1696 = vadd.f32 %v1676, %v1695
      %1697 = vdwg.mxu0
      %1698 = vmatpush.msra.mxu0 %v432
      %1699 = vmatpush.msra.mxu0 %v426
      %1700 = vmatpush.msra.mxu0 %v420
      %1701 = vmatpush.msra.mxu0 %v414
      %1702 = vmatpush.msra.mxu0 %v408
      %1703 = vmatpush.msra.mxu0 %v402
      %1704 = vmatpush.msra.mxu0 %v396
      %1705 = vmatpush.msra.mxu0 %v390
      %1706 = vmatpush.msra.mxu0 %v384
      %1707 = vmatpush.msra.mxu0 %v378
      %1708 = vmatpush.msra.mxu0 %v372
      %1709 = vmatpush.msra.mxu0 %v366
      %1710 = vmatpush.msra.mxu0 %v360
      %1711 = vmatpush.msra.mxu0 %v354
      %1712 = vmatpush.msra.mxu0 %v348
      %1713 = vmatpush.msra.mxu0 %v342
      %1714 = vmatmul.f32.gmra.mxu0 %v1606
      %v1715 = vpop.f32.mrf.mxu0
      %v1716 = vadd.f32 0.0, %v1715
      %1717 = vdwg.mxu0
      %1718 = vmatpush.msra.mxu0 %v528
      %1719 = vmatpush.msra.mxu0 %v522
      %1720 = vmatpush.msra.mxu0 %v516
      %1721 = vmatpush.msra.mxu0 %v510
      %1722 = vmatpush.msra.mxu0 %v504
      %1723 = vmatpush.msra.mxu0 %v498
      %1724 = vmatpush.msra.mxu0 %v492
      %1725 = vmatpush.msra.mxu0 %v486
      %1726 = vmatpush.msra.mxu0 %v480
      %1727 = vmatpush.msra.mxu0 %v474
      %1728 = vmatpush.msra.mxu0 %v468
      %1729 = vmatpush.msra.mxu0 %v462
      %1730 = vmatpush.msra.mxu0 %v456
      %1731 = vmatpush.msra.mxu0 %v450
      %1732 = vmatpush.msra.mxu0 %v444
      %1733 = vmatpush.msra.mxu0 %v438
      %1734 = vmatmul.f32.gmra.mxu0 %v1607
      %v1735 = vpop.f32.mrf.mxu0
      %v1736 = vadd.f32 %v1716, %v1735
      %1737 = vdwg.mxu0
      %1738 = vmatpush.msra.mxu0 %v433
      %1739 = vmatpush.msra.mxu0 %v427
      %1740 = vmatpush.msra.mxu0 %v421
      %1741 = vmatpush.msra.mxu0 %v415
      %1742 = vmatpush.msra.mxu0 %v409
      %1743 = vmatpush.msra.mxu0 %v403
      %1744 = vmatpush.msra.mxu0 %v397
      %1745 = vmatpush.msra.mxu0 %v391
      %1746 = vmatpush.msra.mxu0 %v385
      %1747 = vmatpush.msra.mxu0 %v379
      %1748 = vmatpush.msra.mxu0 %v373
      %1749 = vmatpush.msra.mxu0 %v367
      %1750 = vmatpush.msra.mxu0 %v361
      %1751 = vmatpush.msra.mxu0 %v355
      %1752 = vmatpush.msra.mxu0 %v349
      %1753 = vmatpush.msra.mxu0 %v343
      %1754 = vmatmul.f32.gmra.mxu0 %v1606
      %v1755 = vpop.f32.mrf.mxu0
      %v1756 = vadd.f32 0.0, %v1755
      %1757 = vdwg.mxu0
      %1758 = vmatpush.msra.mxu0 %v529
      %1759 = vmatpush.msra.mxu0 %v523
      %1760 = vmatpush.msra.mxu0 %v517
      %1761 = vmatpush.msra.mxu0 %v511
      %1762 = vmatpush.msra.mxu0 %v505
      %1763 = vmatpush.msra.mxu0 %v499
      %1764 = vmatpush.msra.mxu0 %v493
      %1765 = vmatpush.msra.mxu0 %v487
      %1766 = vmatpush.msra.mxu0 %v481
      %1767 = vmatpush.msra.mxu0 %v475
      %1768 = vmatpush.msra.mxu0 %v469
      %1769 = vmatpush.msra.mxu0 %v463
      %1770 = vmatpush.msra.mxu0 %v457
      %1771 = vmatpush.msra.mxu0 %v451
      %1772 = vmatpush.msra.mxu0 %v445
      %1773 = vmatpush.msra.mxu0 %v439
      %1774 = vmatmul.f32.gmra.mxu0 %v1607
      %v1775 = vpop.f32.mrf.mxu0
      %v1776 = vadd.f32 %v1756, %v1775
      %1777 = vdwg.mxu0
      %1778 = vmatpush.msra.mxu0 %v434
      %1779 = vmatpush.msra.mxu0 %v428
      %1780 = vmatpush.msra.mxu0 %v422
      %1781 = vmatpush.msra.mxu0 %v416
      %1782 = vmatpush.msra.mxu0 %v410
      %1783 = vmatpush.msra.mxu0 %v404
      %1784 = vmatpush.msra.mxu0 %v398
      %1785 = vmatpush.msra.mxu0 %v392
      %1786 = vmatpush.msra.mxu0 %v386
      %1787 = vmatpush.msra.mxu0 %v380
      %1788 = vmatpush.msra.mxu0 %v374
      %1789 = vmatpush.msra.mxu0 %v368
      %1790 = vmatpush.msra.mxu0 %v362
      %1791 = vmatpush.msra.mxu0 %v356
      %1792 = vmatpush.msra.mxu0 %v350
      %1793 = vmatpush.msra.mxu0 %v344
      %1794 = vmatmul.f32.gmra.mxu0 %v1606
      %v1795 = vpop.f32.mrf.mxu0
      %v1796 = vadd.f32 0.0, %v1795
      %1797 = vdwg.mxu0
      %1798 = vmatpush.msra.mxu0 %v530
      %1799 = vmatpush.msra.mxu0 %v524
      %1800 = vmatpush.msra.mxu0 %v518
      %1801 = vmatpush.msra.mxu0 %v512
      %1802 = vmatpush.msra.mxu0 %v506
      %1803 = vmatpush.msra.mxu0 %v500
      %1804 = vmatpush.msra.mxu0 %v494
      %1805 = vmatpush.msra.mxu0 %v488
      %1806 = vmatpush.msra.mxu0 %v482
      %1807 = vmatpush.msra.mxu0 %v476
      %1808 = vmatpush.msra.mxu0 %v470
      %1809 = vmatpush.msra.mxu0 %v464
      %1810 = vmatpush.msra.mxu0 %v458
      %1811 = vmatpush.msra.mxu0 %v452
      %1812 = vmatpush.msra.mxu0 %v446
      %1813 = vmatpush.msra.mxu0 %v440
      %1814 = vmatmul.f32.gmra.mxu0 %v1607
      %v1815 = vpop.f32.mrf.mxu0
      %v1816 = vadd.f32 %v1796, %v1815
      %1817 = vdwg.mxu0
      %1818 = vmatpush.msra.mxu0 %v435
      %1819 = vmatpush.msra.mxu0 %v429
      %1820 = vmatpush.msra.mxu0 %v423
      %1821 = vmatpush.msra.mxu0 %v417
      %1822 = vmatpush.msra.mxu0 %v411
      %1823 = vmatpush.msra.mxu0 %v405
      %1824 = vmatpush.msra.mxu0 %v399
      %1825 = vmatpush.msra.mxu0 %v393
      %1826 = vmatpush.msra.mxu0 %v387
      %1827 = vmatpush.msra.mxu0 %v381
      %1828 = vmatpush.msra.mxu0 %v375
      %1829 = vmatpush.msra.mxu0 %v369
      %1830 = vmatpush.msra.mxu0 %v363
      %1831 = vmatpush.msra.mxu0 %v357
      %1832 = vmatpush.msra.mxu0 %v351
      %1833 = vmatpush.msra.mxu0 %v345
      %1834 = vmatmul.f32.gmra.mxu0 %v1606
      %v1835 = vpop.f32.mrf.mxu0
      %v1836 = vadd.f32 0.0, %v1835
      %1837 = vdwg.mxu0
      %1838 = vmatpush.msra.mxu0 %v531
      %1839 = vmatpush.msra.mxu0 %v525
      %1840 = vmatpush.msra.mxu0 %v519
      %1841 = vmatpush.msra.mxu0 %v513
      %1842 = vmatpush.msra.mxu0 %v507
      %1843 = vmatpush.msra.mxu0 %v501
      %1844 = vmatpush.msra.mxu0 %v495
      %1845 = vmatpush.msra.mxu0 %v489
      %1846 = vmatpush.msra.mxu0 %v483
      %1847 = vmatpush.msra.mxu0 %v477
      %1848 = vmatpush.msra.mxu0 %v471
      %1849 = vmatpush.msra.mxu0 %v465
      %1850 = vmatpush.msra.mxu0 %v459
      %1851 = vmatpush.msra.mxu0 %v453
      %1852 = vmatpush.msra.mxu0 %v447
      %1853 = vmatpush.msra.mxu0 %v441
      %1854 = vmatmul.f32.gmra.mxu0 %v1607
      %v1855 = vpop.f32.mrf.mxu0
      %v1856 = vadd.f32 %v1836, %v1855
      %1857 = vdwg.mxu0
      %v1858 = vadd.f32 %v1611, %v1656
      %v1859 = vxor.u32 %v1858, 2147483648
      %v1860 = vmul.f32 %v1859, 1.442695
      %v1861 = vpow.pop %v1860
      %v1862 = vadd.f32 %v1861, 1.0
      %v1863 = vrcp.pop %v1862
      %v1864 = vmul.f32 %v1862, %v1863
      %v1865 = vsub.f32 1.0, %v1864
      %v1866 = vmul.f32 %v1863, %v1865
      %v1867 = vadd.f32 %v1863, %v1866
      %vm1868 = vweird.f32 %v1862
      %vm1869 = vweird.f32 %v1863
      %vm1870 = vmor %vm1868, %vm1869
      %v1871 = vsel %vm1870, %v1863, %v1867
      %v1872 = vand.u32 2147483647, %v1862
      %vm1873 = vcmp.eq.f32.partialorder %v1872, 8.507059e+37
      %v1874 = vand.u32 %v1862, 2147483648
      %v1875 = vor.u32 1.1754944e-38, %v1874
      %v1876 = vsel %vm1873, %v1875, %v1871
      %v1877 = vmul.f32 1.0, %v1876
      %v1878 = vadd.f32 %v1612, %v1696
      %v1879 = vxor.u32 %v1878, 2147483648
      %v1880 = vmul.f32 %v1879, 1.442695
      %v1881 = vpow.pop %v1880
      %v1882 = vadd.f32 %v1881, 1.0
      %v1883 = vrcp.pop %v1882
      %v1884 = vmul.f32 %v1882, %v1883
      %v1885 = vsub.f32 1.0, %v1884
      %v1886 = vmul.f32 %v1883, %v1885
      %v1887 = vadd.f32 %v1883, %v1886
      %vm1888 = vweird.f32 %v1882
      %vm1889 = vweird.f32 %v1883
      %vm1890 = vmor %vm1888, %vm1889
      %v1891 = vsel %vm1890, %v1883, %v1887
      %v1892 = vand.u32 2147483647, %v1882
      %vm1893 = vcmp.eq.f32.partialorder %v1892, 8.507059e+37
      %v1894 = vand.u32 %v1882, 2147483648
      %v1895 = vor.u32 1.1754944e-38, %v1894
      %v1896 = vsel %vm1893, %v1895, %v1891
      %v1897 = vmul.f32 1.0, %v1896
      %v1898 = vadd.f32 %v1736, %v532
      %v1899 = vmul.f32 %v1877, %v1898
      %v1900 = vadd.f32 %v1613, %v1899
      %v1901 = vtanh.pop %v1900
      %v1902 = vsub.f32 1.0, %v1897
      %v1903 = vmul.f32 %v1902, %v1901
      %v1904 = vmul.f32 %v1897, %v1606
      %v1905 = vadd.f32 %v1903, %v1904
      %v1906 = vadd.f32 %v1615, %v1776
      %v1907 = vxor.u32 %v1906, 2147483648
      %v1908 = vmul.f32 %v1907, 1.442695
      %v1909 = vpow.pop %v1908
      %v1910 = vadd.f32 %v1909, 1.0
      %v1911 = vrcp.pop %v1910
      %v1912 = vmul.f32 %v1910, %v1911
      %v1913 = vsub.f32 1.0, %v1912
      %v1914 = vmul.f32 %v1911, %v1913
      %v1915 = vadd.f32 %v1911, %v1914
      %vm1916 = vweird.f32 %v1910
      %vm1917 = vweird.f32 %v1911
      %vm1918 = vmor %vm1916, %vm1917
      %v1919 = vsel %vm1918, %v1911, %v1915
      %v1920 = vand.u32 2147483647, %v1910
      %vm1921 = vcmp.eq.f32.partialorder %v1920, 8.507059e+37
      %v1922 = vand.u32 %v1910, 2147483648
      %v1923 = vor.u32 1.1754944e-38, %v1922
      %v1924 = vsel %vm1921, %v1923, %v1919
      %v1925 = vmul.f32 1.0, %v1924
      %v1926 = vadd.f32 %v1616, %v1816
      %v1927 = vxor.u32 %v1926, 2147483648
      %v1928 = vmul.f32 %v1927, 1.442695
      %v1929 = vpow.pop %v1928
      %v1930 = vadd.f32 %v1929, 1.0
      %v1931 = vrcp.pop %v1930
      %v1932 = vmul.f32 %v1930, %v1931
      %v1933 = vsub.f32 1.0, %v1932
      %v1934 = vmul.f32 %v1931, %v1933
      %v1935 = vadd.f32 %v1931, %v1934
      %vm1936 = vweird.f32 %v1930
      %vm1937 = vweird.f32 %v1931
      %vm1938 = vmor %vm1936, %vm1937
      %v1939 = vsel %vm1938, %v1931, %v1935
      %v1940 = vand.u32 2147483647, %v1930
      %vm1941 = vcmp.eq.f32.partialorder %v1940, 8.507059e+37
      %v1942 = vand.u32 %v1930, 2147483648
      %v1943 = vor.u32 1.1754944e-38, %v1942
      %v1944 = vsel %vm1941, %v1943, %v1939
      %v1945 = vmul.f32 1.0, %v1944
      %v1946 = vadd.f32 %v1856, %v533
      %v1947 = vmul.f32 %v1925, %v1946
      %v1948 = vadd.f32 %v1617, %v1947
      %v1949 = vtanh.pop %v1948
      %v1950 = vsub.f32 1.0, %v1945
      %v1951 = vmul.f32 %v1950, %v1949
      %v1952 = vmul.f32 %v1945, %v1607
      %v1953 = vadd.f32 %v1951, %v1952
      %v1954 = vstv %s1608
      %vm1955 = vcmp.lt.s32.totalorder %v1954, %v339
      %v1956 = vstv %s1609
      %vm1957 = vcmp.lt.s32.totalorder %v1956, %v339
      %v1958 = vsel %vm1955, %v1905, 0.0
      %s1959 = scalar_lea.vmem %s323, 24
      %1960 = vst [vmem:[%s1959] sm:$0xff] %v1958
      %v1961 = vsel %vm1957, %v1953, 0.0
      %s1962 = scalar_lea.vmem %s330, 32
      %1963 = vst [vmem:[%s1962] sm:$0xff] %v1961
      %v1964 = vsel %vm1955, %v1905, %v1606
      %v1965 = vsel %vm1957, %v1953, %v1607
      %s1966 = sadd.s32 %s536, 4
      %s1967 = ssub.s32 11, %s536
      %s1968 = scalar_lea.vmem %s308, 96
      %v1969 = vld [vmem:[%s1968] sm:$0xff]
      %v1970 = vld [vmem:[%s1968 + $0x8] sm:$0xff]
      %v1971 = vld [vmem:[%s1968 + $0x10] sm:$0xff]
      %s1972 = scalar_lea.vmem %s316, 72
      %v1973 = vld [vmem:[%s1972] sm:$0xff]
      %v1974 = vld [vmem:[%s1972 + $0x8] sm:$0xff]
      %v1975 = vld [vmem:[%s1972 + $0x10] sm:$0xff]
      %1976 = vmatpush.msra.mxu0 %v430
      %1977 = vmatpush.msra.mxu0 %v424
      %1978 = vmatpush.msra.mxu0 %v418
      %1979 = vmatpush.msra.mxu0 %v412
      %1980 = vmatpush.msra.mxu0 %v406
      %1981 = vmatpush.msra.mxu0 %v400
      %1982 = vmatpush.msra.mxu0 %v394
      %1983 = vmatpush.msra.mxu0 %v388
      %1984 = vmatpush.msra.mxu0 %v382
      %1985 = vmatpush.msra.mxu0 %v376
      %1986 = vmatpush.msra.mxu0 %v370
      %1987 = vmatpush.msra.mxu0 %v364
      %1988 = vmatpush.msra.mxu0 %v358
      %1989 = vmatpush.msra.mxu0 %v352
      %1990 = vmatpush.msra.mxu0 %v346
      %1991 = vmatpush.msra.mxu0 %v340
      %1992 = vmatmul.f32.gmra.mxu0 %v1964
      %v1993 = vpop.f32.mrf.mxu0
      %v1994 = vadd.f32 0.0, %v1993
      %1995 = vdwg.mxu0
      %1996 = vmatpush.msra.mxu0 %v526
      %1997 = vmatpush.msra.mxu0 %v520
      %1998 = vmatpush.msra.mxu0 %v514
      %1999 = vmatpush.msra.mxu0 %v508
      %2000 = vmatpush.msra.mxu0 %v502
      %2001 = vmatpush.msra.mxu0 %v496
      %2002 = vmatpush.msra.mxu0 %v490
      %2003 = vmatpush.msra.mxu0 %v484
      %2004 = vmatpush.msra.mxu0 %v478
      %2005 = vmatpush.msra.mxu0 %v472
      %2006 = vmatpush.msra.mxu0 %v466
      %2007 = vmatpush.msra.mxu0 %v460
      %2008 = vmatpush.msra.mxu0 %v454
      %2009 = vmatpush.msra.mxu0 %v448
      %2010 = vmatpush.msra.mxu0 %v442
      %2011 = vmatpush.msra.mxu0 %v436
      %2012 = vmatmul.f32.gmra.mxu0 %v1965
      %v2013 = vpop.f32.mrf.mxu0
      %v2014 = vadd.f32 %v1994, %v2013
      %2015 = vdwg.mxu0
      %2016 = vmatpush.msra.mxu0 %v431
      %2017 = vmatpush.msra.mxu0 %v425
      %2018 = vmatpush.msra.mxu0 %v419
      %2019 = vmatpush.msra.mxu0 %v413
      %2020 = vmatpush.msra.mxu0 %v407
      %2021 = vmatpush.msra.mxu0 %v401
      %2022 = vmatpush.msra.mxu0 %v395
      %2023 = vmatpush.msra.mxu0 %v389
      %2024 = vmatpush.msra.mxu0 %v383
      %2025 = vmatpush.msra.mxu0 %v377
      %2026 = vmatpush.msra.mxu0 %v371
      %2027 = vmatpush.msra.mxu0 %v365
      %2028 = vmatpush.msra.mxu0 %v359
      %2029 = vmatpush.msra.mxu0 %v353
      %2030 = vmatpush.msra.mxu0 %v347
      %2031 = vmatpush.msra.mxu0 %v341
      %2032 = vmatmul.f32.gmra.mxu0 %v1964
      %v2033 = vpop.f32.mrf.mxu0
      %v2034 = vadd.f32 0.0, %v2033
      %2035 = vdwg.mxu0
      %2036 = vmatpush.msra.mxu0 %v527
      %2037 = vmatpush.msra.mxu0 %v521
      %2038 = vmatpush.msra.mxu0 %v515
      %2039 = vmatpush.msra.mxu0 %v509
      %2040 = vmatpush.msra.mxu0 %v503
      %2041 = vmatpush.msra.mxu0 %v497
      %2042 = vmatpush.msra.mxu0 %v491
      %2043 = vmatpush.msra.mxu0 %v485
      %2044 = vmatpush.msra.mxu0 %v479
      %2045 = vmatpush.msra.mxu0 %v473
      %2046 = vmatpush.msra.mxu0 %v467
      %2047 = vmatpush.msra.mxu0 %v461
      %2048 = vmatpush.msra.mxu0 %v455
      %2049 = vmatpush.msra.mxu0 %v449
      %2050 = vmatpush.msra.mxu0 %v443
      %2051 = vmatpush.msra.mxu0 %v437
      %2052 = vmatmul.f32.gmra.mxu0 %v1965
      %v2053 = vpop.f32.mrf.mxu0
      %v2054 = vadd.f32 %v2034, %v2053
      %2055 = vdwg.mxu0
      %2056 = vmatpush.msra.mxu0 %v432
      %2057 = vmatpush.msra.mxu0 %v426
      %2058 = vmatpush.msra.mxu0 %v420
      %2059 = vmatpush.msra.mxu0 %v414
      %2060 = vmatpush.msra.mxu0 %v408
      %2061 = vmatpush.msra.mxu0 %v402
      %2062 = vmatpush.msra.mxu0 %v396
      %2063 = vmatpush.msra.mxu0 %v390
      %2064 = vmatpush.msra.mxu0 %v384
      %2065 = vmatpush.msra.mxu0 %v378
      %2066 = vmatpush.msra.mxu0 %v372
      %2067 = vmatpush.msra.mxu0 %v366
      %2068 = vmatpush.msra.mxu0 %v360
      %2069 = vmatpush.msra.mxu0 %v354
      %2070 = vmatpush.msra.mxu0 %v348
      %2071 = vmatpush.msra.mxu0 %v342
      %2072 = vmatmul.f32.gmra.mxu0 %v1964
      %v2073 = vpop.f32.mrf.mxu0
      %v2074 = vadd.f32 0.0, %v2073
      %2075 = vdwg.mxu0
      %2076 = vmatpush.msra.mxu0 %v528
      %2077 = vmatpush.msra.mxu0 %v522
      %2078 = vmatpush.msra.mxu0 %v516
      %2079 = vmatpush.msra.mxu0 %v510
      %2080 = vmatpush.msra.mxu0 %v504
      %2081 = vmatpush.msra.mxu0 %v498
      %2082 = vmatpush.msra.mxu0 %v492
      %2083 = vmatpush.msra.mxu0 %v486
      %2084 = vmatpush.msra.mxu0 %v480
      %2085 = vmatpush.msra.mxu0 %v474
      %2086 = vmatpush.msra.mxu0 %v468
      %2087 = vmatpush.msra.mxu0 %v462
      %2088 = vmatpush.msra.mxu0 %v456
      %2089 = vmatpush.msra.mxu0 %v450
      %2090 = vmatpush.msra.mxu0 %v444
      %2091 = vmatpush.msra.mxu0 %v438
      %2092 = vmatmul.f32.gmra.mxu0 %v1965
      %v2093 = vpop.f32.mrf.mxu0
      %v2094 = vadd.f32 %v2074, %v2093
      %2095 = vdwg.mxu0
      %2096 = vmatpush.msra.mxu0 %v433
      %2097 = vmatpush.msra.mxu0 %v427
      %2098 = vmatpush.msra.mxu0 %v421
      %2099 = vmatpush.msra.mxu0 %v415
      %2100 = vmatpush.msra.mxu0 %v409
      %2101 = vmatpush.msra.mxu0 %v403
      %2102 = vmatpush.msra.mxu0 %v397
      %2103 = vmatpush.msra.mxu0 %v391
      %2104 = vmatpush.msra.mxu0 %v385
      %2105 = vmatpush.msra.mxu0 %v379
      %2106 = vmatpush.msra.mxu0 %v373
      %2107 = vmatpush.msra.mxu0 %v367
      %2108 = vmatpush.msra.mxu0 %v361
      %2109 = vmatpush.msra.mxu0 %v355
      %2110 = vmatpush.msra.mxu0 %v349
      %2111 = vmatpush.msra.mxu0 %v343
      %2112 = vmatmul.f32.gmra.mxu0 %v1964
      %v2113 = vpop.f32.mrf.mxu0
      %v2114 = vadd.f32 0.0, %v2113
      %2115 = vdwg.mxu0
      %2116 = vmatpush.msra.mxu0 %v529
      %2117 = vmatpush.msra.mxu0 %v523
      %2118 = vmatpush.msra.mxu0 %v517
      %2119 = vmatpush.msra.mxu0 %v511
      %2120 = vmatpush.msra.mxu0 %v505
      %2121 = vmatpush.msra.mxu0 %v499
      %2122 = vmatpush.msra.mxu0 %v493
      %2123 = vmatpush.msra.mxu0 %v487
      %2124 = vmatpush.msra.mxu0 %v481
      %2125 = vmatpush.msra.mxu0 %v475
      %2126 = vmatpush.msra.mxu0 %v469
      %2127 = vmatpush.msra.mxu0 %v463
      %2128 = vmatpush.msra.mxu0 %v457
      %2129 = vmatpush.msra.mxu0 %v451
      %2130 = vmatpush.msra.mxu0 %v445
      %2131 = vmatpush.msra.mxu0 %v439
      %2132 = vmatmul.f32.gmra.mxu0 %v1965
      %v2133 = vpop.f32.mrf.mxu0
      %v2134 = vadd.f32 %v2114, %v2133
      %2135 = vdwg.mxu0
      %2136 = vmatpush.msra.mxu0 %v434
      %2137 = vmatpush.msra.mxu0 %v428
      %2138 = vmatpush.msra.mxu0 %v422
      %2139 = vmatpush.msra.mxu0 %v416
      %2140 = vmatpush.msra.mxu0 %v410
      %2141 = vmatpush.msra.mxu0 %v404
      %2142 = vmatpush.msra.mxu0 %v398
      %2143 = vmatpush.msra.mxu0 %v392
      %2144 = vmatpush.msra.mxu0 %v386
      %2145 = vmatpush.msra.mxu0 %v380
      %2146 = vmatpush.msra.mxu0 %v374
      %2147 = vmatpush.msra.mxu0 %v368
      %2148 = vmatpush.msra.mxu0 %v362
      %2149 = vmatpush.msra.mxu0 %v356
      %2150 = vmatpush.msra.mxu0 %v350
      %2151 = vmatpush.msra.mxu0 %v344
      %2152 = vmatmul.f32.gmra.mxu0 %v1964
      %v2153 = vpop.f32.mrf.mxu0
      %v2154 = vadd.f32 0.0, %v2153
      %2155 = vdwg.mxu0
      %2156 = vmatpush.msra.mxu0 %v530
      %2157 = vmatpush.msra.mxu0 %v524
      %2158 = vmatpush.msra.mxu0 %v518
      %2159 = vmatpush.msra.mxu0 %v512
      %2160 = vmatpush.msra.mxu0 %v506
      %2161 = vmatpush.msra.mxu0 %v500
      %2162 = vmatpush.msra.mxu0 %v494
      %2163 = vmatpush.msra.mxu0 %v488
      %2164 = vmatpush.msra.mxu0 %v482
      %2165 = vmatpush.msra.mxu0 %v476
      %2166 = vmatpush.msra.mxu0 %v470
      %2167 = vmatpush.msra.mxu0 %v464
      %2168 = vmatpush.msra.mxu0 %v458
      %2169 = vmatpush.msra.mxu0 %v452
      %2170 = vmatpush.msra.mxu0 %v446
      %2171 = vmatpush.msra.mxu0 %v440
      %2172 = vmatmul.f32.gmra.mxu0 %v1965
      %v2173 = vpop.f32.mrf.mxu0
      %v2174 = vadd.f32 %v2154, %v2173
      %2175 = vdwg.mxu0
      %2176 = vmatpush.msra.mxu0 %v435
      %2177 = vmatpush.msra.mxu0 %v429
      %2178 = vmatpush.msra.mxu0 %v423
      %2179 = vmatpush.msra.mxu0 %v417
      %2180 = vmatpush.msra.mxu0 %v411
      %2181 = vmatpush.msra.mxu0 %v405
      %2182 = vmatpush.msra.mxu0 %v399
      %2183 = vmatpush.msra.mxu0 %v393
      %2184 = vmatpush.msra.mxu0 %v387
      %2185 = vmatpush.msra.mxu0 %v381
      %2186 = vmatpush.msra.mxu0 %v375
      %2187 = vmatpush.msra.mxu0 %v369
      %2188 = vmatpush.msra.mxu0 %v363
      %2189 = vmatpush.msra.mxu0 %v357
      %2190 = vmatpush.msra.mxu0 %v351
      %2191 = vmatpush.msra.mxu0 %v345
      %2192 = vmatmul.f32.gmra.mxu0 %v1964
      %v2193 = vpop.f32.mrf.mxu0
      %v2194 = vadd.f32 0.0, %v2193
      %2195 = vdwg.mxu0
      %2196 = vmatpush.msra.mxu0 %v531
      %2197 = vmatpush.msra.mxu0 %v525
      %2198 = vmatpush.msra.mxu0 %v519
      %2199 = vmatpush.msra.mxu0 %v513
      %2200 = vmatpush.msra.mxu0 %v507
      %2201 = vmatpush.msra.mxu0 %v501
      %2202 = vmatpush.msra.mxu0 %v495
      %2203 = vmatpush.msra.mxu0 %v489
      %2204 = vmatpush.msra.mxu0 %v483
      %2205 = vmatpush.msra.mxu0 %v477
      %2206 = vmatpush.msra.mxu0 %v471
      %2207 = vmatpush.msra.mxu0 %v465
      %2208 = vmatpush.msra.mxu0 %v459
      %2209 = vmatpush.msra.mxu0 %v453
      %2210 = vmatpush.msra.mxu0 %v447
      %2211 = vmatpush.msra.mxu0 %v441
      %2212 = vmatmul.f32.gmra.mxu0 %v1965
      %v2213 = vpop.f32.mrf.mxu0
      %v2214 = vadd.f32 %v2194, %v2213
      %2215 = vdwg.mxu0
      %v2216 = vadd.f32 %v1969, %v2014
      %v2217 = vxor.u32 %v2216, 2147483648
      %v2218 = vmul.f32 %v2217, 1.442695
      %v2219 = vpow.pop %v2218
      %v2220 = vadd.f32 %v2219, 1.0
      %v2221 = vrcp.pop %v2220
      %v2222 = vmul.f32 %v2220, %v2221
      %v2223 = vsub.f32 1.0, %v2222
      %v2224 = vmul.f32 %v2221, %v2223
      %v2225 = vadd.f32 %v2221, %v2224
      %vm2226 = vweird.f32 %v2220
      %vm2227 = vweird.f32 %v2221
      %vm2228 = vmor %vm2226, %vm2227
      %v2229 = vsel %vm2228, %v2221, %v2225
      %v2230 = vand.u32 2147483647, %v2220
      %vm2231 = vcmp.eq.f32.partialorder %v2230, 8.507059e+37
      %v2232 = vand.u32 %v2220, 2147483648
      %v2233 = vor.u32 1.1754944e-38, %v2232
      %v2234 = vsel %vm2231, %v2233, %v2229
      %v2235 = vmul.f32 1.0, %v2234
      %v2236 = vadd.f32 %v1970, %v2054
      %v2237 = vxor.u32 %v2236, 2147483648
      %v2238 = vmul.f32 %v2237, 1.442695
      %v2239 = vpow.pop %v2238
      %v2240 = vadd.f32 %v2239, 1.0
      %v2241 = vrcp.pop %v2240
      %v2242 = vmul.f32 %v2240, %v2241
      %v2243 = vsub.f32 1.0, %v2242
      %v2244 = vmul.f32 %v2241, %v2243
      %v2245 = vadd.f32 %v2241, %v2244
      %vm2246 = vweird.f32 %v2240
      %vm2247 = vweird.f32 %v2241
      %vm2248 = vmor %vm2246, %vm2247
      %v2249 = vsel %vm2248, %v2241, %v2245
      %v2250 = vand.u32 2147483647, %v2240
      %vm2251 = vcmp.eq.f32.partialorder %v2250, 8.507059e+37
      %v2252 = vand.u32 %v2240, 2147483648
      %v2253 = vor.u32 1.1754944e-38, %v2252
      %v2254 = vsel %vm2251, %v2253, %v2249
      %v2255 = vmul.f32 1.0, %v2254
      %v2256 = vadd.f32 %v2094, %v532
      %v2257 = vmul.f32 %v2235, %v2256
      %v2258 = vadd.f32 %v1971, %v2257
      %v2259 = vtanh.pop %v2258
      %v2260 = vsub.f32 1.0, %v2255
      %v2261 = vmul.f32 %v2260, %v2259
      %v2262 = vmul.f32 %v2255, %v1964
      %v2263 = vadd.f32 %v2261, %v2262
      %v2264 = vadd.f32 %v1973, %v2134
      %v2265 = vxor.u32 %v2264, 2147483648
      %v2266 = vmul.f32 %v2265, 1.442695
      %v2267 = vpow.pop %v2266
      %v2268 = vadd.f32 %v2267, 1.0
      %v2269 = vrcp.pop %v2268
      %v2270 = vmul.f32 %v2268, %v2269
      %v2271 = vsub.f32 1.0, %v2270
      %v2272 = vmul.f32 %v2269, %v2271
      %v2273 = vadd.f32 %v2269, %v2272
      %vm2274 = vweird.f32 %v2268
      %vm2275 = vweird.f32 %v2269
      %vm2276 = vmor %vm2274, %vm2275
      %v2277 = vsel %vm2276, %v2269, %v2273
      %v2278 = vand.u32 2147483647, %v2268
      %vm2279 = vcmp.eq.f32.partialorder %v2278, 8.507059e+37
      %v2280 = vand.u32 %v2268, 2147483648
      %v2281 = vor.u32 1.1754944e-38, %v2280
      %v2282 = vsel %vm2279, %v2281, %v2277
      %v2283 = vmul.f32 1.0, %v2282
      %v2284 = vadd.f32 %v1974, %v2174
      %v2285 = vxor.u32 %v2284, 2147483648
      %v2286 = vmul.f32 %v2285, 1.442695
      %v2287 = vpow.pop %v2286
      %v2288 = vadd.f32 %v2287, 1.0
      %v2289 = vrcp.pop %v2288
      %v2290 = vmul.f32 %v2288, %v2289
      %v2291 = vsub.f32 1.0, %v2290
      %v2292 = vmul.f32 %v2289, %v2291
      %v2293 = vadd.f32 %v2289, %v2292
      %vm2294 = vweird.f32 %v2288
      %vm2295 = vweird.f32 %v2289
      %vm2296 = vmor %vm2294, %vm2295
      %v2297 = vsel %vm2296, %v2289, %v2293
      %v2298 = vand.u32 2147483647, %v2288
      %vm2299 = vcmp.eq.f32.partialorder %v2298, 8.507059e+37
      %v2300 = vand.u32 %v2288, 2147483648
      %v2301 = vor.u32 1.1754944e-38, %v2300
      %v2302 = vsel %vm2299, %v2301, %v2297
      %v2303 = vmul.f32 1.0, %v2302
      %v2304 = vadd.f32 %v2214, %v533
      %v2305 = vmul.f32 %v2283, %v2304
      %v2306 = vadd.f32 %v1975, %v2305
      %v2307 = vtanh.pop %v2306
      %v2308 = vsub.f32 1.0, %v2303
      %v2309 = vmul.f32 %v2308, %v2307
      %v2310 = vmul.f32 %v2303, %v1965
      %v2311 = vadd.f32 %v2309, %v2310
      %v2312 = vstv %s1966
      %vm2313 = vcmp.lt.s32.totalorder %v2312, %v339
      %v2314 = vstv %s1967
      %vm2315 = vcmp.lt.s32.totalorder %v2314, %v339
      %v2316 = vsel %vm2313, %v2263, 0.0
      %s2317 = scalar_lea.vmem %s323, 32
      %2318 = vst [vmem:[%s2317] sm:$0xff] %v2316
      %v2319 = vsel %vm2315, %v2311, 0.0
      %s2320 = scalar_lea.vmem %s330, 24
      %2321 = vst [vmem:[%s2320] sm:$0xff] %v2319
      %v2322 = vsel %vm2313, %v2263, %v1964
      %v2323 = vsel %vm2315, %v2311, %v1965
      %s2324 = sadd.s32 %s536, 5
      %s2325 = ssub.s32 10, %s536
      %s2326 = scalar_lea.vmem %s308, 120
      %v2327 = vld [vmem:[%s2326] sm:$0xff]
      %v2328 = vld [vmem:[%s2326 + $0x8] sm:$0xff]
      %v2329 = vld [vmem:[%s2326 + $0x10] sm:$0xff]
      %s2330 = scalar_lea.vmem %s316, 48
      %v2331 = vld [vmem:[%s2330] sm:$0xff]
      %v2332 = vld [vmem:[%s2330 + $0x8] sm:$0xff]
      %v2333 = vld [vmem:[%s2330 + $0x10] sm:$0xff]
      %2334 = vmatpush.msra.mxu0 %v430
      %2335 = vmatpush.msra.mxu0 %v424
      %2336 = vmatpush.msra.mxu0 %v418
      %2337 = vmatpush.msra.mxu0 %v412
      %2338 = vmatpush.msra.mxu0 %v406
      %2339 = vmatpush.msra.mxu0 %v400
      %2340 = vmatpush.msra.mxu0 %v394
      %2341 = vmatpush.msra.mxu0 %v388
      %2342 = vmatpush.msra.mxu0 %v382
      %2343 = vmatpush.msra.mxu0 %v376
      %2344 = vmatpush.msra.mxu0 %v370
      %2345 = vmatpush.msra.mxu0 %v364
      %2346 = vmatpush.msra.mxu0 %v358
      %2347 = vmatpush.msra.mxu0 %v352
      %2348 = vmatpush.msra.mxu0 %v346
      %2349 = vmatpush.msra.mxu0 %v340
      %2350 = vmatmul.f32.gmra.mxu0 %v2322
      %v2351 = vpop.f32.mrf.mxu0
      %v2352 = vadd.f32 0.0, %v2351
      %2353 = vdwg.mxu0
      %2354 = vmatpush.msra.mxu0 %v526
      %2355 = vmatpush.msra.mxu0 %v520
      %2356 = vmatpush.msra.mxu0 %v514
      %2357 = vmatpush.msra.mxu0 %v508
      %2358 = vmatpush.msra.mxu0 %v502
      %2359 = vmatpush.msra.mxu0 %v496
      %2360 = vmatpush.msra.mxu0 %v490
      %2361 = vmatpush.msra.mxu0 %v484
      %2362 = vmatpush.msra.mxu0 %v478
      %2363 = vmatpush.msra.mxu0 %v472
      %2364 = vmatpush.msra.mxu0 %v466
      %2365 = vmatpush.msra.mxu0 %v460
      %2366 = vmatpush.msra.mxu0 %v454
      %2367 = vmatpush.msra.mxu0 %v448
      %2368 = vmatpush.msra.mxu0 %v442
      %2369 = vmatpush.msra.mxu0 %v436
      %2370 = vmatmul.f32.gmra.mxu0 %v2323
      %v2371 = vpop.f32.mrf.mxu0
      %v2372 = vadd.f32 %v2352, %v2371
      %2373 = vdwg.mxu0
      %2374 = vmatpush.msra.mxu0 %v431
      %2375 = vmatpush.msra.mxu0 %v425
      %2376 = vmatpush.msra.mxu0 %v419
      %2377 = vmatpush.msra.mxu0 %v413
      %2378 = vmatpush.msra.mxu0 %v407
      %2379 = vmatpush.msra.mxu0 %v401
      %2380 = vmatpush.msra.mxu0 %v395
      %2381 = vmatpush.msra.mxu0 %v389
      %2382 = vmatpush.msra.mxu0 %v383
      %2383 = vmatpush.msra.mxu0 %v377
      %2384 = vmatpush.msra.mxu0 %v371
      %2385 = vmatpush.msra.mxu0 %v365
      %2386 = vmatpush.msra.mxu0 %v359
      %2387 = vmatpush.msra.mxu0 %v353
      %2388 = vmatpush.msra.mxu0 %v347
      %2389 = vmatpush.msra.mxu0 %v341
      %2390 = vmatmul.f32.gmra.mxu0 %v2322
      %v2391 = vpop.f32.mrf.mxu0
      %v2392 = vadd.f32 0.0, %v2391
      %2393 = vdwg.mxu0
      %2394 = vmatpush.msra.mxu0 %v527
      %2395 = vmatpush.msra.mxu0 %v521
      %2396 = vmatpush.msra.mxu0 %v515
      %2397 = vmatpush.msra.mxu0 %v509
      %2398 = vmatpush.msra.mxu0 %v503
      %2399 = vmatpush.msra.mxu0 %v497
      %2400 = vmatpush.msra.mxu0 %v491
      %2401 = vmatpush.msra.mxu0 %v485
      %2402 = vmatpush.msra.mxu0 %v479
      %2403 = vmatpush.msra.mxu0 %v473
      %2404 = vmatpush.msra.mxu0 %v467
      %2405 = vmatpush.msra.mxu0 %v461
      %2406 = vmatpush.msra.mxu0 %v455
      %2407 = vmatpush.msra.mxu0 %v449
      %2408 = vmatpush.msra.mxu0 %v443
      %2409 = vmatpush.msra.mxu0 %v437
      %2410 = vmatmul.f32.gmra.mxu0 %v2323
      %v2411 = vpop.f32.mrf.mxu0
      %v2412 = vadd.f32 %v2392, %v2411
      %2413 = vdwg.mxu0
      %2414 = vmatpush.msra.mxu0 %v432
      %2415 = vmatpush.msra.mxu0 %v426
      %2416 = vmatpush.msra.mxu0 %v420
      %2417 = vmatpush.msra.mxu0 %v414
      %2418 = vmatpush.msra.mxu0 %v408
      %2419 = vmatpush.msra.mxu0 %v402
      %2420 = vmatpush.msra.mxu0 %v396
      %2421 = vmatpush.msra.mxu0 %v390
      %2422 = vmatpush.msra.mxu0 %v384
      %2423 = vmatpush.msra.mxu0 %v378
      %2424 = vmatpush.msra.mxu0 %v372
      %2425 = vmatpush.msra.mxu0 %v366
      %2426 = vmatpush.msra.mxu0 %v360
      %2427 = vmatpush.msra.mxu0 %v354
      %2428 = vmatpush.msra.mxu0 %v348
      %2429 = vmatpush.msra.mxu0 %v342
      %2430 = vmatmul.f32.gmra.mxu0 %v2322
      %v2431 = vpop.f32.mrf.mxu0
      %v2432 = vadd.f32 0.0, %v2431
      %2433 = vdwg.mxu0
      %2434 = vmatpush.msra.mxu0 %v528
      %2435 = vmatpush.msra.mxu0 %v522
      %2436 = vmatpush.msra.mxu0 %v516
      %2437 = vmatpush.msra.mxu0 %v510
      %2438 = vmatpush.msra.mxu0 %v504
      %2439 = vmatpush.msra.mxu0 %v498
      %2440 = vmatpush.msra.mxu0 %v492
      %2441 = vmatpush.msra.mxu0 %v486
      %2442 = vmatpush.msra.mxu0 %v480
      %2443 = vmatpush.msra.mxu0 %v474
      %2444 = vmatpush.msra.mxu0 %v468
      %2445 = vmatpush.msra.mxu0 %v462
      %2446 = vmatpush.msra.mxu0 %v456
      %2447 = vmatpush.msra.mxu0 %v450
      %2448 = vmatpush.msra.mxu0 %v444
      %2449 = vmatpush.msra.mxu0 %v438
      %2450 = vmatmul.f32.gmra.mxu0 %v2323
      %v2451 = vpop.f32.mrf.mxu0
      %v2452 = vadd.f32 %v2432, %v2451
      %2453 = vdwg.mxu0
      %2454 = vmatpush.msra.mxu0 %v433
      %2455 = vmatpush.msra.mxu0 %v427
      %2456 = vmatpush.msra.mxu0 %v421
      %2457 = vmatpush.msra.mxu0 %v415
      %2458 = vmatpush.msra.mxu0 %v409
      %2459 = vmatpush.msra.mxu0 %v403
      %2460 = vmatpush.msra.mxu0 %v397
      %2461 = vmatpush.msra.mxu0 %v391
      %2462 = vmatpush.msra.mxu0 %v385
      %2463 = vmatpush.msra.mxu0 %v379
      %2464 = vmatpush.msra.mxu0 %v373
      %2465 = vmatpush.msra.mxu0 %v367
      %2466 = vmatpush.msra.mxu0 %v361
      %2467 = vmatpush.msra.mxu0 %v355
      %2468 = vmatpush.msra.mxu0 %v349
      %2469 = vmatpush.msra.mxu0 %v343
      %2470 = vmatmul.f32.gmra.mxu0 %v2322
      %v2471 = vpop.f32.mrf.mxu0
      %v2472 = vadd.f32 0.0, %v2471
      %2473 = vdwg.mxu0
      %2474 = vmatpush.msra.mxu0 %v529
      %2475 = vmatpush.msra.mxu0 %v523
      %2476 = vmatpush.msra.mxu0 %v517
      %2477 = vmatpush.msra.mxu0 %v511
      %2478 = vmatpush.msra.mxu0 %v505
      %2479 = vmatpush.msra.mxu0 %v499
      %2480 = vmatpush.msra.mxu0 %v493
      %2481 = vmatpush.msra.mxu0 %v487
      %2482 = vmatpush.msra.mxu0 %v481
      %2483 = vmatpush.msra.mxu0 %v475
      %2484 = vmatpush.msra.mxu0 %v469
      %2485 = vmatpush.msra.mxu0 %v463
      %2486 = vmatpush.msra.mxu0 %v457
      %2487 = vmatpush.msra.mxu0 %v451
      %2488 = vmatpush.msra.mxu0 %v445
      %2489 = vmatpush.msra.mxu0 %v439
      %2490 = vmatmul.f32.gmra.mxu0 %v2323
      %v2491 = vpop.f32.mrf.mxu0
      %v2492 = vadd.f32 %v2472, %v2491
      %2493 = vdwg.mxu0
      %2494 = vmatpush.msra.mxu0 %v434
      %2495 = vmatpush.msra.mxu0 %v428
      %2496 = vmatpush.msra.mxu0 %v422
      %2497 = vmatpush.msra.mxu0 %v416
      %2498 = vmatpush.msra.mxu0 %v410
      %2499 = vmatpush.msra.mxu0 %v404
      %2500 = vmatpush.msra.mxu0 %v398
      %2501 = vmatpush.msra.mxu0 %v392
      %2502 = vmatpush.msra.mxu0 %v386
      %2503 = vmatpush.msra.mxu0 %v380
      %2504 = vmatpush.msra.mxu0 %v374
      %2505 = vmatpush.msra.mxu0 %v368
      %2506 = vmatpush.msra.mxu0 %v362
      %2507 = vmatpush.msra.mxu0 %v356
      %2508 = vmatpush.msra.mxu0 %v350
      %2509 = vmatpush.msra.mxu0 %v344
      %2510 = vmatmul.f32.gmra.mxu0 %v2322
      %v2511 = vpop.f32.mrf.mxu0
      %v2512 = vadd.f32 0.0, %v2511
      %2513 = vdwg.mxu0
      %2514 = vmatpush.msra.mxu0 %v530
      %2515 = vmatpush.msra.mxu0 %v524
      %2516 = vmatpush.msra.mxu0 %v518
      %2517 = vmatpush.msra.mxu0 %v512
      %2518 = vmatpush.msra.mxu0 %v506
      %2519 = vmatpush.msra.mxu0 %v500
      %2520 = vmatpush.msra.mxu0 %v494
      %2521 = vmatpush.msra.mxu0 %v488
      %2522 = vmatpush.msra.mxu0 %v482
      %2523 = vmatpush.msra.mxu0 %v476
      %2524 = vmatpush.msra.mxu0 %v470
      %2525 = vmatpush.msra.mxu0 %v464
      %2526 = vmatpush.msra.mxu0 %v458
      %2527 = vmatpush.msra.mxu0 %v452
      %2528 = vmatpush.msra.mxu0 %v446
      %2529 = vmatpush.msra.mxu0 %v440
      %2530 = vmatmul.f32.gmra.mxu0 %v2323
      %v2531 = vpop.f32.mrf.mxu0
      %v2532 = vadd.f32 %v2512, %v2531
      %2533 = vdwg.mxu0
      %2534 = vmatpush.msra.mxu0 %v435
      %2535 = vmatpush.msra.mxu0 %v429
      %2536 = vmatpush.msra.mxu0 %v423
      %2537 = vmatpush.msra.mxu0 %v417
      %2538 = vmatpush.msra.mxu0 %v411
      %2539 = vmatpush.msra.mxu0 %v405
      %2540 = vmatpush.msra.mxu0 %v399
      %2541 = vmatpush.msra.mxu0 %v393
      %2542 = vmatpush.msra.mxu0 %v387
      %2543 = vmatpush.msra.mxu0 %v381
      %2544 = vmatpush.msra.mxu0 %v375
      %2545 = vmatpush.msra.mxu0 %v369
      %2546 = vmatpush.msra.mxu0 %v363
      %2547 = vmatpush.msra.mxu0 %v357
      %2548 = vmatpush.msra.mxu0 %v351
      %2549 = vmatpush.msra.mxu0 %v345
      %2550 = vmatmul.f32.gmra.mxu0 %v2322
      %v2551 = vpop.f32.mrf.mxu0
      %v2552 = vadd.f32 0.0, %v2551
      %2553 = vdwg.mxu0
      %2554 = vmatpush.msra.mxu0 %v531
      %2555 = vmatpush.msra.mxu0 %v525
      %2556 = vmatpush.msra.mxu0 %v519
      %2557 = vmatpush.msra.mxu0 %v513
      %2558 = vmatpush.msra.mxu0 %v507
      %2559 = vmatpush.msra.mxu0 %v501
      %2560 = vmatpush.msra.mxu0 %v495
      %2561 = vmatpush.msra.mxu0 %v489
      %2562 = vmatpush.msra.mxu0 %v483
      %2563 = vmatpush.msra.mxu0 %v477
      %2564 = vmatpush.msra.mxu0 %v471
      %2565 = vmatpush.msra.mxu0 %v465
      %2566 = vmatpush.msra.mxu0 %v459
      %2567 = vmatpush.msra.mxu0 %v453
      %2568 = vmatpush.msra.mxu0 %v447
      %2569 = vmatpush.msra.mxu0 %v441
      %2570 = vmatmul.f32.gmra.mxu0 %v2323
      %v2571 = vpop.f32.mrf.mxu0
      %v2572 = vadd.f32 %v2552, %v2571
      %2573 = vdwg.mxu0
      %v2574 = vadd.f32 %v2327, %v2372
      %v2575 = vxor.u32 %v2574, 2147483648
      %v2576 = vmul.f32 %v2575, 1.442695
      %v2577 = vpow.pop %v2576
      %v2578 = vadd.f32 %v2577, 1.0
      %v2579 = vrcp.pop %v2578
      %v2580 = vmul.f32 %v2578, %v2579
      %v2581 = vsub.f32 1.0, %v2580
      %v2582 = vmul.f32 %v2579, %v2581
      %v2583 = vadd.f32 %v2579, %v2582
      %vm2584 = vweird.f32 %v2578
      %vm2585 = vweird.f32 %v2579
      %vm2586 = vmor %vm2584, %vm2585
      %v2587 = vsel %vm2586, %v2579, %v2583
      %v2588 = vand.u32 2147483647, %v2578
      %vm2589 = vcmp.eq.f32.partialorder %v2588, 8.507059e+37
      %v2590 = vand.u32 %v2578, 2147483648
      %v2591 = vor.u32 1.1754944e-38, %v2590
      %v2592 = vsel %vm2589, %v2591, %v2587
      %v2593 = vmul.f32 1.0, %v2592
      %v2594 = vadd.f32 %v2328, %v2412
      %v2595 = vxor.u32 %v2594, 2147483648
      %v2596 = vmul.f32 %v2595, 1.442695
      %v2597 = vpow.pop %v2596
      %v2598 = vadd.f32 %v2597, 1.0
      %v2599 = vrcp.pop %v2598
      %v2600 = vmul.f32 %v2598, %v2599
      %v2601 = vsub.f32 1.0, %v2600
      %v2602 = vmul.f32 %v2599, %v2601
      %v2603 = vadd.f32 %v2599, %v2602
      %vm2604 = vweird.f32 %v2598
      %vm2605 = vweird.f32 %v2599
      %vm2606 = vmor %vm2604, %vm2605
      %v2607 = vsel %vm2606, %v2599, %v2603
      %v2608 = vand.u32 2147483647, %v2598
      %vm2609 = vcmp.eq.f32.partialorder %v2608, 8.507059e+37
      %v2610 = vand.u32 %v2598, 2147483648
      %v2611 = vor.u32 1.1754944e-38, %v2610
      %v2612 = vsel %vm2609, %v2611, %v2607
      %v2613 = vmul.f32 1.0, %v2612
      %v2614 = vadd.f32 %v2452, %v532
      %v2615 = vmul.f32 %v2593, %v2614
      %v2616 = vadd.f32 %v2329, %v2615
      %v2617 = vtanh.pop %v2616
      %v2618 = vsub.f32 1.0, %v2613
      %v2619 = vmul.f32 %v2618, %v2617
      %v2620 = vmul.f32 %v2613, %v2322
      %v2621 = vadd.f32 %v2619, %v2620
      %v2622 = vadd.f32 %v2331, %v2492
      %v2623 = vxor.u32 %v2622, 2147483648
      %v2624 = vmul.f32 %v2623, 1.442695
      %v2625 = vpow.pop %v2624
      %v2626 = vadd.f32 %v2625, 1.0
      %v2627 = vrcp.pop %v2626
      %v2628 = vmul.f32 %v2626, %v2627
      %v2629 = vsub.f32 1.0, %v2628
      %v2630 = vmul.f32 %v2627, %v2629
      %v2631 = vadd.f32 %v2627, %v2630
      %vm2632 = vweird.f32 %v2626
      %vm2633 = vweird.f32 %v2627
      %vm2634 = vmor %vm2632, %vm2633
      %v2635 = vsel %vm2634, %v2627, %v2631
      %v2636 = vand.u32 2147483647, %v2626
      %vm2637 = vcmp.eq.f32.partialorder %v2636, 8.507059e+37
      %v2638 = vand.u32 %v2626, 2147483648
      %v2639 = vor.u32 1.1754944e-38, %v2638
      %v2640 = vsel %vm2637, %v2639, %v2635
      %v2641 = vmul.f32 1.0, %v2640
      %v2642 = vadd.f32 %v2332, %v2532
      %v2643 = vxor.u32 %v2642, 2147483648
      %v2644 = vmul.f32 %v2643, 1.442695
      %v2645 = vpow.pop %v2644
      %v2646 = vadd.f32 %v2645, 1.0
      %v2647 = vrcp.pop %v2646
      %v2648 = vmul.f32 %v2646, %v2647
      %v2649 = vsub.f32 1.0, %v2648
      %v2650 = vmul.f32 %v2647, %v2649
      %v2651 = vadd.f32 %v2647, %v2650
      %vm2652 = vweird.f32 %v2646
      %vm2653 = vweird.f32 %v2647
      %vm2654 = vmor %vm2652, %vm2653
      %v2655 = vsel %vm2654, %v2647, %v2651
      %v2656 = vand.u32 2147483647, %v2646
      %vm2657 = vcmp.eq.f32.partialorder %v2656, 8.507059e+37
      %v2658 = vand.u32 %v2646, 2147483648
      %v2659 = vor.u32 1.1754944e-38, %v2658
      %v2660 = vsel %vm2657, %v2659, %v2655
      %v2661 = vmul.f32 1.0, %v2660
      %v2662 = vadd.f32 %v2572, %v533
      %v2663 = vmul.f32 %v2641, %v2662
      %v2664 = vadd.f32 %v2333, %v2663
      %v2665 = vtanh.pop %v2664
      %v2666 = vsub.f32 1.0, %v2661
      %v2667 = vmul.f32 %v2666, %v2665
      %v2668 = vmul.f32 %v2661, %v2323
      %v2669 = vadd.f32 %v2667, %v2668
      %v2670 = vstv %s2324
      %vm2671 = vcmp.lt.s32.totalorder %v2670, %v339
      %v2672 = vstv %s2325
      %vm2673 = vcmp.lt.s32.totalorder %v2672, %v339
      %v2674 = vsel %vm2671, %v2621, 0.0
      %s2675 = scalar_lea.vmem %s323, 40
      %2676 = vst [vmem:[%s2675] sm:$0xff] %v2674
      %v2677 = vsel %vm2673, %v2669, 0.0
      %s2678 = scalar_lea.vmem %s330, 16
      %2679 = vst [vmem:[%s2678] sm:$0xff] %v2677
      %v2680 = vsel %vm2671, %v2621, %v2322
      %v2681 = vsel %vm2673, %v2669, %v2323
      %s2682 = sadd.s32 %s536, 6
      %s2683 = ssub.s32 9, %s536
      %s2684 = scalar_lea.vmem %s308, 144
      %v2685 = vld [vmem:[%s2684] sm:$0xff]
      %v2686 = vld [vmem:[%s2684 + $0x8] sm:$0xff]
      %v2687 = vld [vmem:[%s2684 + $0x10] sm:$0xff]
      %s2688 = scalar_lea.vmem %s316, 24
      %v2689 = vld [vmem:[%s2688] sm:$0xff]
      %v2690 = vld [vmem:[%s2688 + $0x8] sm:$0xff]
      %v2691 = vld [vmem:[%s2688 + $0x10] sm:$0xff]
      %2692 = vmatpush.msra.mxu0 %v430
      %2693 = vmatpush.msra.mxu0 %v424
      %2694 = vmatpush.msra.mxu0 %v418
      %2695 = vmatpush.msra.mxu0 %v412
      %2696 = vmatpush.msra.mxu0 %v406
      %2697 = vmatpush.msra.mxu0 %v400
      %2698 = vmatpush.msra.mxu0 %v394
      %2699 = vmatpush.msra.mxu0 %v388
      %2700 = vmatpush.msra.mxu0 %v382
      %2701 = vmatpush.msra.mxu0 %v376
      %2702 = vmatpush.msra.mxu0 %v370
      %2703 = vmatpush.msra.mxu0 %v364
      %2704 = vmatpush.msra.mxu0 %v358
      %2705 = vmatpush.msra.mxu0 %v352
      %2706 = vmatpush.msra.mxu0 %v346
      %2707 = vmatpush.msra.mxu0 %v340
      %2708 = vmatmul.f32.gmra.mxu0 %v2680
      %v2709 = vpop.f32.mrf.mxu0
      %v2710 = vadd.f32 0.0, %v2709
      %2711 = vdwg.mxu0
      %2712 = vmatpush.msra.mxu0 %v526
      %2713 = vmatpush.msra.mxu0 %v520
      %2714 = vmatpush.msra.mxu0 %v514
      %2715 = vmatpush.msra.mxu0 %v508
      %2716 = vmatpush.msra.mxu0 %v502
      %2717 = vmatpush.msra.mxu0 %v496
      %2718 = vmatpush.msra.mxu0 %v490
      %2719 = vmatpush.msra.mxu0 %v484
      %2720 = vmatpush.msra.mxu0 %v478
      %2721 = vmatpush.msra.mxu0 %v472
      %2722 = vmatpush.msra.mxu0 %v466
      %2723 = vmatpush.msra.mxu0 %v460
      %2724 = vmatpush.msra.mxu0 %v454
      %2725 = vmatpush.msra.mxu0 %v448
      %2726 = vmatpush.msra.mxu0 %v442
      %2727 = vmatpush.msra.mxu0 %v436
      %2728 = vmatmul.f32.gmra.mxu0 %v2681
      %v2729 = vpop.f32.mrf.mxu0
      %v2730 = vadd.f32 %v2710, %v2729
      %2731 = vdwg.mxu0
      %2732 = vmatpush.msra.mxu0 %v431
      %2733 = vmatpush.msra.mxu0 %v425
      %2734 = vmatpush.msra.mxu0 %v419
      %2735 = vmatpush.msra.mxu0 %v413
      %2736 = vmatpush.msra.mxu0 %v407
      %2737 = vmatpush.msra.mxu0 %v401
      %2738 = vmatpush.msra.mxu0 %v395
      %2739 = vmatpush.msra.mxu0 %v389
      %2740 = vmatpush.msra.mxu0 %v383
      %2741 = vmatpush.msra.mxu0 %v377
      %2742 = vmatpush.msra.mxu0 %v371
      %2743 = vmatpush.msra.mxu0 %v365
      %2744 = vmatpush.msra.mxu0 %v359
      %2745 = vmatpush.msra.mxu0 %v353
      %2746 = vmatpush.msra.mxu0 %v347
      %2747 = vmatpush.msra.mxu0 %v341
      %2748 = vmatmul.f32.gmra.mxu0 %v2680
      %v2749 = vpop.f32.mrf.mxu0
      %v2750 = vadd.f32 0.0, %v2749
      %2751 = vdwg.mxu0
      %2752 = vmatpush.msra.mxu0 %v527
      %2753 = vmatpush.msra.mxu0 %v521
      %2754 = vmatpush.msra.mxu0 %v515
      %2755 = vmatpush.msra.mxu0 %v509
      %2756 = vmatpush.msra.mxu0 %v503
      %2757 = vmatpush.msra.mxu0 %v497
      %2758 = vmatpush.msra.mxu0 %v491
      %2759 = vmatpush.msra.mxu0 %v485
      %2760 = vmatpush.msra.mxu0 %v479
      %2761 = vmatpush.msra.mxu0 %v473
      %2762 = vmatpush.msra.mxu0 %v467
      %2763 = vmatpush.msra.mxu0 %v461
      %2764 = vmatpush.msra.mxu0 %v455
      %2765 = vmatpush.msra.mxu0 %v449
      %2766 = vmatpush.msra.mxu0 %v443
      %2767 = vmatpush.msra.mxu0 %v437
      %2768 = vmatmul.f32.gmra.mxu0 %v2681
      %v2769 = vpop.f32.mrf.mxu0
      %v2770 = vadd.f32 %v2750, %v2769
      %2771 = vdwg.mxu0
      %2772 = vmatpush.msra.mxu0 %v432
      %2773 = vmatpush.msra.mxu0 %v426
      %2774 = vmatpush.msra.mxu0 %v420
      %2775 = vmatpush.msra.mxu0 %v414
      %2776 = vmatpush.msra.mxu0 %v408
      %2777 = vmatpush.msra.mxu0 %v402
      %2778 = vmatpush.msra.mxu0 %v396
      %2779 = vmatpush.msra.mxu0 %v390
      %2780 = vmatpush.msra.mxu0 %v384
      %2781 = vmatpush.msra.mxu0 %v378
      %2782 = vmatpush.msra.mxu0 %v372
      %2783 = vmatpush.msra.mxu0 %v366
      %2784 = vmatpush.msra.mxu0 %v360
      %2785 = vmatpush.msra.mxu0 %v354
      %2786 = vmatpush.msra.mxu0 %v348
      %2787 = vmatpush.msra.mxu0 %v342
      %2788 = vmatmul.f32.gmra.mxu0 %v2680
      %v2789 = vpop.f32.mrf.mxu0
      %v2790 = vadd.f32 0.0, %v2789
      %2791 = vdwg.mxu0
      %2792 = vmatpush.msra.mxu0 %v528
      %2793 = vmatpush.msra.mxu0 %v522
      %2794 = vmatpush.msra.mxu0 %v516
      %2795 = vmatpush.msra.mxu0 %v510
      %2796 = vmatpush.msra.mxu0 %v504
      %2797 = vmatpush.msra.mxu0 %v498
      %2798 = vmatpush.msra.mxu0 %v492
      %2799 = vmatpush.msra.mxu0 %v486
      %2800 = vmatpush.msra.mxu0 %v480
      %2801 = vmatpush.msra.mxu0 %v474
      %2802 = vmatpush.msra.mxu0 %v468
      %2803 = vmatpush.msra.mxu0 %v462
      %2804 = vmatpush.msra.mxu0 %v456
      %2805 = vmatpush.msra.mxu0 %v450
      %2806 = vmatpush.msra.mxu0 %v444
      %2807 = vmatpush.msra.mxu0 %v438
      %2808 = vmatmul.f32.gmra.mxu0 %v2681
      %v2809 = vpop.f32.mrf.mxu0
      %v2810 = vadd.f32 %v2790, %v2809
      %2811 = vdwg.mxu0
      %2812 = vmatpush.msra.mxu0 %v433
      %2813 = vmatpush.msra.mxu0 %v427
      %2814 = vmatpush.msra.mxu0 %v421
      %2815 = vmatpush.msra.mxu0 %v415
      %2816 = vmatpush.msra.mxu0 %v409
      %2817 = vmatpush.msra.mxu0 %v403
      %2818 = vmatpush.msra.mxu0 %v397
      %2819 = vmatpush.msra.mxu0 %v391
      %2820 = vmatpush.msra.mxu0 %v385
      %2821 = vmatpush.msra.mxu0 %v379
      %2822 = vmatpush.msra.mxu0 %v373
      %2823 = vmatpush.msra.mxu0 %v367
      %2824 = vmatpush.msra.mxu0 %v361
      %2825 = vmatpush.msra.mxu0 %v355
      %2826 = vmatpush.msra.mxu0 %v349
      %2827 = vmatpush.msra.mxu0 %v343
      %2828 = vmatmul.f32.gmra.mxu0 %v2680
      %v2829 = vpop.f32.mrf.mxu0
      %v2830 = vadd.f32 0.0, %v2829
      %2831 = vdwg.mxu0
      %2832 = vmatpush.msra.mxu0 %v529
      %2833 = vmatpush.msra.mxu0 %v523
      %2834 = vmatpush.msra.mxu0 %v517
      %2835 = vmatpush.msra.mxu0 %v511
      %2836 = vmatpush.msra.mxu0 %v505
      %2837 = vmatpush.msra.mxu0 %v499
      %2838 = vmatpush.msra.mxu0 %v493
      %2839 = vmatpush.msra.mxu0 %v487
      %2840 = vmatpush.msra.mxu0 %v481
      %2841 = vmatpush.msra.mxu0 %v475
      %2842 = vmatpush.msra.mxu0 %v469
      %2843 = vmatpush.msra.mxu0 %v463
      %2844 = vmatpush.msra.mxu0 %v457
      %2845 = vmatpush.msra.mxu0 %v451
      %2846 = vmatpush.msra.mxu0 %v445
      %2847 = vmatpush.msra.mxu0 %v439
      %2848 = vmatmul.f32.gmra.mxu0 %v2681
      %v2849 = vpop.f32.mrf.mxu0
      %v2850 = vadd.f32 %v2830, %v2849
      %2851 = vdwg.mxu0
      %2852 = vmatpush.msra.mxu0 %v434
      %2853 = vmatpush.msra.mxu0 %v428
      %2854 = vmatpush.msra.mxu0 %v422
      %2855 = vmatpush.msra.mxu0 %v416
      %2856 = vmatpush.msra.mxu0 %v410
      %2857 = vmatpush.msra.mxu0 %v404
      %2858 = vmatpush.msra.mxu0 %v398
      %2859 = vmatpush.msra.mxu0 %v392
      %2860 = vmatpush.msra.mxu0 %v386
      %2861 = vmatpush.msra.mxu0 %v380
      %2862 = vmatpush.msra.mxu0 %v374
      %2863 = vmatpush.msra.mxu0 %v368
      %2864 = vmatpush.msra.mxu0 %v362
      %2865 = vmatpush.msra.mxu0 %v356
      %2866 = vmatpush.msra.mxu0 %v350
      %2867 = vmatpush.msra.mxu0 %v344
      %2868 = vmatmul.f32.gmra.mxu0 %v2680
      %v2869 = vpop.f32.mrf.mxu0
      %v2870 = vadd.f32 0.0, %v2869
      %2871 = vdwg.mxu0
      %2872 = vmatpush.msra.mxu0 %v530
      %2873 = vmatpush.msra.mxu0 %v524
      %2874 = vmatpush.msra.mxu0 %v518
      %2875 = vmatpush.msra.mxu0 %v512
      %2876 = vmatpush.msra.mxu0 %v506
      %2877 = vmatpush.msra.mxu0 %v500
      %2878 = vmatpush.msra.mxu0 %v494
      %2879 = vmatpush.msra.mxu0 %v488
      %2880 = vmatpush.msra.mxu0 %v482
      %2881 = vmatpush.msra.mxu0 %v476
      %2882 = vmatpush.msra.mxu0 %v470
      %2883 = vmatpush.msra.mxu0 %v464
      %2884 = vmatpush.msra.mxu0 %v458
      %2885 = vmatpush.msra.mxu0 %v452
      %2886 = vmatpush.msra.mxu0 %v446
      %2887 = vmatpush.msra.mxu0 %v440
      %2888 = vmatmul.f32.gmra.mxu0 %v2681
      %v2889 = vpop.f32.mrf.mxu0
      %v2890 = vadd.f32 %v2870, %v2889
      %2891 = vdwg.mxu0
      %2892 = vmatpush.msra.mxu0 %v435
      %2893 = vmatpush.msra.mxu0 %v429
      %2894 = vmatpush.msra.mxu0 %v423
      %2895 = vmatpush.msra.mxu0 %v417
      %2896 = vmatpush.msra.mxu0 %v411
      %2897 = vmatpush.msra.mxu0 %v405
      %2898 = vmatpush.msra.mxu0 %v399
      %2899 = vmatpush.msra.mxu0 %v393
      %2900 = vmatpush.msra.mxu0 %v387
      %2901 = vmatpush.msra.mxu0 %v381
      %2902 = vmatpush.msra.mxu0 %v375
      %2903 = vmatpush.msra.mxu0 %v369
      %2904 = vmatpush.msra.mxu0 %v363
      %2905 = vmatpush.msra.mxu0 %v357
      %2906 = vmatpush.msra.mxu0 %v351
      %2907 = vmatpush.msra.mxu0 %v345
      %2908 = vmatmul.f32.gmra.mxu0 %v2680
      %v2909 = vpop.f32.mrf.mxu0
      %v2910 = vadd.f32 0.0, %v2909
      %2911 = vdwg.mxu0
      %2912 = vmatpush.msra.mxu0 %v531
      %2913 = vmatpush.msra.mxu0 %v525
      %2914 = vmatpush.msra.mxu0 %v519
      %2915 = vmatpush.msra.mxu0 %v513
      %2916 = vmatpush.msra.mxu0 %v507
      %2917 = vmatpush.msra.mxu0 %v501
      %2918 = vmatpush.msra.mxu0 %v495
      %2919 = vmatpush.msra.mxu0 %v489
      %2920 = vmatpush.msra.mxu0 %v483
      %2921 = vmatpush.msra.mxu0 %v477
      %2922 = vmatpush.msra.mxu0 %v471
      %2923 = vmatpush.msra.mxu0 %v465
      %2924 = vmatpush.msra.mxu0 %v459
      %2925 = vmatpush.msra.mxu0 %v453
      %2926 = vmatpush.msra.mxu0 %v447
      %2927 = vmatpush.msra.mxu0 %v441
      %2928 = vmatmul.f32.gmra.mxu0 %v2681
      %v2929 = vpop.f32.mrf.mxu0
      %v2930 = vadd.f32 %v2910, %v2929
      %2931 = vdwg.mxu0
      %v2932 = vadd.f32 %v2685, %v2730
      %v2933 = vxor.u32 %v2932, 2147483648
      %v2934 = vmul.f32 %v2933, 1.442695
      %v2935 = vpow.pop %v2934
      %v2936 = vadd.f32 %v2935, 1.0
      %v2937 = vrcp.pop %v2936
      %v2938 = vmul.f32 %v2936, %v2937
      %v2939 = vsub.f32 1.0, %v2938
      %v2940 = vmul.f32 %v2937, %v2939
      %v2941 = vadd.f32 %v2937, %v2940
      %vm2942 = vweird.f32 %v2936
      %vm2943 = vweird.f32 %v2937
      %vm2944 = vmor %vm2942, %vm2943
      %v2945 = vsel %vm2944, %v2937, %v2941
      %v2946 = vand.u32 2147483647, %v2936
      %vm2947 = vcmp.eq.f32.partialorder %v2946, 8.507059e+37
      %v2948 = vand.u32 %v2936, 2147483648
      %v2949 = vor.u32 1.1754944e-38, %v2948
      %v2950 = vsel %vm2947, %v2949, %v2945
      %v2951 = vmul.f32 1.0, %v2950
      %v2952 = vadd.f32 %v2686, %v2770
      %v2953 = vxor.u32 %v2952, 2147483648
      %v2954 = vmul.f32 %v2953, 1.442695
      %v2955 = vpow.pop %v2954
      %v2956 = vadd.f32 %v2955, 1.0
      %v2957 = vrcp.pop %v2956
      %v2958 = vmul.f32 %v2956, %v2957
      %v2959 = vsub.f32 1.0, %v2958
      %v2960 = vmul.f32 %v2957, %v2959
      %v2961 = vadd.f32 %v2957, %v2960
      %vm2962 = vweird.f32 %v2956
      %vm2963 = vweird.f32 %v2957
      %vm2964 = vmor %vm2962, %vm2963
      %v2965 = vsel %vm2964, %v2957, %v2961
      %v2966 = vand.u32 2147483647, %v2956
      %vm2967 = vcmp.eq.f32.partialorder %v2966, 8.507059e+37
      %v2968 = vand.u32 %v2956, 2147483648
      %v2969 = vor.u32 1.1754944e-38, %v2968
      %v2970 = vsel %vm2967, %v2969, %v2965
      %v2971 = vmul.f32 1.0, %v2970
      %v2972 = vadd.f32 %v2810, %v532
      %v2973 = vmul.f32 %v2951, %v2972
      %v2974 = vadd.f32 %v2687, %v2973
      %v2975 = vtanh.pop %v2974
      %v2976 = vsub.f32 1.0, %v2971
      %v2977 = vmul.f32 %v2976, %v2975
      %v2978 = vmul.f32 %v2971, %v2680
      %v2979 = vadd.f32 %v2977, %v2978
      %v2980 = vadd.f32 %v2689, %v2850
      %v2981 = vxor.u32 %v2980, 2147483648
      %v2982 = vmul.f32 %v2981, 1.442695
      %v2983 = vpow.pop %v2982
      %v2984 = vadd.f32 %v2983, 1.0
      %v2985 = vrcp.pop %v2984
      %v2986 = vmul.f32 %v2984, %v2985
      %v2987 = vsub.f32 1.0, %v2986
      %v2988 = vmul.f32 %v2985, %v2987
      %v2989 = vadd.f32 %v2985, %v2988
      %vm2990 = vweird.f32 %v2984
      %vm2991 = vweird.f32 %v2985
      %vm2992 = vmor %vm2990, %vm2991
      %v2993 = vsel %vm2992, %v2985, %v2989
      %v2994 = vand.u32 2147483647, %v2984
      %vm2995 = vcmp.eq.f32.partialorder %v2994, 8.507059e+37
      %v2996 = vand.u32 %v2984, 2147483648
      %v2997 = vor.u32 1.1754944e-38, %v2996
      %v2998 = vsel %vm2995, %v2997, %v2993
      %v2999 = vmul.f32 1.0, %v2998
      %v3000 = vadd.f32 %v2690, %v2890
      %v3001 = vxor.u32 %v3000, 2147483648
      %v3002 = vmul.f32 %v3001, 1.442695
      %v3003 = vpow.pop %v3002
      %v3004 = vadd.f32 %v3003, 1.0
      %v3005 = vrcp.pop %v3004
      %v3006 = vmul.f32 %v3004, %v3005
      %v3007 = vsub.f32 1.0, %v3006
      %v3008 = vmul.f32 %v3005, %v3007
      %v3009 = vadd.f32 %v3005, %v3008
      %vm3010 = vweird.f32 %v3004
      %vm3011 = vweird.f32 %v3005
      %vm3012 = vmor %vm3010, %vm3011
      %v3013 = vsel %vm3012, %v3005, %v3009
      %v3014 = vand.u32 2147483647, %v3004
      %vm3015 = vcmp.eq.f32.partialorder %v3014, 8.507059e+37
      %v3016 = vand.u32 %v3004, 2147483648
      %v3017 = vor.u32 1.1754944e-38, %v3016
      %v3018 = vsel %vm3015, %v3017, %v3013
      %v3019 = vmul.f32 1.0, %v3018
      %v3020 = vadd.f32 %v2930, %v533
      %v3021 = vmul.f32 %v2999, %v3020
      %v3022 = vadd.f32 %v2691, %v3021
      %v3023 = vtanh.pop %v3022
      %v3024 = vsub.f32 1.0, %v3019
      %v3025 = vmul.f32 %v3024, %v3023
      %v3026 = vmul.f32 %v3019, %v2681
      %v3027 = vadd.f32 %v3025, %v3026
      %v3028 = vstv %s2682
      %vm3029 = vcmp.lt.s32.totalorder %v3028, %v339
      %v3030 = vstv %s2683
      %vm3031 = vcmp.lt.s32.totalorder %v3030, %v339
      %v3032 = vsel %vm3029, %v2979, 0.0
      %s3033 = scalar_lea.vmem %s323, 48
      %3034 = vst [vmem:[%s3033] sm:$0xff] %v3032
      %v3035 = vsel %vm3031, %v3027, 0.0
      %s3036 = scalar_lea.vmem %s330, 8
      %3037 = vst [vmem:[%s3036] sm:$0xff] %v3035
      %v3038 = vsel %vm3029, %v2979, %v2680
      %v3039 = vsel %vm3031, %v3027, %v2681
      %s3040 = sadd.s32 %s536, 7
      %s3041 = ssub.s32 8, %s536
      %s3042 = scalar_lea.vmem %s308, 168
      %v3043 = vld [vmem:[%s3042] sm:$0xff]
      %v3044 = vld [vmem:[%s3042 + $0x8] sm:$0xff]
      %v3045 = vld [vmem:[%s3042 + $0x10] sm:$0xff]
      %v3046 = vld [vmem:[%s316] sm:$0xff]
      %v3047 = vld [vmem:[%s316 + $0x8] sm:$0xff]
      %v3048 = vld [vmem:[%s316 + $0x10] sm:$0xff]
      %3049 = vmatpush.msra.mxu0 %v430
      %3050 = vmatpush.msra.mxu0 %v424
      %3051 = vmatpush.msra.mxu0 %v418
      %3052 = vmatpush.msra.mxu0 %v412
      %3053 = vmatpush.msra.mxu0 %v406
      %3054 = vmatpush.msra.mxu0 %v400
      %3055 = vmatpush.msra.mxu0 %v394
      %3056 = vmatpush.msra.mxu0 %v388
      %3057 = vmatpush.msra.mxu0 %v382
      %3058 = vmatpush.msra.mxu0 %v376
      %3059 = vmatpush.msra.mxu0 %v370
      %3060 = vmatpush.msra.mxu0 %v364
      %3061 = vmatpush.msra.mxu0 %v358
      %3062 = vmatpush.msra.mxu0 %v352
      %3063 = vmatpush.msra.mxu0 %v346
      %3064 = vmatpush.msra.mxu0 %v340
      %3065 = vmatmul.f32.gmra.mxu0 %v3038
      %v3066 = vpop.f32.mrf.mxu0
      %v3067 = vadd.f32 0.0, %v3066
      %3068 = vdwg.mxu0
      %3069 = vmatpush.msra.mxu0 %v526
      %3070 = vmatpush.msra.mxu0 %v520
      %3071 = vmatpush.msra.mxu0 %v514
      %3072 = vmatpush.msra.mxu0 %v508
      %3073 = vmatpush.msra.mxu0 %v502
      %3074 = vmatpush.msra.mxu0 %v496
      %3075 = vmatpush.msra.mxu0 %v490
      %3076 = vmatpush.msra.mxu0 %v484
      %3077 = vmatpush.msra.mxu0 %v478
      %3078 = vmatpush.msra.mxu0 %v472
      %3079 = vmatpush.msra.mxu0 %v466
      %3080 = vmatpush.msra.mxu0 %v460
      %3081 = vmatpush.msra.mxu0 %v454
      %3082 = vmatpush.msra.mxu0 %v448
      %3083 = vmatpush.msra.mxu0 %v442
      %3084 = vmatpush.msra.mxu0 %v436
      %3085 = vmatmul.f32.gmra.mxu0 %v3039
      %v3086 = vpop.f32.mrf.mxu0
      %v3087 = vadd.f32 %v3067, %v3086
      %3088 = vdwg.mxu0
      %3089 = vmatpush.msra.mxu0 %v431
      %3090 = vmatpush.msra.mxu0 %v425
      %3091 = vmatpush.msra.mxu0 %v419
      %3092 = vmatpush.msra.mxu0 %v413
      %3093 = vmatpush.msra.mxu0 %v407
      %3094 = vmatpush.msra.mxu0 %v401
      %3095 = vmatpush.msra.mxu0 %v395
      %3096 = vmatpush.msra.mxu0 %v389
      %3097 = vmatpush.msra.mxu0 %v383
      %3098 = vmatpush.msra.mxu0 %v377
      %3099 = vmatpush.msra.mxu0 %v371
      %3100 = vmatpush.msra.mxu0 %v365
      %3101 = vmatpush.msra.mxu0 %v359
      %3102 = vmatpush.msra.mxu0 %v353
      %3103 = vmatpush.msra.mxu0 %v347
      %3104 = vmatpush.msra.mxu0 %v341
      %3105 = vmatmul.f32.gmra.mxu0 %v3038
      %v3106 = vpop.f32.mrf.mxu0
      %v3107 = vadd.f32 0.0, %v3106
      %3108 = vdwg.mxu0
      %3109 = vmatpush.msra.mxu0 %v527
      %3110 = vmatpush.msra.mxu0 %v521
      %3111 = vmatpush.msra.mxu0 %v515
      %3112 = vmatpush.msra.mxu0 %v509
      %3113 = vmatpush.msra.mxu0 %v503
      %3114 = vmatpush.msra.mxu0 %v497
      %3115 = vmatpush.msra.mxu0 %v491
      %3116 = vmatpush.msra.mxu0 %v485
      %3117 = vmatpush.msra.mxu0 %v479
      %3118 = vmatpush.msra.mxu0 %v473
      %3119 = vmatpush.msra.mxu0 %v467
      %3120 = vmatpush.msra.mxu0 %v461
      %3121 = vmatpush.msra.mxu0 %v455
      %3122 = vmatpush.msra.mxu0 %v449
      %3123 = vmatpush.msra.mxu0 %v443
      %3124 = vmatpush.msra.mxu0 %v437
      %3125 = vmatmul.f32.gmra.mxu0 %v3039
      %v3126 = vpop.f32.mrf.mxu0
      %v3127 = vadd.f32 %v3107, %v3126
      %3128 = vdwg.mxu0
      %3129 = vmatpush.msra.mxu0 %v432
      %3130 = vmatpush.msra.mxu0 %v426
      %3131 = vmatpush.msra.mxu0 %v420
      %3132 = vmatpush.msra.mxu0 %v414
      %3133 = vmatpush.msra.mxu0 %v408
      %3134 = vmatpush.msra.mxu0 %v402
      %3135 = vmatpush.msra.mxu0 %v396
      %3136 = vmatpush.msra.mxu0 %v390
      %3137 = vmatpush.msra.mxu0 %v384
      %3138 = vmatpush.msra.mxu0 %v378
      %3139 = vmatpush.msra.mxu0 %v372
      %3140 = vmatpush.msra.mxu0 %v366
      %3141 = vmatpush.msra.mxu0 %v360
      %3142 = vmatpush.msra.mxu0 %v354
      %3143 = vmatpush.msra.mxu0 %v348
      %3144 = vmatpush.msra.mxu0 %v342
      %3145 = vmatmul.f32.gmra.mxu0 %v3038
      %v3146 = vpop.f32.mrf.mxu0
      %v3147 = vadd.f32 0.0, %v3146
      %3148 = vdwg.mxu0
      %3149 = vmatpush.msra.mxu0 %v528
      %3150 = vmatpush.msra.mxu0 %v522
      %3151 = vmatpush.msra.mxu0 %v516
      %3152 = vmatpush.msra.mxu0 %v510
      %3153 = vmatpush.msra.mxu0 %v504
      %3154 = vmatpush.msra.mxu0 %v498
      %3155 = vmatpush.msra.mxu0 %v492
      %3156 = vmatpush.msra.mxu0 %v486
      %3157 = vmatpush.msra.mxu0 %v480
      %3158 = vmatpush.msra.mxu0 %v474
      %3159 = vmatpush.msra.mxu0 %v468
      %3160 = vmatpush.msra.mxu0 %v462
      %3161 = vmatpush.msra.mxu0 %v456
      %3162 = vmatpush.msra.mxu0 %v450
      %3163 = vmatpush.msra.mxu0 %v444
      %3164 = vmatpush.msra.mxu0 %v438
      %3165 = vmatmul.f32.gmra.mxu0 %v3039
      %v3166 = vpop.f32.mrf.mxu0
      %v3167 = vadd.f32 %v3147, %v3166
      %3168 = vdwg.mxu0
      %3169 = vmatpush.msra.mxu0 %v433
      %3170 = vmatpush.msra.mxu0 %v427
      %3171 = vmatpush.msra.mxu0 %v421
      %3172 = vmatpush.msra.mxu0 %v415
      %3173 = vmatpush.msra.mxu0 %v409
      %3174 = vmatpush.msra.mxu0 %v403
      %3175 = vmatpush.msra.mxu0 %v397
      %3176 = vmatpush.msra.mxu0 %v391
      %3177 = vmatpush.msra.mxu0 %v385
      %3178 = vmatpush.msra.mxu0 %v379
      %3179 = vmatpush.msra.mxu0 %v373
      %3180 = vmatpush.msra.mxu0 %v367
      %3181 = vmatpush.msra.mxu0 %v361
      %3182 = vmatpush.msra.mxu0 %v355
      %3183 = vmatpush.msra.mxu0 %v349
      %3184 = vmatpush.msra.mxu0 %v343
      %3185 = vmatmul.f32.gmra.mxu0 %v3038
      %v3186 = vpop.f32.mrf.mxu0
      %v3187 = vadd.f32 0.0, %v3186
      %3188 = vdwg.mxu0
      %3189 = vmatpush.msra.mxu0 %v529
      %3190 = vmatpush.msra.mxu0 %v523
      %3191 = vmatpush.msra.mxu0 %v517
      %3192 = vmatpush.msra.mxu0 %v511
      %3193 = vmatpush.msra.mxu0 %v505
      %3194 = vmatpush.msra.mxu0 %v499
      %3195 = vmatpush.msra.mxu0 %v493
      %3196 = vmatpush.msra.mxu0 %v487
      %3197 = vmatpush.msra.mxu0 %v481
      %3198 = vmatpush.msra.mxu0 %v475
      %3199 = vmatpush.msra.mxu0 %v469
      %3200 = vmatpush.msra.mxu0 %v463
      %3201 = vmatpush.msra.mxu0 %v457
      %3202 = vmatpush.msra.mxu0 %v451
      %3203 = vmatpush.msra.mxu0 %v445
      %3204 = vmatpush.msra.mxu0 %v439
      %3205 = vmatmul.f32.gmra.mxu0 %v3039
      %v3206 = vpop.f32.mrf.mxu0
      %v3207 = vadd.f32 %v3187, %v3206
      %3208 = vdwg.mxu0
      %3209 = vmatpush.msra.mxu0 %v434
      %3210 = vmatpush.msra.mxu0 %v428
      %3211 = vmatpush.msra.mxu0 %v422
      %3212 = vmatpush.msra.mxu0 %v416
      %3213 = vmatpush.msra.mxu0 %v410
      %3214 = vmatpush.msra.mxu0 %v404
      %3215 = vmatpush.msra.mxu0 %v398
      %3216 = vmatpush.msra.mxu0 %v392
      %3217 = vmatpush.msra.mxu0 %v386
      %3218 = vmatpush.msra.mxu0 %v380
      %3219 = vmatpush.msra.mxu0 %v374
      %3220 = vmatpush.msra.mxu0 %v368
      %3221 = vmatpush.msra.mxu0 %v362
      %3222 = vmatpush.msra.mxu0 %v356
      %3223 = vmatpush.msra.mxu0 %v350
      %3224 = vmatpush.msra.mxu0 %v344
      %3225 = vmatmul.f32.gmra.mxu0 %v3038
      %v3226 = vpop.f32.mrf.mxu0
      %v3227 = vadd.f32 0.0, %v3226
      %3228 = vdwg.mxu0
      %3229 = vmatpush.msra.mxu0 %v530
      %3230 = vmatpush.msra.mxu0 %v524
      %3231 = vmatpush.msra.mxu0 %v518
      %3232 = vmatpush.msra.mxu0 %v512
      %3233 = vmatpush.msra.mxu0 %v506
      %3234 = vmatpush.msra.mxu0 %v500
      %3235 = vmatpush.msra.mxu0 %v494
      %3236 = vmatpush.msra.mxu0 %v488
      %3237 = vmatpush.msra.mxu0 %v482
      %3238 = vmatpush.msra.mxu0 %v476
      %3239 = vmatpush.msra.mxu0 %v470
      %3240 = vmatpush.msra.mxu0 %v464
      %3241 = vmatpush.msra.mxu0 %v458
      %3242 = vmatpush.msra.mxu0 %v452
      %3243 = vmatpush.msra.mxu0 %v446
      %3244 = vmatpush.msra.mxu0 %v440
      %3245 = vmatmul.f32.gmra.mxu0 %v3039
      %v3246 = vpop.f32.mrf.mxu0
      %v3247 = vadd.f32 %v3227, %v3246
      %3248 = vdwg.mxu0
      %3249 = vmatpush.msra.mxu0 %v435
      %3250 = vmatpush.msra.mxu0 %v429
      %3251 = vmatpush.msra.mxu0 %v423
      %3252 = vmatpush.msra.mxu0 %v417
      %3253 = vmatpush.msra.mxu0 %v411
      %3254 = vmatpush.msra.mxu0 %v405
      %3255 = vmatpush.msra.mxu0 %v399
      %3256 = vmatpush.msra.mxu0 %v393
      %3257 = vmatpush.msra.mxu0 %v387
      %3258 = vmatpush.msra.mxu0 %v381
      %3259 = vmatpush.msra.mxu0 %v375
      %3260 = vmatpush.msra.mxu0 %v369
      %3261 = vmatpush.msra.mxu0 %v363
      %3262 = vmatpush.msra.mxu0 %v357
      %3263 = vmatpush.msra.mxu0 %v351
      %3264 = vmatpush.msra.mxu0 %v345
      %3265 = vmatmul.f32.gmra.mxu0 %v3038
      %v3266 = vpop.f32.mrf.mxu0
      %v3267 = vadd.f32 0.0, %v3266
      %3268 = vdwg.mxu0
      %3269 = vmatpush.msra.mxu0 %v531
      %3270 = vmatpush.msra.mxu0 %v525
      %3271 = vmatpush.msra.mxu0 %v519
      %3272 = vmatpush.msra.mxu0 %v513
      %3273 = vmatpush.msra.mxu0 %v507
      %3274 = vmatpush.msra.mxu0 %v501
      %3275 = vmatpush.msra.mxu0 %v495
      %3276 = vmatpush.msra.mxu0 %v489
      %3277 = vmatpush.msra.mxu0 %v483
      %3278 = vmatpush.msra.mxu0 %v477
      %3279 = vmatpush.msra.mxu0 %v471
      %3280 = vmatpush.msra.mxu0 %v465
      %3281 = vmatpush.msra.mxu0 %v459
      %3282 = vmatpush.msra.mxu0 %v453
      %3283 = vmatpush.msra.mxu0 %v447
      %3284 = vmatpush.msra.mxu0 %v441
      %3285 = vmatmul.f32.gmra.mxu0 %v3039
      %v3286 = vpop.f32.mrf.mxu0
      %v3287 = vadd.f32 %v3267, %v3286
      %3288 = vdwg.mxu0
      %v3289 = vadd.f32 %v3043, %v3087
      %v3290 = vxor.u32 %v3289, 2147483648
      %v3291 = vmul.f32 %v3290, 1.442695
      %v3292 = vpow.pop %v3291
      %v3293 = vadd.f32 %v3292, 1.0
      %v3294 = vrcp.pop %v3293
      %v3295 = vmul.f32 %v3293, %v3294
      %v3296 = vsub.f32 1.0, %v3295
      %v3297 = vmul.f32 %v3294, %v3296
      %v3298 = vadd.f32 %v3294, %v3297
      %vm3299 = vweird.f32 %v3293
      %vm3300 = vweird.f32 %v3294
      %vm3301 = vmor %vm3299, %vm3300
      %v3302 = vsel %vm3301, %v3294, %v3298
      %v3303 = vand.u32 2147483647, %v3293
      %vm3304 = vcmp.eq.f32.partialorder %v3303, 8.507059e+37
      %v3305 = vand.u32 %v3293, 2147483648
      %v3306 = vor.u32 1.1754944e-38, %v3305
      %v3307 = vsel %vm3304, %v3306, %v3302
      %v3308 = vmul.f32 1.0, %v3307
      %v3309 = vadd.f32 %v3044, %v3127
      %v3310 = vxor.u32 %v3309, 2147483648
      %v3311 = vmul.f32 %v3310, 1.442695
      %v3312 = vpow.pop %v3311
      %v3313 = vadd.f32 %v3312, 1.0
      %v3314 = vrcp.pop %v3313
      %v3315 = vmul.f32 %v3313, %v3314
      %v3316 = vsub.f32 1.0, %v3315
      %v3317 = vmul.f32 %v3314, %v3316
      %v3318 = vadd.f32 %v3314, %v3317
      %vm3319 = vweird.f32 %v3313
      %vm3320 = vweird.f32 %v3314
      %vm3321 = vmor %vm3319, %vm3320
      %v3322 = vsel %vm3321, %v3314, %v3318
      %v3323 = vand.u32 2147483647, %v3313
      %vm3324 = vcmp.eq.f32.partialorder %v3323, 8.507059e+37
      %v3325 = vand.u32 %v3313, 2147483648
      %v3326 = vor.u32 1.1754944e-38, %v3325
      %v3327 = vsel %vm3324, %v3326, %v3322
      %v3328 = vmul.f32 1.0, %v3327
      %v3329 = vadd.f32 %v3167, %v532
      %v3330 = vmul.f32 %v3308, %v3329
      %v3331 = vadd.f32 %v3045, %v3330
      %v3332 = vtanh.pop %v3331
      %v3333 = vsub.f32 1.0, %v3328
      %v3334 = vmul.f32 %v3333, %v3332
      %v3335 = vmul.f32 %v3328, %v3038
      %v3336 = vadd.f32 %v3334, %v3335
      %v3337 = vadd.f32 %v3046, %v3207
      %v3338 = vxor.u32 %v3337, 2147483648
      %v3339 = vmul.f32 %v3338, 1.442695
      %v3340 = vpow.pop %v3339
      %v3341 = vadd.f32 %v3340, 1.0
      %v3342 = vrcp.pop %v3341
      %v3343 = vmul.f32 %v3341, %v3342
      %v3344 = vsub.f32 1.0, %v3343
      %v3345 = vmul.f32 %v3342, %v3344
      %v3346 = vadd.f32 %v3342, %v3345
      %vm3347 = vweird.f32 %v3341
      %vm3348 = vweird.f32 %v3342
      %vm3349 = vmor %vm3347, %vm3348
      %v3350 = vsel %vm3349, %v3342, %v3346
      %v3351 = vand.u32 2147483647, %v3341
      %vm3352 = vcmp.eq.f32.partialorder %v3351, 8.507059e+37
      %v3353 = vand.u32 %v3341, 2147483648
      %v3354 = vor.u32 1.1754944e-38, %v3353
      %v3355 = vsel %vm3352, %v3354, %v3350
      %v3356 = vmul.f32 1.0, %v3355
      %v3357 = vadd.f32 %v3047, %v3247
      %v3358 = vxor.u32 %v3357, 2147483648
      %v3359 = vmul.f32 %v3358, 1.442695
      %v3360 = vpow.pop %v3359
      %v3361 = vadd.f32 %v3360, 1.0
      %v3362 = vrcp.pop %v3361
      %v3363 = vmul.f32 %v3361, %v3362
      %v3364 = vsub.f32 1.0, %v3363
      %v3365 = vmul.f32 %v3362, %v3364
      %v3366 = vadd.f32 %v3362, %v3365
      %vm3367 = vweird.f32 %v3361
      %vm3368 = vweird.f32 %v3362
      %vm3369 = vmor %vm3367, %vm3368
      %v3370 = vsel %vm3369, %v3362, %v3366
      %v3371 = vand.u32 2147483647, %v3361
      %vm3372 = vcmp.eq.f32.partialorder %v3371, 8.507059e+37
      %v3373 = vand.u32 %v3361, 2147483648
      %v3374 = vor.u32 1.1754944e-38, %v3373
      %v3375 = vsel %vm3372, %v3374, %v3370
      %v3376 = vmul.f32 1.0, %v3375
      %v3377 = vadd.f32 %v3287, %v533
      %v3378 = vmul.f32 %v3356, %v3377
      %v3379 = vadd.f32 %v3048, %v3378
      %v3380 = vtanh.pop %v3379
      %v3381 = vsub.f32 1.0, %v3376
      %v3382 = vmul.f32 %v3381, %v3380
      %v3383 = vmul.f32 %v3376, %v3039
      %v3384 = vadd.f32 %v3382, %v3383
      %v3385 = vstv %s3040
      %vm3386 = vcmp.lt.s32.totalorder %v3385, %v339
      %v3387 = vstv %s3041
      %vm3388 = vcmp.lt.s32.totalorder %v3387, %v339
      %v3389 = vsel %vm3386, %v3336, 0.0
      %s3390 = scalar_lea.vmem %s323, 56
      %3391 = vst [vmem:[%s3390] sm:$0xff] %v3389
      %v3392 = vsel %vm3388, %v3384, 0.0
      %3393 = vst [vmem:[%s330] sm:$0xff] %v3392
      %v3394 = vsel %vm3386, %v3336, %v3038
      %v3395 = vsel %vm3388, %v3384, %v3039
      %3396 = vst [vmem:[%s7] sm:$0xff] %v3394
      %3397 = vst [vmem:[%s7 + $0x8] sm:$0xff] %v3395
      %s3398 = smul.u32 8, %s19
      %p3399 = scmp.lt.s32.totalorder %s3398, 15
      %s3400 = scalar_select %p3399, %s3398, 15
      %s3401 = smul.addr %s3400, 8
      %s3402 = scalar_lea.vmem %s5, %s3401
      %s3403 = ssub.s32 1, %s19
      %s3404 = smul.u32 8, %s3403
      %p3405 = scmp.lt.s32.totalorder %s3404, 15
      %s3406 = scalar_select %p3405, %s3404, 15
      %s3407 = smul.addr %s3406, 8
      %s3408 = scalar_lea.vmem %s6, %s3407
      // Predicated region
      $region45: #{encoder_rnn_forward.1} parent=39 // pred_check
        %p3409 = pneg %p154
      $region46: #{encoder_rnn_forward.1} parent=39 // pred_check_branch
        %3411 = sbr.rel (%p3409) target = $region48
      $region47: #{encoder_rnn_forward.1} parent=39 // pred_region
        %s3412 = smul.u32 8, %s19
      $region48: #{encoder_rnn_forward.1} parent=39 // pred_fallthru
        _
      // Predicated region
      $region49: #{encoder_rnn_forward.1} parent=39 // pred_check
        %p3413 = pneg %p182
      $region50: #{encoder_rnn_forward.1} parent=39 // pred_check_branch
        %3415 = sbr.rel (%p3413) target = $region52
      $region51: #{encoder_rnn_forward.1} parent=39 // pred_region
        %s3416 = ssub.s32 1, %s19
        %s3417 = smul.u32 8, %s3416
      $region52: #{encoder_rnn_forward.1} parent=39 // pred_fallthru
        _
      // Predicated region
      $region53: #{encoder_rnn_forward.1} parent=39 // pred_check
        %p3418 = pneg %p203
      $region54: #{encoder_rnn_forward.1} parent=39 // pred_check_branch
        %3420 = sbr.rel (%p3418) target = $region56
      $region55: #{encoder_rnn_forward.1} parent=39 // pred_region
        _
      $region56: #{encoder_rnn_forward.1} parent=39 // pred_fallthru
        _
      // Predicated region
      $region57: #{encoder_rnn_forward.1} parent=39 // pred_check
        %p3421 = pneg %p203
      $region58: #{encoder_rnn_forward.1} parent=39 // pred_check_branch
        %3423 = sbr.rel (%p3421) target = $region60
      $region59: #{encoder_rnn_forward.1} parent=39 // pred_region
        _
      $region60: #{encoder_rnn_forward.1} parent=39 // pred_fallthru
        _
    $region40: #{encoder_rnn_forward.1} parent=5 // pred_fallthru
      _
    %p3424 = scmp.le.s32.totalorder 2, %s14
    // Predicated region
    $region61: #{encoder_rnn_forward.1} parent=5 // pred_check
      %p3425 = pneg %p3424
    $region62: #{encoder_rnn_forward.1} parent=5 // pred_check_branch
      %3427 = sbr.rel (%p3425) target = $region64
    $region63: #{encoder_rnn_forward.1} parent=5 // pred_region
      %s3428 = ssub.s32 %s14, 2
      // Predicated region
      $region65: #{encoder_rnn_forward.1} parent=63 // pred_check
        %p3429 = pneg %p160
      $region66: #{encoder_rnn_forward.1} parent=63 // pred_check_branch
        %3431 = sbr.rel (%p3429) target = $region68
      $region67: #{encoder_rnn_forward.1} parent=63 // pred_region
        %s3432 = smul.u32 8, %s20
        %p3433 = scmp.lt.s32.totalorder %s3432, 15
        %s3434 = scalar_select %p3433, %s3432, 15
        %s3435 = smul.addr %s3434, 8
        %s3436 = scalar_lea.vmem %s5, %s3435
      $region68: #{encoder_rnn_forward.1} parent=63 // pred_fallthru
        _
      // Predicated region
      $region69: #{encoder_rnn_forward.1} parent=63 // pred_check
        %p3437 = pneg %p188
      $region70: #{encoder_rnn_forward.1} parent=63 // pred_check_branch
        %3439 = sbr.rel (%p3437) target = $region72
      $region71: #{encoder_rnn_forward.1} parent=63 // pred_region
        %s3440 = ssub.s32 1, %s20
        %s3441 = smul.u32 8, %s3440
        %p3442 = scmp.lt.s32.totalorder %s3441, 15
        %s3443 = scalar_select %p3442, %s3441, 15
        %s3444 = smul.addr %s3443, 8
        %s3445 = scalar_lea.vmem %s6, %s3444
      $region72: #{encoder_rnn_forward.1} parent=63 // pred_fallthru
        _
    $region64: #{encoder_rnn_forward.1} parent=5 // pred_fallthru
      _
  $region6: #{encoder_rnn_forward.1} parent=0 // loop_footer
    %s18 = sadd.s32 1, %s14
  $region7: #{encoder_rnn_forward.1} parent=0 // loop_footer_branch
    %13 = sbr.rel target = $region3
  $region8: #{encoder_rnn_forward.1} parent=0 // loop_exit
    _

</llo_original>
